<compile_context>
chip_gen: v7x
topology: tpu7x:2x2x1
jax: 0.10.0
libtpu: 0.0.40
codegen_flags: <defaults>
</compile_context>

<pallas_src>
import math

import jax
import jax.numpy as jnp
from jax.experimental import pallas as pl
from jax.experimental.pallas import tpu as pltpu


# ----------------------------------------------------------------------------- kernel
def make_dsvae_kernel(w_dim: int, z_dim: int):
    latent = w_dim + z_dim
    qy_lane = 3 * latent                    # lane holding qy in the small-output tile

    def kernel(x_ref, eps_ref,
               W1_ref, b1_ref, W2_ref, b2_ref, W3_ref, b3_ref,
               Wd1_ref, bd1_ref, Wd2_ref, bd2_ref, Wd3_ref, bd3_ref,
               Wy_ref, by_ref,
               px_ref, small_ref):
        f32, bf16 = jnp.float32, jnp.bfloat16

        def relu(v):
            return jnp.maximum(v, 0.0)

        def sigmoid(v):
            # tanh-form logistic: a single EUP op, f32 elementwise (v5e-safe)
            return 0.5 * (jnp.tanh(0.5 * v) + 1.0)

        def mm(a, w_ref):
            # bf16 MXU operands, f32 accumulation
            return jnp.dot(a.astype(bf16), w_ref[...], preferred_element_type=f32)

        # ---- fused encoders --------------------------------------------------
        x = x_ref[...]                                         # (tb, Dx)
        h1 = relu(mm(x, W1_ref) + b1_ref[...])                 # (tb, 512)  [encW.0 | encZ.0]
        h2 = relu(mm(h1, W2_ref) + b2_ref[...])                # (tb, 256)  block-diag layer 2
        stats = mm(h2, W3_ref) + b3_ref[...]                   # (tb, 128)  [mu | ls | ls | 0...]

        # ---- reparameterized sample on a full-width lane tile ----------------
        # eps_ref carries eps on lanes [latent, 2*latent) and zeros elsewhere, so
        #   sample = [mu | wz | log_sigma | 0...]   (wz = mu + exp(log_sigma)*eps)
        sample = stats + jnp.exp(stats) * eps_ref[...]         # (tb, 128)

        # ---- classifier q(y|w): Wy is nonzero only on the w lanes of `sample`
        qy_logit = jnp.sum(sample * Wy_ref[...], axis=-1, keepdims=True) + by_ref[...]
        qy = sigmoid(qy_logit)                                 # (tb, 1)

        # one unmasked lane-dense store: [mu | wz | log_sigma | qy | 0...]
        lane = jax.lax.broadcasted_iota(jnp.int32, sample.shape, 1)
        small_ref[...] = jnp.where(lane == qy_lane, qy, sample)

        # ---- decoder: Wd1 is nonzero only on the wz lanes of `sample` --------
        d1 = relu(mm(sample, Wd1_ref) + bd1_ref[...])          # (tb, 128)
        d2 = relu(mm(d1, Wd2_ref) + bd2_ref[...])              # (tb, 256)
        px_ref[...] = sigmoid(mm(d2, Wd3_ref) + bd3_ref[...]).astype(px_ref.dtype)

    return kernel


# ----------------------------------------------------------------------------- params
def init_params(key, x_dim, w_dim, z_dim, h1=256, h2=128):
    """PyTorch-style nn.Linear init: U(-1/sqrt(fan_in), +1/sqrt(fan_in))."""
    ks = jax.random.split(key, 10)

    def lin(k, fan_in, fan_out):
        bound = 1.0 / math.sqrt(fan_in)
        kw, kb = jax.random.split(k)
        W = jax.random.uniform(kw, (fan_in, fan_out), jnp.float32, -bound, bound)
        b = jax.random.uniform(kb, (1, fan_out), jnp.float32, -bound, bound)
        return W, b

    p = {}
    p['W1w'], p['b1w'] = lin(ks[0], x_dim, h1)          # encoderW
    p['W2w'], p['b2w'] = lin(ks[1], h1, h2)
    p['W3w'], p['b3w'] = lin(ks[2], h2, 2 * w_dim)
    p['W1z'], p['b1z'] = lin(ks[3], x_dim, h1)          # encoderZ
    p['W2z'], p['b2z'] = lin(ks[4], h1, h2)
    p['W3z'], p['b3z'] = lin(ks[5], h2, 2 * z_dim)
    p['Wd1'], p['bd1'] = lin(ks[6], w_dim + z_dim, h2)  # decoder
    p['Wd2'], p['bd2'] = lin(ks[7], h2, h1)
    p['Wd3'], p['bd3'] = lin(ks[8], h1, x_dim)
    p['Wy'],  p['by'] = lin(ks[9], w_dim, 1)            # decoderY
    return p


def fuse_params(p, w_dim, z_dim):
    """Build the fused / bf16 operand set consumed by the kernel (done once)."""
    bf16 = jnp.bfloat16
    latent = w_dim + z_dim
    assert 3 * latent + 1 <= 128, "latent dims too large for the packed 128-lane tile"
    h1 = p['W1w'].shape[1]                        # 256
    h2 = p['W2w'].shape[1]                        # 128

    # encoder layer 1: both branches share the input x -> concat along output dim
    W1 = jnp.concatenate([p['W1w'], p['W1z']], axis=1)                 # (x_dim, 512)
    b1 = jnp.concatenate([p['b1w'], p['b1z']], axis=1)

    # encoder layer 2: block-diagonal fusion -> a single N=256 matmul
    z12 = jnp.zeros((h1, h2), jnp.float32)
    W2 = jnp.concatenate([jnp.concatenate([p['W2w'], z12], axis=1),
                          jnp.concatenate([z12, p['W2z']], axis=1)], axis=0)  # (512, 256)
    b2 = jnp.concatenate([p['b2w'], p['b2z']], axis=1)

    # encoder layer 3: block-diagonal, lane-padded to 128 output columns with
    # layout [mu_w | mu_z | ls_w | ls_z | ls_w | ls_z | 0...].  log_sigma is
    # duplicated so the kernel's fused reparameterization tile simultaneously
    # holds mu, wz and log_sigma without any lane movement.
    W3w_mu, W3w_ls = p['W3w'][:, :w_dim], p['W3w'][:, w_dim:]
    W3z_mu, W3z_ls = p['W3z'][:, :z_dim], p['W3z'][:, z_dim:]
    zw = jnp.zeros((h2, z_dim), jnp.float32)
    zz = jnp.zeros((h2, w_dim), jnp.float32)
    top = jnp.concatenate([W3w_mu, zw, W3w_ls, zw, W3w_ls, zw], axis=1)
    bot = jnp.concatenate([zz, W3z_mu, zz, W3z_ls, zz, W3z_ls], axis=1)
    W3_core = jnp.concatenate([top, bot], axis=0)                      # (256, 3*latent)
    b3_core = jnp.concatenate([p['b3w'][:, :w_dim], p['b3z'][:, :z_dim],
                               p['b3w'][:, w_dim:], p['b3z'][:, z_dim:],
                               p['b3w'][:, w_dim:], p['b3z'][:, z_dim:]], axis=1)
    pad_cols = 128 - 3 * latent
    W3 = jnp.concatenate([W3_core, jnp.zeros((2 * h2, pad_cols), jnp.float32)], axis=1)
    b3 = jnp.concatenate([b3_core, jnp.zeros((1, pad_cols), jnp.float32)], axis=1)

    # decoder layer 1: weight rows placed on the wz lanes [latent, 2*latent) of
    # the fused sample tile; zero everywhere else -> single MXU pass, no slices.
    Wd1 = jnp.zeros((128, h2), jnp.float32).at[latent:2 * latent, :].set(p['Wd1'])

    # classifier weight aligned with the w lanes of the sample tile
    Wy = jnp.zeros((1, 128), jnp.float32).at[:, latent:latent + w_dim].set(p['Wy'].T)

    return dict(
        w_dim=w_dim, z_dim=z_dim,
        W1=W1.astype(bf16), b1=b1,
        W2=W2.astype(bf16), b2=b2,
        W3=W3.astype(bf16), b3=b3,
        Wd1=Wd1.astype(bf16), bd1=p['bd1'],
        Wd2=p['Wd2'].astype(bf16), bd2=p['bd2'],
        Wd3=p['Wd3'].astype(bf16), bd3=p['bd3'],
        Wy=Wy, by=p['by'],
    )


# ----------------------------------------------------------------------------- tiling
def _batch_tiling(batch: int, max_tile: int = 512):
    """Pad the batch and pick a batch tile.

    * batch <= max_tile: one grid step (tiny batches are pure weight-DMA;
      splitting only duplicates weight traffic / per-step overhead).
    * larger batches: pad to a multiple of a 512/256-row tile (least padding
      wins, then the larger tile) so per-step overhead is amortized and the
      "parallel" grid axis can shard across TensorCores.
    """
    padded = int(pl.cdiv(batch, 8)) * 8
    if padded <= max_tile:
        return padded, padded
    best_key, best = None, None
    for tb in (max_tile, max_tile // 2):
        p = int(pl.cdiv(batch, tb)) * tb
        key = (p, -tb)
        if best_key is None or key < best_key:
            best_key, best = key, (p, tb)
    return best


# ----------------------------------------------------------------------------- wrapper
def dsvae_forward(fp, x, y, eps_w, eps_z, *, px_dtype=jnp.bfloat16):
    """Pallas port of DSVAE_MNIST.forward(x, y) (y is unused by the reference).

    px_probs is emitted in bf16 by default (halves output HBM traffic); pass
    px_dtype=jnp.float32 if downstream log-likelihoods need full precision.
    """
    del y  # the reference forward never uses y
    w_dim, z_dim = fp['w_dim'], fp['z_dim']
    latent = w_dim + z_dim
    batch = x.shape[0]

    # keep the caller's floating dtype: a bf16 x halves input DMA and the kernel
    # casts to bf16 before the MXU anyway.
    x_flat = x.reshape(batch, -1)
    if not jnp.issubdtype(x_flat.dtype, jnp.floating):
        x_flat = x_flat.astype(jnp.float32)
    x_dim = x_flat.shape[1]

    # eps on lanes [latent, 2*latent) of a lane-dense (batch, 128) tile so the
    # kernel's full-width reparameterization lines up with the duplicated
    # log_sigma columns of the fused stats tile.
    eps = jnp.concatenate([eps_w, eps_z], axis=1).astype(jnp.float32)
    eps_pad = jnp.pad(eps, ((0, 0), (latent, 128 - 2 * latent)))

    padded_batch, tb = _batch_tiling(batch)
    if padded_batch != batch:
        rows = padded_batch - batch
        x_flat = jnp.pad(x_flat, ((0, rows), (0, 0)))
        eps_pad = jnp.pad(eps_pad, ((0, rows), (0, 0)))
    grid = (padded_batch // tb,)

    weight_names = ['W1', 'b1', 'W2', 'b2', 'W3', 'b3',
                    'Wd1', 'bd1', 'Wd2', 'bd2', 'Wd3', 'bd3', 'Wy', 'by']
    weights = [fp[n] for n in weight_names]

    def batch_spec(a):
        return pl.BlockSpec((tb, a.shape[1]), lambda i: (i, 0))

    def const_spec(a):
        # constant index_map -> weights stay VMEM-resident across batch tiles
        return pl.BlockSpec(a.shape, lambda i: (0, 0))

    in_specs = [batch_spec(x_flat), batch_spec(eps_pad)] + [const_spec(a) for a in weights]
    out_shape = (
        jax.ShapeDtypeStruct((padded_batch, x_dim), px_dtype),     # px_probs
        jax.ShapeDtypeStruct((padded_batch, 128), jnp.float32),    # packed small outputs
    )
    out_specs = (
        pl.BlockSpec((tb, x_dim), lambda i: (i, 0)),
        pl.BlockSpec((tb, 128), lambda i: (i, 0)),
    )

    px_probs, small = pl.pallas_call(
        make_dsvae_kernel(w_dim, z_dim),
        out_shape=out_shape,
        grid=grid,
        in_specs=in_specs,
        out_specs=out_specs,
        compiler_params=pltpu.CompilerParams(dimension_semantics=("parallel",)),
    )(x_flat, eps_pad, *weights)

    if padded_batch != batch:
        px_probs, small = px_probs[:batch], small[:batch]

    # packed small-output tile layout: [mu | wz | log_sigma | qy | 0...]
    mu = small[:, :latent]
    wz = small[:, latent:2 * latent]
    log_sigma = small[:, 2 * latent:3 * latent]
    qy_probs = small[:, 3 * latent:3 * latent + 1]

    w, z = wz[:, :w_dim], wz[:, w_dim:]
    mu_w, mu_z = mu[:, :w_dim], mu[:, w_dim:]
    log_sigma_w, log_sigma_z = log_sigma[:, :w_dim], log_sigma[:, w_dim:]

    zeros_w = jnp.zeros((batch, w_dim), jnp.float32)
    zeros_z = jnp.zeros((batch, z_dim), jnp.float32)
    # TODO(synk): torch.distributions objects (ContinuousBernoulli, Bernoulli,
    # ReparameterizedDiagonalGaussian) have no Pallas equivalent; the wrapper
    # returns their defining parameters (probs / mu / log_sigma) instead.
    return {
        'px_probs': px_probs,                              # p(x|w,z) = CB(probs=px_probs)
        'pw': {'mu': zeros_w, 'log_sigma': zeros_w},       # p(w) = N(0, I)
        'pz': {'mu': zeros_z, 'log_sigma': zeros_z},       # p(z) = N(0, I)
        'qw': {'mu': mu_w, 'log_sigma': log_sigma_w},
        'qz': {'mu': mu_z, 'log_sigma': log_sigma_z},
        'x': px_probs,
        'w': w,
        'z': z,
        'qy_probs': qy_probs,                              # q(y|w) = Bernoulli(probs)
    }


# ----------------------------------------------------------------------------- demo
if __name__ == "__main__":
    key = jax.random.PRNGKey(0)
    batch = 2
    chans, height, width = 1, 28, 28                 # MNIST layout implied by x_dim=784
    x_dim = chans * height * width
    w_dim = z_dim = 2                                # module defaults

    kx, ky, kew, kez, kp = jax.random.split(key, 5)
    x = jax.random.uniform(kx, (batch, chans, height, width), dtype=jnp.float32)
    y = jax.random.bernoulli(ky, 0.5, (batch,)).astype(jnp.float32)   # unused by forward
    eps_w = jax.random.normal(kew, (batch, w_dim), dtype=jnp.float32)
    eps_z = jax.random.normal(kez, (batch, z_dim), dtype=jnp.float32)

    params = init_params(kp, x_dim, w_dim, z_dim)
    fused = fuse_params(params, w_dim, z_dim)

    out = dsvae_forward(fused, x, y, eps_w, eps_z)
    jax.block_until_ready(out['x'])

    finite = all(bool(jnp.all(jnp.isfinite(out[k]))) for k in ('x', 'w', 'z', 'qy_probs'))
    in_range = (bool(jnp.all((out['x'] >= 0.0) & (out['x'] <= 1.0)))
                and bool(jnp.all((out['qy_probs'] >= 0.0) & (out['qy_probs'] <= 1.0))))
    assert out['x'].shape == (batch, x_dim)
    assert out['w'].shape == (batch, w_dim) and out['z'].shape == (batch, z_dim)
    assert out['qw']['mu'].shape == (batch, w_dim)
    assert finite and in_range, "invalid forward outputs"
    print("KERNEL_OK")
</pallas_src>

<mosaic_0001>
module attributes {stable_mosaic.version = 11 : i64} {
  func.func @kernel(%arg0: i32, %arg1: memref<8x784xf32, #tpu.memory_space<vmem>>, %arg2: memref<8x128xf32, #tpu.memory_space<vmem>>, %arg3: memref<784x512xbf16, #tpu.memory_space<vmem>>, %arg4: memref<1x512xf32, #tpu.memory_space<vmem>>, %arg5: memref<512x256xbf16, #tpu.memory_space<vmem>>, %arg6: memref<1x256xf32, #tpu.memory_space<vmem>>, %arg7: memref<256x128xbf16, #tpu.memory_space<vmem>>, %arg8: memref<1x128xf32, #tpu.memory_space<vmem>>, %arg9: memref<128x128xbf16, #tpu.memory_space<vmem>>, %arg10: memref<1x128xf32, #tpu.memory_space<vmem>>, %arg11: memref<128x256xbf16, #tpu.memory_space<vmem>>, %arg12: memref<1x256xf32, #tpu.memory_space<vmem>>, %arg13: memref<256x784xbf16, #tpu.memory_space<vmem>>, %arg14: memref<1x784xf32, #tpu.memory_space<vmem>>, %arg15: memref<1x128xf32, #tpu.memory_space<vmem>>, %arg16: memref<1x1xf32, #tpu.memory_space<vmem>>, %arg17: memref<8x784xbf16, #tpu.memory_space<vmem>>, %arg18: memref<8x128xf32, #tpu.memory_space<vmem>>) attributes {dimension_semantics = [#tpu.dimension_semantics<parallel>], iteration_bounds = array<i64: 1>, scalar_prefetch = 0 : i64, scratch_operands = 0 : i64, tpu.core_type = #tpu.core_type<tc>, window_params = [{transform_indices = @transform_0, window_bounds = array<i64: 8, 784>}, {transform_indices = @transform_1, window_bounds = array<i64: 8, 128>}, {pipeline_mode = #tpu.pipeline_mode<synchronous>, transform_indices = @transform_2, window_bounds = array<i64: 784, 512>}, {pipeline_mode = #tpu.pipeline_mode<synchronous>, transform_indices = @transform_3, window_bounds = array<i64: 1, 512>}, {pipeline_mode = #tpu.pipeline_mode<synchronous>, transform_indices = @transform_4, window_bounds = array<i64: 512, 256>}, {pipeline_mode = #tpu.pipeline_mode<synchronous>, transform_indices = @transform_5, window_bounds = array<i64: 1, 256>}, {pipeline_mode = #tpu.pipeline_mode<synchronous>, transform_indices = @transform_6, window_bounds = array<i64: 256, 128>}, {pipeline_mode = #tpu.pipeline_mode<synchronous>, transform_indices = @transform_7, window_bounds = array<i64: 1, 128>}, {pipeline_mode = #tpu.pipeline_mode<synchronous>, transform_indices = @transform_8, window_bounds = array<i64: 128, 128>}, {pipeline_mode = #tpu.pipeline_mode<synchronous>, transform_indices = @transform_9, window_bounds = array<i64: 1, 128>}, {pipeline_mode = #tpu.pipeline_mode<synchronous>, transform_indices = @transform_10, window_bounds = array<i64: 128, 256>}, {pipeline_mode = #tpu.pipeline_mode<synchronous>, transform_indices = @transform_11, window_bounds = array<i64: 1, 256>}, {pipeline_mode = #tpu.pipeline_mode<synchronous>, transform_indices = @transform_12, window_bounds = array<i64: 256, 784>}, {pipeline_mode = #tpu.pipeline_mode<synchronous>, transform_indices = @transform_13, window_bounds = array<i64: 1, 784>}, {pipeline_mode = #tpu.pipeline_mode<synchronous>, transform_indices = @transform_14, window_bounds = array<i64: 1, 128>}, {pipeline_mode = #tpu.pipeline_mode<synchronous>, transform_indices = @transform_15, window_bounds = array<i64: 1, 1>}, {transform_indices = @transform_16, window_bounds = array<i64: 8, 784>}, {transform_indices = @transform_17, window_bounds = array<i64: 8, 128>}]} {
    %c0 = arith.constant 0 : index
    %c0_0 = arith.constant 0 : index
    %0 = vector.load %arg1[%c0, %c0_0] : memref<8x784xf32, #tpu.memory_space<vmem>>, vector<8x784xf32>
    %1 = arith.truncf %0 : vector<8x784xf32> to vector<8x784xbf16>
    %c0_1 = arith.constant 0 : index
    %c0_2 = arith.constant 0 : index
    %2 = vector.load %arg3[%c0_1, %c0_2] : memref<784x512xbf16, #tpu.memory_space<vmem>>, vector<784x512xbf16>
    %cst = arith.constant dense<0.000000e+00> : vector<8x512xf32>
    %3 = tpu.matmul %1, %2, %cst {dimension_numbers = #tpu.dot_dimension_numbers<[1], [0], [0], [1], [0, 0, 1, 1], [], []>} : vector<8x784xbf16>, vector<784x512xbf16>, vector<8x512xf32> -> vector<8x512xf32>
    %c0_3 = arith.constant 0 : index
    %c0_4 = arith.constant 0 : index
    %4 = vector.load %arg4[%c0_3, %c0_4] : memref<1x512xf32, #tpu.memory_space<vmem>>, vector<1x512xf32>
    %5 = vector.broadcast %4 : vector<1x512xf32> to vector<8x512xf32>
    %6 = arith.addf %3, %5 : vector<8x512xf32>
    %cst_5 = arith.constant 0.000000e+00 : f32
    %7 = vector.broadcast %cst_5 : f32 to vector<8x512xf32>
    %8 = arith.maximumf %6, %7 : vector<8x512xf32>
    %9 = arith.truncf %8 : vector<8x512xf32> to vector<8x512xbf16>
    %c0_6 = arith.constant 0 : index
    %c0_7 = arith.constant 0 : index
    %10 = vector.load %arg5[%c0_6, %c0_7] : memref<512x256xbf16, #tpu.memory_space<vmem>>, vector<512x256xbf16>
    %cst_8 = arith.constant dense<0.000000e+00> : vector<8x256xf32>
    %11 = tpu.matmul %9, %10, %cst_8 {dimension_numbers = #tpu.dot_dimension_numbers<[1], [0], [0], [1], [0, 0, 1, 1], [], []>} : vector<8x512xbf16>, vector<512x256xbf16>, vector<8x256xf32> -> vector<8x256xf32>
    %c0_9 = arith.constant 0 : index
    %c0_10 = arith.constant 0 : index
    %12 = vector.load %arg6[%c0_9, %c0_10] : memref<1x256xf32, #tpu.memory_space<vmem>>, vector<1x256xf32>
    %13 = vector.broadcast %12 : vector<1x256xf32> to vector<8x256xf32>
    %14 = arith.addf %11, %13 : vector<8x256xf32>
    %cst_11 = arith.constant 0.000000e+00 : f32
    %15 = vector.broadcast %cst_11 : f32 to vector<8x256xf32>
    %16 = arith.maximumf %14, %15 : vector<8x256xf32>
    %17 = arith.truncf %16 : vector<8x256xf32> to vector<8x256xbf16>
    %c0_12 = arith.constant 0 : index
    %c0_13 = arith.constant 0 : index
    %18 = vector.load %arg7[%c0_12, %c0_13] : memref<256x128xbf16, #tpu.memory_space<vmem>>, vector<256x128xbf16>
    %cst_14 = arith.constant dense<0.000000e+00> : vector<8x128xf32>
    %19 = tpu.matmul %17, %18, %cst_14 {dimension_numbers = #tpu.dot_dimension_numbers<[1], [0], [0], [1], [0, 0, 1, 1], [], []>} : vector<8x256xbf16>, vector<256x128xbf16>, vector<8x128xf32> -> vector<8x128xf32>
    %c0_15 = arith.constant 0 : index
    %c0_16 = arith.constant 0 : index
    %20 = vector.load %arg8[%c0_15, %c0_16] : memref<1x128xf32, #tpu.memory_space<vmem>>, vector<1x128xf32>
    %21 = vector.broadcast %20 : vector<1x128xf32> to vector<8x128xf32>
    %22 = arith.addf %19, %21 : vector<8x128xf32>
    %23 = math.exp %22 : vector<8x128xf32>
    %c0_17 = arith.constant 0 : index
    %c0_18 = arith.constant 0 : index
    %24 = vector.load %arg2[%c0_17, %c0_18] : memref<8x128xf32, #tpu.memory_space<vmem>>, vector<8x128xf32>
    %25 = arith.mulf %23, %24 : vector<8x128xf32>
    %26 = arith.addf %22, %25 : vector<8x128xf32>
    %c0_19 = arith.constant 0 : index
    %c0_20 = arith.constant 0 : index
    %27 = vector.load %arg15[%c0_19, %c0_20] : memref<1x128xf32, #tpu.memory_space<vmem>>, vector<1x128xf32>
    %28 = vector.broadcast %27 : vector<1x128xf32> to vector<8x128xf32>
    %29 = arith.mulf %26, %28 : vector<8x128xf32>
    %cst_21 = arith.constant dense<0.000000e+00> : vector<8xf32>
    %30 = vector.multi_reduction <add>, %29, %cst_21 [1] : vector<8x128xf32> to vector<8xf32>
    %31 = vector.shape_cast %30 : vector<8xf32> to vector<8x1xf32>
    %c0_22 = arith.constant 0 : index
    %c0_23 = arith.constant 0 : index
    %32 = vector.load %arg16[%c0_22, %c0_23] : memref<1x1xf32, #tpu.memory_space<vmem>>, vector<1x1xf32>
    %33 = vector.broadcast %32 : vector<1x1xf32> to vector<8x1xf32>
    %34 = arith.addf %31, %33 : vector<8x1xf32>
    %cst_24 = arith.constant 5.000000e-01 : f32
    %35 = vector.broadcast %cst_24 : f32 to vector<8x1xf32>
    %36 = arith.mulf %35, %34 : vector<8x1xf32>
    %37 = math.tanh %36 : vector<8x1xf32>
    %cst_25 = arith.constant 1.000000e+00 : f32
    %38 = vector.broadcast %cst_25 : f32 to vector<8x1xf32>
    %39 = arith.addf %37, %38 : vector<8x1xf32>
    %cst_26 = arith.constant 5.000000e-01 : f32
    %40 = vector.broadcast %cst_26 : f32 to vector<8x1xf32>
    %41 = arith.mulf %40, %39 : vector<8x1xf32>
    %42 = tpu.iota {dimensions = array<i32: 1>} : vector<8x128xi32>
    %c12_i32 = arith.constant 12 : i32
    %43 = vector.broadcast %c12_i32 : i32 to vector<8x128xi32>
    %44 = arith.cmpi eq, %42, %43 : vector<8x128xi32>
    %45 = vector.shape_cast %41 : vector<8x1xf32> to vector<8x1xf32>
    %46 = vector.broadcast %45 : vector<8x1xf32> to vector<8x128xf32>
    %47 = arith.select %44, %46, %26 : vector<8x128xi1>, vector<8x128xf32>
    %c0_27 = arith.constant 0 : index
    %c0_28 = arith.constant 0 : index
    %48 = vector.load %arg18[%c0_27, %c0_28] : memref<8x128xf32, #tpu.memory_space<vmem>>, vector<8x128xf32>
    tpu.vector_store %arg18[%c0_27, %c0_28], %47 {strides = array<i32>} : memref<8x128xf32, #tpu.memory_space<vmem>>, vector<8x128xf32>,
    %49 = arith.truncf %26 : vector<8x128xf32> to vector<8x128xbf16>
    %c0_29 = arith.constant 0 : index
    %c0_30 = arith.constant 0 : index
    %50 = vector.load %arg9[%c0_29, %c0_30] : memref<128x128xbf16, #tpu.memory_space<vmem>>, vector<128x128xbf16>
    %cst_31 = arith.constant dense<0.000000e+00> : vector<8x128xf32>
    %51 = tpu.matmul %49, %50, %cst_31 {dimension_numbers = #tpu.dot_dimension_numbers<[1], [0], [0], [1], [0, 0, 1, 1], [], []>} : vector<8x128xbf16>, vector<128x128xbf16>, vector<8x128xf32> -> vector<8x128xf32>
    %c0_32 = arith.constant 0 : index
    %c0_33 = arith.constant 0 : index
    %52 = vector.load %arg10[%c0_32, %c0_33] : memref<1x128xf32, #tpu.memory_space<vmem>>, vector<1x128xf32>
    %53 = vector.broadcast %52 : vector<1x128xf32> to vector<8x128xf32>
    %54 = arith.addf %51, %53 : vector<8x128xf32>
    %cst_34 = arith.constant 0.000000e+00 : f32
    %55 = vector.broadcast %cst_34 : f32 to vector<8x128xf32>
    %56 = arith.maximumf %54, %55 : vector<8x128xf32>
    %57 = arith.truncf %56 : vector<8x128xf32> to vector<8x128xbf16>
    %c0_35 = arith.constant 0 : index
    %c0_36 = arith.constant 0 : index
    %58 = vector.load %arg11[%c0_35, %c0_36] : memref<128x256xbf16, #tpu.memory_space<vmem>>, vector<128x256xbf16>
    %cst_37 = arith.constant dense<0.000000e+00> : vector<8x256xf32>
    %59 = tpu.matmul %57, %58, %cst_37 {dimension_numbers = #tpu.dot_dimension_numbers<[1], [0], [0], [1], [0, 0, 1, 1], [], []>} : vector<8x128xbf16>, vector<128x256xbf16>, vector<8x256xf32> -> vector<8x256xf32>
    %c0_38 = arith.constant 0 : index
    %c0_39 = arith.constant 0 : index
    %60 = vector.load %arg12[%c0_38, %c0_39] : memref<1x256xf32, #tpu.memory_space<vmem>>, vector<1x256xf32>
    %61 = vector.broadcast %60 : vector<1x256xf32> to vector<8x256xf32>
    %62 = arith.addf %59, %61 : vector<8x256xf32>
    %cst_40 = arith.constant 0.000000e+00 : f32
    %63 = vector.broadcast %cst_40 : f32 to vector<8x256xf32>
    %64 = arith.maximumf %62, %63 : vector<8x256xf32>
    %65 = arith.truncf %64 : vector<8x256xf32> to vector<8x256xbf16>
    %c0_41 = arith.constant 0 : index
    %c0_42 = arith.constant 0 : index
    %66 = vector.load %arg13[%c0_41, %c0_42] : memref<256x784xbf16, #tpu.memory_space<vmem>>, vector<256x784xbf16>
    %cst_43 = arith.constant dense<0.000000e+00> : vector<8x784xf32>
    %67 = tpu.matmul %65, %66, %cst_43 {dimension_numbers = #tpu.dot_dimension_numbers<[1], [0], [0], [1], [0, 0, 1, 1], [], []>} : vector<8x256xbf16>, vector<256x784xbf16>, vector<8x784xf32> -> vector<8x784xf32>
    %c0_44 = arith.constant 0 : index
    %c0_45 = arith.constant 0 : index
    %68 = vector.load %arg14[%c0_44, %c0_45] : memref<1x784xf32, #tpu.memory_space<vmem>>, vector<1x784xf32>
    %69 = vector.broadcast %68 : vector<1x784xf32> to vector<8x784xf32>
    %70 = arith.addf %67, %69 : vector<8x784xf32>
    %cst_46 = arith.constant 5.000000e-01 : f32
    %71 = vector.broadcast %cst_46 : f32 to vector<8x784xf32>
    %72 = arith.mulf %71, %70 : vector<8x784xf32>
    %73 = math.tanh %72 : vector<8x784xf32>
    %cst_47 = arith.constant 1.000000e+00 : f32
    %74 = vector.broadcast %cst_47 : f32 to vector<8x784xf32>
    %75 = arith.addf %73, %74 : vector<8x784xf32>
    %cst_48 = arith.constant 5.000000e-01 : f32
    %76 = vector.broadcast %cst_48 : f32 to vector<8x784xf32>
    %77 = arith.mulf %76, %75 : vector<8x784xf32>
    %78 = arith.truncf %77 : vector<8x784xf32> to vector<8x784xbf16>
    %c0_49 = arith.constant 0 : index
    %c0_50 = arith.constant 0 : index
    %79 = vector.load %arg17[%c0_49, %c0_50] : memref<8x784xbf16, #tpu.memory_space<vmem>>, vector<8x784xbf16>
    tpu.vector_store %arg17[%c0_49, %c0_50], %78 {strides = array<i32>} : memref<8x784xbf16, #tpu.memory_space<vmem>>, vector<8x784xbf16>,
    return
  }
  func.func @transform_0(%arg0: i32) -> (i32, i32) {
    %c0_i32 = arith.constant 0 : i32
    %c0_i32_0 = arith.constant 0 : i32
    return %arg0, %c0_i32 : i32, i32
  }
  func.func @transform_1(%arg0: i32) -> (i32, i32) {
    %c0_i32 = arith.constant 0 : i32
    %c0_i32_0 = arith.constant 0 : i32
    return %arg0, %c0_i32 : i32, i32
  }
  func.func @transform_2(%arg0: i32) -> (i32, i32) {
    %c0_i32 = arith.constant 0 : i32
    %c0_i32_0 = arith.constant 0 : i32
    %c0_i32_1 = arith.constant 0 : i32
    return %c0_i32, %c0_i32_0 : i32, i32
  }
  func.func @transform_3(%arg0: i32) -> (i32, i32) {
    %c0_i32 = arith.constant 0 : i32
    %c0_i32_0 = arith.constant 0 : i32
    %c0_i32_1 = arith.constant 0 : i32
    return %c0_i32, %c0_i32_0 : i32, i32
  }
  func.func @transform_4(%arg0: i32) -> (i32, i32) {
    %c0_i32 = arith.constant 0 : i32
    %c0_i32_0 = arith.constant 0 : i32
    %c0_i32_1 = arith.constant 0 : i32
    return %c0_i32, %c0_i32_0 : i32, i32
  }
  func.func @transform_5(%arg0: i32) -> (i32, i32) {
    %c0_i32 = arith.constant 0 : i32
    %c0_i32_0 = arith.constant 0 : i32
    %c0_i32_1 = arith.constant 0 : i32
    return %c0_i32, %c0_i32_0 : i32, i32
  }
  func.func @transform_6(%arg0: i32) -> (i32, i32) {
    %c0_i32 = arith.constant 0 : i32
    %c0_i32_0 = arith.constant 0 : i32
    %c0_i32_1 = arith.constant 0 : i32
    return %c0_i32, %c0_i32_0 : i32, i32
  }
  func.func @transform_7(%arg0: i32) -> (i32, i32) {
    %c0_i32 = arith.constant 0 : i32
    %c0_i32_0 = arith.constant 0 : i32
    %c0_i32_1 = arith.constant 0 : i32
    return %c0_i32, %c0_i32_0 : i32, i32
  }
  func.func @transform_8(%arg0: i32) -> (i32, i32) {
    %c0_i32 = arith.constant 0 : i32
    %c0_i32_0 = arith.constant 0 : i32
    %c0_i32_1 = arith.constant 0 : i32
    return %c0_i32, %c0_i32_0 : i32, i32
  }
  func.func @transform_9(%arg0: i32) -> (i32, i32) {
    %c0_i32 = arith.constant 0 : i32
    %c0_i32_0 = arith.constant 0 : i32
    %c0_i32_1 = arith.constant 0 : i32
    return %c0_i32, %c0_i32_0 : i32, i32
  }
  func.func @transform_10(%arg0: i32) -> (i32, i32) {
    %c0_i32 = arith.constant 0 : i32
    %c0_i32_0 = arith.constant 0 : i32
    %c0_i32_1 = arith.constant 0 : i32
    return %c0_i32, %c0_i32_0 : i32, i32
  }
  func.func @transform_11(%arg0: i32) -> (i32, i32) {
    %c0_i32 = arith.constant 0 : i32
    %c0_i32_0 = arith.constant 0 : i32
    %c0_i32_1 = arith.constant 0 : i32
    return %c0_i32, %c0_i32_0 : i32, i32
  }
  func.func @transform_12(%arg0: i32) -> (i32, i32) {
    %c0_i32 = arith.constant 0 : i32
    %c0_i32_0 = arith.constant 0 : i32
    %c0_i32_1 = arith.constant 0 : i32
    return %c0_i32, %c0_i32_0 : i32, i32
  }
  func.func @transform_13(%arg0: i32) -> (i32, i32) {
    %c0_i32 = arith.constant 0 : i32
    %c0_i32_0 = arith.constant 0 : i32
    %c0_i32_1 = arith.constant 0 : i32
    return %c0_i32, %c0_i32_0 : i32, i32
  }
  func.func @transform_14(%arg0: i32) -> (i32, i32) {
    %c0_i32 = arith.constant 0 : i32
    %c0_i32_0 = arith.constant 0 : i32
    %c0_i32_1 = arith.constant 0 : i32
    return %c0_i32, %c0_i32_0 : i32, i32
  }
  func.func @transform_15(%arg0: i32) -> (i32, i32) {
    %c0_i32 = arith.constant 0 : i32
    %c0_i32_0 = arith.constant 0 : i32
    %c0_i32_1 = arith.constant 0 : i32
    return %c0_i32, %c0_i32_0 : i32, i32
  }
  func.func @transform_16(%arg0: i32) -> (i32, i32) {
    %c0_i32 = arith.constant 0 : i32
    %c0_i32_0 = arith.constant 0 : i32
    return %arg0, %c0_i32 : i32, i32
  }
  func.func @transform_17(%arg0: i32) -> (i32, i32) {
    %c0_i32 = arith.constant 0 : i32
    %c0_i32_0 = arith.constant 0 : i32
    return %arg0, %c0_i32 : i32, i32
  }
}

</mosaic_0001>

<llo_original>
// kernel: tpu_custom_call.1
$region0: #{tpu_custom_call.1}
  #allocation0 [shape = 'u32[]', space=smem, size = 0x4, offset = 0x4, fixed_abs, tag = 'smem constant byte address 0x4 - core index']
  #allocation1 [shape = 'u32[144,128]{1,0:T(1,128)}', space=vmem, size = 0x12000, scoped, tag = 'internal scratch']
  #allocation2 [shape = 'f32[1,1]{1,0:T(1,128)S(1)}', space=vmem, size = 0x200, scoped, tag = 'scoped memory for tpu_custom_call.1']
  %s0 = inlined_call_operand.hbm [shape: f32[8,784], index: 0, kind: input, shape index: {}]
  %s1 = inlined_call_operand.hbm [shape: f32[8,128], index: 1, kind: input, shape index: {}]
  %s2 = inlined_call_operand.vmem [shape: bf16[784,512], index: 2, kind: input, shape index: {}]
  %s3 = inlined_call_operand.hbm [shape: f32[1,512], index: 3, kind: input, shape index: {}]
  %s4 = inlined_call_operand.hbm [shape: bf16[512,256], index: 4, kind: input, shape index: {}]
  %s5 = inlined_call_operand.vmem [shape: f32[1,256], index: 5, kind: input, shape index: {}]
  %s6 = inlined_call_operand.vmem [shape: bf16[256,128], index: 6, kind: input, shape index: {}]
  %s7 = inlined_call_operand.hbm [shape: f32[1,128], index: 7, kind: input, shape index: {}]
  %s8 = inlined_call_operand.hbm [shape: bf16[128,128], index: 8, kind: input, shape index: {}]
  %s9 = inlined_call_operand.vmem [shape: f32[1,128], index: 9, kind: input, shape index: {}]
  %s10 = inlined_call_operand.hbm [shape: bf16[128,256], index: 10, kind: input, shape index: {}]
  %s11 = inlined_call_operand.vmem [shape: f32[1,256], index: 11, kind: input, shape index: {}]
  %s12 = inlined_call_operand.vmem [shape: bf16[256,784], index: 12, kind: input, shape index: {}]
  %s13 = inlined_call_operand.vmem [shape: f32[1,784], index: 13, kind: input, shape index: {}]
  %s14 = inlined_call_operand.vmem [shape: f32[1,128], index: 14, kind: input, shape index: {}]
  %s15 = inlined_call_operand.<no memory space> [shape: f32[1,1], index: 15, kind: input, shape index: {}]
  %s16 = inlined_call_operand.hbm [shape: bf16[8,784], index: 16, kind: output, shape index: {0}]
  %s17 = inlined_call_operand.hbm [shape: f32[8,128], index: 17, kind: output, shape index: {1}]
  %18 = xla_tuple %s16, %s17
  %s19 = sld [smem:[#allocation0]]
  $region110: #{tpu_custom_call.1} parent=0
    _
  %s21 = ssub.s32 1, %s19
  %s22 = scalar_select 0, %s21, %s19
  %v23 = vstv %s15
  %24 = vst [vmem:[#allocation2] sm:$0x1] %v23
  $region1: #{tpu_custom_call.1} parent=0
    #allocation3 [shape = 'u8[28672]{0}', space=vmem, size = 0x7000, scoped, tag = 'input window, operand 0, single buffered']
    #allocation4 [shape = 's32[1]{0}', space=sflag, size = 0x4, scoped, tag = 'scoped memory for tpu_custom_call.1']
    #allocation5 [shape = 's32[1]{0}', space=sflag, size = 0x4, scoped, tag = 'scoped memory for tpu_custom_call.1']
    #allocation6 [shape = 'u8[4096]{0}', space=vmem, size = 0x1000, scoped, tag = 'input window, operand 1, single buffered']
    #allocation7 [shape = 's32[1]{0}', space=sflag, size = 0x4, scoped, tag = 'scoped memory for tpu_custom_call.1']
    #allocation8 [shape = 'u8[2048]{0}', space=vmem, size = 0x800, scoped, tag = 'input window, operand 3, single buffered']
    #allocation9 [shape = 'u8[262144]{0}', space=vmem, size = 0x40000, scoped, tag = 'input window, operand 4, single buffered']
    #allocation10 [shape = 's32[1]{0}', space=sflag, size = 0x4, scoped, tag = 'scoped memory for tpu_custom_call.1']
    #allocation11 [shape = 'u8[512]{0}', space=vmem, size = 0x400, scoped, tag = 'input window, operand 7, single buffered']
    #allocation12 [shape = 'u8[32768]{0}', space=vmem, size = 0x8000, scoped, tag = 'input window, operand 8, single buffered']
    #allocation13 [shape = 's32[1]{0}', space=sflag, size = 0x4, scoped, tag = 'scoped memory for tpu_custom_call.1']
    #allocation14 [shape = 'u8[65536]{0}', space=vmem, size = 0x10000, scoped, tag = 'input window, operand 10, single buffered']
    #allocation15 [shape = 'u8[14336]{0}', space=vmem, size = 0x3800, scoped, tag = 'output window, operand 0, single buffered']
    #allocation16 [shape = 'u8[4096]{0}', space=vmem, size = 0x1000, scoped, tag = 'output window, operand 1, single buffered']
    #allocation17 [shape = 's32[1]{0}', space=sflag, size = 0x4, scoped, tag = 'scoped memory for tpu_custom_call.1']
    %25 = vsyncpa [#allocation4], 0
    %26 = vsyncpa [#allocation7], 0
    %27 = vsyncpa [#allocation10], 0
    %28 = vsyncpa [#allocation13], 0
    %29 = vsyncpa [#allocation5], 0
    %30 = vsyncpa [#allocation17], 0
    // Predicated region
    $region2: #{tpu_custom_call.1} parent=1 // pred_check
      _
    $region3: #{tpu_custom_call.1} parent=1 // pred_check_branch
      %32 = sbr.rel (0) target = $region5
    $region4: #{tpu_custom_call.1} parent=1 // pred_region
      %s34 = ssub.s32 896, 896
      %35 = vsyncadd [#allocation4], %s34
      %s37 = sshll.u32 [#allocation3], 4
      %s38 = int_to_ptr.vmem [resolvable:$true] %s37
      %40 = dma.hbm_to_vmem [thread:$0]  %s0, 896, %s38, [#allocation4]
    $region5: #{tpu_custom_call.1} parent=1 // pred_fallthru
      _
    // Predicated region
    $region6: #{tpu_custom_call.1} parent=1 // pred_check
      _
    $region7: #{tpu_custom_call.1} parent=1 // pred_check_branch
      %42 = sbr.rel (0) target = $region9
    $region8: #{tpu_custom_call.1} parent=1 // pred_region
      %s44 = ssub.s32 128, 128
      %45 = vsyncadd [#allocation7], %s44
      %s47 = sshll.u32 [#allocation6], 4
      %s48 = int_to_ptr.vmem [resolvable:$true] %s47
      %50 = dma.hbm_to_vmem [thread:$0]  %s1, 128, %s48, [#allocation7]
    $region9: #{tpu_custom_call.1} parent=1 // pred_fallthru
      _
    // Predicated region
    $region10: #{tpu_custom_call.1} parent=1 // pred_check
      _
    $region11: #{tpu_custom_call.1} parent=1 // pred_check_branch
      %52 = sbr.rel (0) target = $region13
    $region12: #{tpu_custom_call.1} parent=1 // pred_region
      _
    $region13: #{tpu_custom_call.1} parent=1 // pred_fallthru
      _
    // Predicated region
    $region14: #{tpu_custom_call.1} parent=1 // pred_check
      _
    $region15: #{tpu_custom_call.1} parent=1 // pred_check_branch
      %54 = sbr.rel (0) target = $region17
    $region16: #{tpu_custom_call.1} parent=1 // pred_region
      %s56 = ssub.s32 64, 64
      %57 = vsyncadd [#allocation7], %s56
      %s59 = sshll.u32 [#allocation8], 4
      %s60 = int_to_ptr.vmem [resolvable:$true] %s59
      %62 = dma.hbm_to_vmem [thread:$0]  %s3, 64, %s60, [#allocation7]
    $region17: #{tpu_custom_call.1} parent=1 // pred_fallthru
      _
    // Predicated region
    $region18: #{tpu_custom_call.1} parent=1 // pred_check
      _
    $region19: #{tpu_custom_call.1} parent=1 // pred_check_branch
      %64 = sbr.rel (0) target = $region21
    $region20: #{tpu_custom_call.1} parent=1 // pred_region
      %s66 = ssub.s32 8192, 8192
      %67 = vsyncadd [#allocation10], %s66
      %s68 = sshll.u32 [#allocation9], 4
      %s69 = int_to_ptr.vmem [resolvable:$true] %s68
      %74 = dma.hbm_to_vmem [thread:$0]  %s4, 8192, %s69, [#allocation10], 128, 128, 8
    $region21: #{tpu_custom_call.1} parent=1 // pred_fallthru
      _
    // Predicated region
    $region22: #{tpu_custom_call.1} parent=1 // pred_check
      _
    $region23: #{tpu_custom_call.1} parent=1 // pred_check_branch
      %76 = sbr.rel (0) target = $region25
    $region24: #{tpu_custom_call.1} parent=1 // pred_region
      _
    $region25: #{tpu_custom_call.1} parent=1 // pred_fallthru
      _
    // Predicated region
    $region26: #{tpu_custom_call.1} parent=1 // pred_check
      _
    $region27: #{tpu_custom_call.1} parent=1 // pred_check_branch
      %78 = sbr.rel (0) target = $region29
    $region28: #{tpu_custom_call.1} parent=1 // pred_region
      _
    $region29: #{tpu_custom_call.1} parent=1 // pred_fallthru
      _
    // Predicated region
    $region30: #{tpu_custom_call.1} parent=1 // pred_check
      _
    $region31: #{tpu_custom_call.1} parent=1 // pred_check_branch
      %80 = sbr.rel (0) target = $region33
    $region32: #{tpu_custom_call.1} parent=1 // pred_region
      %s82 = ssub.s32 16, 16
      %83 = vsyncadd [#allocation10], %s82
      %s85 = sshll.u32 [#allocation11], 4
      %s86 = int_to_ptr.vmem [resolvable:$true] %s85
      %88 = dma.hbm_to_vmem [thread:$0]  %s7, 16, %s86, [#allocation10]
    $region33: #{tpu_custom_call.1} parent=1 // pred_fallthru
      _
    // Predicated region
    $region34: #{tpu_custom_call.1} parent=1 // pred_check
      _
    $region35: #{tpu_custom_call.1} parent=1 // pred_check_branch
      %90 = sbr.rel (0) target = $region37
    $region36: #{tpu_custom_call.1} parent=1 // pred_region
      %s92 = ssub.s32 1024, 1024
      %93 = vsyncadd [#allocation13], %s92
      %s94 = sshll.u32 [#allocation12], 4
      %s95 = int_to_ptr.vmem [resolvable:$true] %s94
      %100 = dma.hbm_to_vmem [thread:$0]  %s8, 1024, %s95, [#allocation13], 64, 64, 4
    $region37: #{tpu_custom_call.1} parent=1 // pred_fallthru
      _
    // Predicated region
    $region38: #{tpu_custom_call.1} parent=1 // pred_check
      _
    $region39: #{tpu_custom_call.1} parent=1 // pred_check_branch
      %102 = sbr.rel (0) target = $region41
    $region40: #{tpu_custom_call.1} parent=1 // pred_region
      _
    $region41: #{tpu_custom_call.1} parent=1 // pred_fallthru
      _
    // Predicated region
    $region42: #{tpu_custom_call.1} parent=1 // pred_check
      _
    $region43: #{tpu_custom_call.1} parent=1 // pred_check_branch
      %104 = sbr.rel (0) target = $region45
    $region44: #{tpu_custom_call.1} parent=1 // pred_region
      %s106 = ssub.s32 2048, 2048
      %107 = vsyncadd [#allocation13], %s106
      %s108 = sshll.u32 [#allocation14], 4
      %s109 = int_to_ptr.vmem [resolvable:$true] %s108
      %114 = dma.hbm_to_vmem [thread:$0]  %s10, 2048, %s109, [#allocation13], 128, 128, 8
    $region45: #{tpu_custom_call.1} parent=1 // pred_fallthru
      _
    // Predicated region
    $region46: #{tpu_custom_call.1} parent=1 // pred_check
      _
    $region47: #{tpu_custom_call.1} parent=1 // pred_check_branch
      %116 = sbr.rel (0) target = $region49
    $region48: #{tpu_custom_call.1} parent=1 // pred_region
      _
    $region49: #{tpu_custom_call.1} parent=1 // pred_fallthru
      _
    // Predicated region
    $region50: #{tpu_custom_call.1} parent=1 // pred_check
      _
    $region51: #{tpu_custom_call.1} parent=1 // pred_check_branch
      %118 = sbr.rel (0) target = $region53
    $region52: #{tpu_custom_call.1} parent=1 // pred_region
      _
    $region53: #{tpu_custom_call.1} parent=1 // pred_fallthru
      _
    // Predicated region
    $region54: #{tpu_custom_call.1} parent=1 // pred_check
      _
    $region55: #{tpu_custom_call.1} parent=1 // pred_check_branch
      %120 = sbr.rel (0) target = $region57
    $region56: #{tpu_custom_call.1} parent=1 // pred_region
      _
    $region57: #{tpu_custom_call.1} parent=1 // pred_fallthru
      _
    // Predicated region
    $region58: #{tpu_custom_call.1} parent=1 // pred_check
      _
    $region59: #{tpu_custom_call.1} parent=1 // pred_check_branch
      %122 = sbr.rel (0) target = $region61
    $region60: #{tpu_custom_call.1} parent=1 // pred_region
      _
    $region61: #{tpu_custom_call.1} parent=1 // pred_fallthru
      _
    // Predicated region
    $region62: #{tpu_custom_call.1} parent=1 // pred_check
      _
    $region63: #{tpu_custom_call.1} parent=1 // pred_check_branch
      %124 = sbr.rel (0) target = $region65
    $region64: #{tpu_custom_call.1} parent=1 // pred_region
      _
    $region65: #{tpu_custom_call.1} parent=1 // pred_fallthru
      _
    // Predicated region
    $region66: #{tpu_custom_call.1} parent=1 // pred_check
      _
    $region67: #{tpu_custom_call.1} parent=1 // pred_check_branch
      %126 = sbr.rel (0) target = $region69
    $region68: #{tpu_custom_call.1} parent=1 // pred_region
      %127 = dma.done [#allocation4], 896
    $region69: #{tpu_custom_call.1} parent=1 // pred_fallthru
      _
    // Predicated region
    $region70: #{tpu_custom_call.1} parent=1 // pred_check
      _
    $region71: #{tpu_custom_call.1} parent=1 // pred_check_branch
      %129 = sbr.rel (0) target = $region73
    $region72: #{tpu_custom_call.1} parent=1 // pred_region
      %130 = dma.done [#allocation7], 128
    $region73: #{tpu_custom_call.1} parent=1 // pred_fallthru
      _
    // Predicated region
    $region74: #{tpu_custom_call.1} parent=1 // pred_check
      _
    $region75: #{tpu_custom_call.1} parent=1 // pred_check_branch
      %132 = sbr.rel (0) target = $region77
    $region76: #{tpu_custom_call.1} parent=1 // pred_region
      %133 = dma.done [#allocation7], 64
    $region77: #{tpu_custom_call.1} parent=1 // pred_fallthru
      _
    // Predicated region
    $region78: #{tpu_custom_call.1} parent=1 // pred_check
      _
    $region79: #{tpu_custom_call.1} parent=1 // pred_check_branch
      %135 = sbr.rel (0) target = $region81
    $region80: #{tpu_custom_call.1} parent=1 // pred_region
      %136 = dma.done [#allocation10], 8192
    $region81: #{tpu_custom_call.1} parent=1 // pred_fallthru
      _
    // Predicated region
    $region82: #{tpu_custom_call.1} parent=1 // pred_check
      _
    $region83: #{tpu_custom_call.1} parent=1 // pred_check_branch
      %138 = sbr.rel (0) target = $region85
    $region84: #{tpu_custom_call.1} parent=1 // pred_region
      %139 = dma.done [#allocation10], 16
    $region85: #{tpu_custom_call.1} parent=1 // pred_fallthru
      _
    // Predicated region
    $region86: #{tpu_custom_call.1} parent=1 // pred_check
      _
    $region87: #{tpu_custom_call.1} parent=1 // pred_check_branch
      %141 = sbr.rel (0) target = $region89
    $region88: #{tpu_custom_call.1} parent=1 // pred_region
      %142 = dma.done [#allocation13], 1024
    $region89: #{tpu_custom_call.1} parent=1 // pred_fallthru
      _
    // Predicated region
    $region90: #{tpu_custom_call.1} parent=1 // pred_check
      _
    $region91: #{tpu_custom_call.1} parent=1 // pred_check_branch
      %144 = sbr.rel (0) target = $region93
    $region92: #{tpu_custom_call.1} parent=1 // pred_region
      %145 = dma.done [#allocation13], 2048
    $region93: #{tpu_custom_call.1} parent=1 // pred_fallthru
      _
    %v147 = vld [vmem:[#allocation3] sm:$0xff]
    %v148 = vld [vmem:[#allocation3 + $0x8] sm:$0xff]
    %v149 = vld [vmem:[#allocation3 + $0x10] sm:$0xff]
    %v150 = vld [vmem:[#allocation3 + $0x18] sm:$0xff]
    %v151 = vld [vmem:[#allocation3 + $0x20] sm:$0xff]
    %v152 = vld [vmem:[#allocation3 + $0x28] sm:$0xff]
    %v153 = vld [vmem:[#allocation3 + $0x30] sm:$0xff]
    %v154 = vpack.c.bf16 %v147, %v147
    %v155 = vpack.c.bf16 %v148, %v148
    %v156 = vpack.c.bf16 %v149, %v149
    %v157 = vpack.c.bf16 %v150, %v150
    %v158 = vpack.c.bf16 %v151, %v151
    %v159 = vpack.c.bf16 %v152, %v152
    %v160 = vpack.c.bf16 %v153, %v153
    %v161 = vld [vmem:[%s2] sm:$0xff]
    %v162 = vld [vmem:[%s2 + $0x8] sm:$0xff]
    %v163 = vld [vmem:[%s2 + $0x10] sm:$0xff]
    %v164 = vld [vmem:[%s2 + $0x18] sm:$0xff]
    %v165 = vld [vmem:[%s2 + $0x20] sm:$0xff]
    %v166 = vld [vmem:[%s2 + $0x28] sm:$0xff]
    %v167 = vld [vmem:[%s2 + $0x30] sm:$0xff]
    %v168 = vld [vmem:[%s2 + $0x38] sm:$0xff]
    %v169 = vld [vmem:[%s2 + $0x40] sm:$0xff]
    %v170 = vld [vmem:[%s2 + $0x48] sm:$0xff]
    %v171 = vld [vmem:[%s2 + $0x50] sm:$0xff]
    %v172 = vld [vmem:[%s2 + $0x58] sm:$0xff]
    %v173 = vld [vmem:[%s2 + $0x60] sm:$0xff]
    %v174 = vld [vmem:[%s2 + $0x68] sm:$0xff]
    %v175 = vld [vmem:[%s2 + $0x70] sm:$0xff]
    %v176 = vld [vmem:[%s2 + $0x78] sm:$0xff]
    %v177 = vld [vmem:[%s2 + $0x80] sm:$0xff]
    %v178 = vld [vmem:[%s2 + $0x88] sm:$0xff]
    %v179 = vld [vmem:[%s2 + $0x90] sm:$0xff]
    %v180 = vld [vmem:[%s2 + $0x98] sm:$0xff]
    %v181 = vld [vmem:[%s2 + $0xa0] sm:$0xff]
    %v182 = vld [vmem:[%s2 + $0xa8] sm:$0xff]
    %v183 = vld [vmem:[%s2 + $0xb0] sm:$0xff]
    %v184 = vld [vmem:[%s2 + $0xb8] sm:$0xff]
    %v185 = vld [vmem:[%s2 + $0xc0] sm:$0xff]
    %v186 = vld [vmem:[%s2 + $0xc8] sm:$0xff]
    %v187 = vld [vmem:[%s2 + $0xd0] sm:$0xff]
    %v188 = vld [vmem:[%s2 + $0xd8] sm:$0xff]
    %v189 = vld [vmem:[%s2 + $0xe0] sm:$0xff]
    %v190 = vld [vmem:[%s2 + $0xe8] sm:$0xff]
    %v191 = vld [vmem:[%s2 + $0xf0] sm:$0xff]
    %v192 = vld [vmem:[%s2 + $0xf8] sm:$0xff]
    %v193 = vld [vmem:[%s2 + $0x100] sm:$0xff]
    %v194 = vld [vmem:[%s2 + $0x108] sm:$0xff]
    %v195 = vld [vmem:[%s2 + $0x110] sm:$0xff]
    %v196 = vld [vmem:[%s2 + $0x118] sm:$0xff]
    %v197 = vld [vmem:[%s2 + $0x120] sm:$0xff]
    %v198 = vld [vmem:[%s2 + $0x128] sm:$0xff]
    %v199 = vld [vmem:[%s2 + $0x130] sm:$0xff]
    %v200 = vld [vmem:[%s2 + $0x138] sm:$0xff]
    %v201 = vld [vmem:[%s2 + $0x140] sm:$0xff]
    %v202 = vld [vmem:[%s2 + $0x148] sm:$0xff]
    %v203 = vld [vmem:[%s2 + $0x150] sm:$0xff]
    %v204 = vld [vmem:[%s2 + $0x158] sm:$0xff]
    %v205 = vld [vmem:[%s2 + $0x160] sm:$0xff]
    %v206 = vld [vmem:[%s2 + $0x168] sm:$0xff]
    %v207 = vld [vmem:[%s2 + $0x170] sm:$0xff]
    %v208 = vld [vmem:[%s2 + $0x178] sm:$0xff]
    %v209 = vld [vmem:[%s2 + $0x180] sm:$0xff]
    %v210 = vld [vmem:[%s2 + $0x188] sm:$0xff]
    %v211 = vld [vmem:[%s2 + $0x190] sm:$0xff]
    %v212 = vld [vmem:[%s2 + $0x198] sm:$0xff]
    %v213 = vld [vmem:[%s2 + $0x1a0] sm:$0xff]
    %v214 = vld [vmem:[%s2 + $0x1a8] sm:$0xff]
    %v215 = vld [vmem:[%s2 + $0x1b0] sm:$0xff]
    %v216 = vld [vmem:[%s2 + $0x1b8] sm:$0xff]
    %v217 = vld [vmem:[%s2 + $0x1c0] sm:$0xff]
    %v218 = vld [vmem:[%s2 + $0x1c8] sm:$0xff]
    %v219 = vld [vmem:[%s2 + $0x1d0] sm:$0xff]
    %v220 = vld [vmem:[%s2 + $0x1d8] sm:$0xff]
    %v221 = vld [vmem:[%s2 + $0x1e0] sm:$0xff]
    %v222 = vld [vmem:[%s2 + $0x1e8] sm:$0xff]
    %v223 = vld [vmem:[%s2 + $0x1f0] sm:$0xff]
    %v224 = vld [vmem:[%s2 + $0x1f8] sm:$0xff]
    %v225 = vld [vmem:[%s2 + $0x200] sm:$0xff]
    %v226 = vld [vmem:[%s2 + $0x208] sm:$0xff]
    %v227 = vld [vmem:[%s2 + $0x210] sm:$0xff]
    %v228 = vld [vmem:[%s2 + $0x218] sm:$0xff]
    %v229 = vld [vmem:[%s2 + $0x220] sm:$0xff]
    %v230 = vld [vmem:[%s2 + $0x228] sm:$0xff]
    %v231 = vld [vmem:[%s2 + $0x230] sm:$0xff]
    %v232 = vld [vmem:[%s2 + $0x238] sm:$0xff]
    %v233 = vld [vmem:[%s2 + $0x240] sm:$0xff]
    %v234 = vld [vmem:[%s2 + $0x248] sm:$0xff]
    %v235 = vld [vmem:[%s2 + $0x250] sm:$0xff]
    %v236 = vld [vmem:[%s2 + $0x258] sm:$0xff]
    %v237 = vld [vmem:[%s2 + $0x260] sm:$0xff]
    %v238 = vld [vmem:[%s2 + $0x268] sm:$0xff]
    %v239 = vld [vmem:[%s2 + $0x270] sm:$0xff]
    %v240 = vld [vmem:[%s2 + $0x278] sm:$0xff]
    %v241 = vld [vmem:[%s2 + $0x280] sm:$0xff]
    %v242 = vld [vmem:[%s2 + $0x288] sm:$0xff]
    %v243 = vld [vmem:[%s2 + $0x290] sm:$0xff]
    %v244 = vld [vmem:[%s2 + $0x298] sm:$0xff]
    %v245 = vld [vmem:[%s2 + $0x2a0] sm:$0xff]
    %v246 = vld [vmem:[%s2 + $0x2a8] sm:$0xff]
    %v247 = vld [vmem:[%s2 + $0x2b0] sm:$0xff]
    %v248 = vld [vmem:[%s2 + $0x2b8] sm:$0xff]
    %v249 = vld [vmem:[%s2 + $0x2c0] sm:$0xff]
    %v250 = vld [vmem:[%s2 + $0x2c8] sm:$0xff]
    %v251 = vld [vmem:[%s2 + $0x2d0] sm:$0xff]
    %v252 = vld [vmem:[%s2 + $0x2d8] sm:$0xff]
    %v253 = vld [vmem:[%s2 + $0x2e0] sm:$0xff]
    %v254 = vld [vmem:[%s2 + $0x2e8] sm:$0xff]
    %v255 = vld [vmem:[%s2 + $0x2f0] sm:$0xff]
    %v256 = vld [vmem:[%s2 + $0x2f8] sm:$0xff]
    %v257 = vld [vmem:[%s2 + $0x300] sm:$0xff]
    %v258 = vld [vmem:[%s2 + $0x308] sm:$0xff]
    %v259 = vld [vmem:[%s2 + $0x310] sm:$0xff]
    %v260 = vld [vmem:[%s2 + $0x318] sm:$0xff]
    %v261 = vld [vmem:[%s2 + $0x320] sm:$0xff]
    %v262 = vld [vmem:[%s2 + $0x328] sm:$0xff]
    %v263 = vld [vmem:[%s2 + $0x330] sm:$0xff]
    %v264 = vld [vmem:[%s2 + $0x338] sm:$0xff]
    %v265 = vld [vmem:[%s2 + $0x340] sm:$0xff]
    %v266 = vld [vmem:[%s2 + $0x348] sm:$0xff]
    %v267 = vld [vmem:[%s2 + $0x350] sm:$0xff]
    %v268 = vld [vmem:[%s2 + $0x358] sm:$0xff]
    %v269 = vld [vmem:[%s2 + $0x360] sm:$0xff]
    %v270 = vld [vmem:[%s2 + $0x368] sm:$0xff]
    %v271 = vld [vmem:[%s2 + $0x370] sm:$0xff]
    %v272 = vld [vmem:[%s2 + $0x378] sm:$0xff]
    %v273 = vld [vmem:[%s2 + $0x380] sm:$0xff]
    %v274 = vld [vmem:[%s2 + $0x388] sm:$0xff]
    %v275 = vld [vmem:[%s2 + $0x390] sm:$0xff]
    %v276 = vld [vmem:[%s2 + $0x398] sm:$0xff]
    %v277 = vld [vmem:[%s2 + $0x3a0] sm:$0xff]
    %v278 = vld [vmem:[%s2 + $0x3a8] sm:$0xff]
    %v279 = vld [vmem:[%s2 + $0x3b0] sm:$0xff]
    %v280 = vld [vmem:[%s2 + $0x3b8] sm:$0xff]
    %v281 = vld [vmem:[%s2 + $0x3c0] sm:$0xff]
    %v282 = vld [vmem:[%s2 + $0x3c8] sm:$0xff]
    %v283 = vld [vmem:[%s2 + $0x3d0] sm:$0xff]
    %v284 = vld [vmem:[%s2 + $0x3d8] sm:$0xff]
    %v285 = vld [vmem:[%s2 + $0x3e0] sm:$0xff]
    %v286 = vld [vmem:[%s2 + $0x3e8] sm:$0xff]
    %v287 = vld [vmem:[%s2 + $0x3f0] sm:$0xff]
    %v288 = vld [vmem:[%s2 + $0x3f8] sm:$0xff]
    %v289 = vld [vmem:[%s2 + $0x400] sm:$0xff]
    %v290 = vld [vmem:[%s2 + $0x408] sm:$0xff]
    %v291 = vld [vmem:[%s2 + $0x410] sm:$0xff]
    %v292 = vld [vmem:[%s2 + $0x418] sm:$0xff]
    %v293 = vld [vmem:[%s2 + $0x420] sm:$0xff]
    %v294 = vld [vmem:[%s2 + $0x428] sm:$0xff]
    %v295 = vld [vmem:[%s2 + $0x430] sm:$0xff]
    %v296 = vld [vmem:[%s2 + $0x438] sm:$0xff]
    %v297 = vld [vmem:[%s2 + $0x440] sm:$0xff]
    %v298 = vld [vmem:[%s2 + $0x448] sm:$0xff]
    %v299 = vld [vmem:[%s2 + $0x450] sm:$0xff]
    %v300 = vld [vmem:[%s2 + $0x458] sm:$0xff]
    %v301 = vld [vmem:[%s2 + $0x460] sm:$0xff]
    %v302 = vld [vmem:[%s2 + $0x468] sm:$0xff]
    %v303 = vld [vmem:[%s2 + $0x470] sm:$0xff]
    %v304 = vld [vmem:[%s2 + $0x478] sm:$0xff]
    %v305 = vld [vmem:[%s2 + $0x480] sm:$0xff]
    %v306 = vld [vmem:[%s2 + $0x488] sm:$0xff]
    %v307 = vld [vmem:[%s2 + $0x490] sm:$0xff]
    %v308 = vld [vmem:[%s2 + $0x498] sm:$0xff]
    %v309 = vld [vmem:[%s2 + $0x4a0] sm:$0xff]
    %v310 = vld [vmem:[%s2 + $0x4a8] sm:$0xff]
    %v311 = vld [vmem:[%s2 + $0x4b0] sm:$0xff]
    %v312 = vld [vmem:[%s2 + $0x4b8] sm:$0xff]
    %v313 = vld [vmem:[%s2 + $0x4c0] sm:$0xff]
    %v314 = vld [vmem:[%s2 + $0x4c8] sm:$0xff]
    %v315 = vld [vmem:[%s2 + $0x4d0] sm:$0xff]
    %v316 = vld [vmem:[%s2 + $0x4d8] sm:$0xff]
    %v317 = vld [vmem:[%s2 + $0x4e0] sm:$0xff]
    %v318 = vld [vmem:[%s2 + $0x4e8] sm:$0xff]
    %v319 = vld [vmem:[%s2 + $0x4f0] sm:$0xff]
    %v320 = vld [vmem:[%s2 + $0x4f8] sm:$0xff]
    %v321 = vld [vmem:[%s2 + $0x500] sm:$0xff]
    %v322 = vld [vmem:[%s2 + $0x508] sm:$0xff]
    %v323 = vld [vmem:[%s2 + $0x510] sm:$0xff]
    %v324 = vld [vmem:[%s2 + $0x518] sm:$0xff]
    %v325 = vld [vmem:[%s2 + $0x520] sm:$0xff]
    %v326 = vld [vmem:[%s2 + $0x528] sm:$0xff]
    %v327 = vld [vmem:[%s2 + $0x530] sm:$0xff]
    %v328 = vld [vmem:[%s2 + $0x538] sm:$0xff]
    %v329 = vld [vmem:[%s2 + $0x540] sm:$0xff]
    %v330 = vld [vmem:[%s2 + $0x548] sm:$0xff]
    %v331 = vld [vmem:[%s2 + $0x550] sm:$0xff]
    %v332 = vld [vmem:[%s2 + $0x558] sm:$0xff]
    %v333 = vld [vmem:[%s2 + $0x560] sm:$0xff]
    %v334 = vld [vmem:[%s2 + $0x568] sm:$0xff]
    %v335 = vld [vmem:[%s2 + $0x570] sm:$0xff]
    %v336 = vld [vmem:[%s2 + $0x578] sm:$0xff]
    %v337 = vld [vmem:[%s2 + $0x580] sm:$0xff]
    %v338 = vld [vmem:[%s2 + $0x588] sm:$0xff]
    %v339 = vld [vmem:[%s2 + $0x590] sm:$0xff]
    %v340 = vld [vmem:[%s2 + $0x598] sm:$0xff]
    %v341 = vld [vmem:[%s2 + $0x5a0] sm:$0xff]
    %v342 = vld [vmem:[%s2 + $0x5a8] sm:$0xff]
    %v343 = vld [vmem:[%s2 + $0x5b0] sm:$0xff]
    %v344 = vld [vmem:[%s2 + $0x5b8] sm:$0xff]
    %v345 = vld [vmem:[%s2 + $0x5c0] sm:$0xff]
    %v346 = vld [vmem:[%s2 + $0x5c8] sm:$0xff]
    %v347 = vld [vmem:[%s2 + $0x5d0] sm:$0xff]
    %v348 = vld [vmem:[%s2 + $0x5d8] sm:$0xff]
    %v349 = vld [vmem:[%s2 + $0x5e0] sm:$0xff]
    %v350 = vld [vmem:[%s2 + $0x5e8] sm:$0xff]
    %v351 = vld [vmem:[%s2 + $0x5f0] sm:$0xff]
    %v352 = vld [vmem:[%s2 + $0x5f8] sm:$0xff]
    %v353 = vld [vmem:[%s2 + $0x600] sm:$0xff]
    %v354 = vld [vmem:[%s2 + $0x608] sm:$0xff]
    %v355 = vld [vmem:[%s2 + $0x610] sm:$0xff]
    %v356 = vld [vmem:[%s2 + $0x618] sm:$0xff]
    %v357 = vld [vmem:[#allocation8] sm:$0xf]
    %v359 = vlaneseq
    %v360 = vshrl.u32 %v359, 7
    %v361 = vsub.s32 0, %v360
    %v362 = vrot.slane %v357, %v361
    %v363 = vlaneseq
    %v364 = vshrl.u32 %v363, 7
    %v365 = vsub.s32 1, %v364
    %v366 = vrot.slane %v357, %v365
    %v367 = vlaneseq
    %v368 = vshrl.u32 %v367, 7
    %v369 = vsub.s32 2, %v368
    %v370 = vrot.slane %v357, %v369
    %v371 = vlaneseq
    %v372 = vshrl.u32 %v371, 7
    %v373 = vsub.s32 3, %v372
    %v374 = vrot.slane %v357, %v373
    %v575 = vunpack.c.l.b16 %v161
    %v576 = vunpack.c.h.b16 %v161
    %v577 = vunpack.c.l.b16 %v162
    %v578 = vunpack.c.h.b16 %v162
    %v579 = vunpack.c.l.b16 %v163
    %v580 = vunpack.c.h.b16 %v163
    %v581 = vunpack.c.l.b16 %v164
    %v582 = vunpack.c.h.b16 %v164
    %v583 = vunpack.c.l.b16 %v165
    %v584 = vunpack.c.h.b16 %v165
    %v585 = vunpack.c.l.b16 %v166
    %v586 = vunpack.c.h.b16 %v166
    %v587 = vunpack.c.l.b16 %v167
    %v588 = vunpack.c.h.b16 %v167
    %v589 = vunpack.c.l.b16 %v168
    %v590 = vunpack.c.h.b16 %v168
    %v591 = vunpack.c.l.b16 %v169
    %v592 = vunpack.c.h.b16 %v169
    %v593 = vunpack.c.l.b16 %v170
    %v594 = vunpack.c.h.b16 %v170
    %v595 = vunpack.c.l.b16 %v171
    %v596 = vunpack.c.h.b16 %v171
    %v597 = vunpack.c.l.b16 %v172
    %v598 = vunpack.c.h.b16 %v172
    %v599 = vunpack.c.l.b16 %v173
    %v600 = vunpack.c.h.b16 %v173
    %v601 = vunpack.c.l.b16 %v174
    %v602 = vunpack.c.h.b16 %v174
    %v603 = vunpack.c.l.b16 %v175
    %v604 = vunpack.c.h.b16 %v175
    %v605 = vunpack.c.l.b16 %v176
    %v606 = vunpack.c.h.b16 %v176
    %v607 = vunpack.c.l.b16 %v177
    %v608 = vunpack.c.h.b16 %v177
    %v609 = vunpack.c.l.b16 %v178
    %v610 = vunpack.c.h.b16 %v178
    %v611 = vunpack.c.l.b16 %v179
    %v612 = vunpack.c.h.b16 %v179
    %v613 = vunpack.c.l.b16 %v180
    %v614 = vunpack.c.h.b16 %v180
    %v615 = vunpack.c.l.b16 %v181
    %v616 = vunpack.c.h.b16 %v181
    %v617 = vunpack.c.l.b16 %v182
    %v618 = vunpack.c.h.b16 %v182
    %v619 = vunpack.c.l.b16 %v183
    %v620 = vunpack.c.h.b16 %v183
    %v621 = vunpack.c.l.b16 %v184
    %v622 = vunpack.c.h.b16 %v184
    %v623 = vunpack.c.l.b16 %v185
    %v624 = vunpack.c.h.b16 %v185
    %v625 = vunpack.c.l.b16 %v186
    %v626 = vunpack.c.h.b16 %v186
    %v627 = vunpack.c.l.b16 %v187
    %v628 = vunpack.c.h.b16 %v187
    %v629 = vunpack.c.l.b16 %v188
    %v630 = vunpack.c.h.b16 %v188
    %v631 = vunpack.c.l.b16 %v189
    %v632 = vunpack.c.h.b16 %v189
    %v633 = vunpack.c.l.b16 %v190
    %v634 = vunpack.c.h.b16 %v190
    %v635 = vunpack.c.l.b16 %v191
    %v636 = vunpack.c.h.b16 %v191
    %v637 = vunpack.c.l.b16 %v192
    %v638 = vunpack.c.h.b16 %v192
    %v639 = vunpack.c.l.b16 %v193
    %v640 = vunpack.c.h.b16 %v193
    %v641 = vunpack.c.l.b16 %v194
    %v642 = vunpack.c.h.b16 %v194
    %v643 = vunpack.c.l.b16 %v195
    %v644 = vunpack.c.h.b16 %v195
    %v645 = vunpack.c.l.b16 %v196
    %v646 = vunpack.c.h.b16 %v196
    %v647 = vunpack.c.l.b16 %v197
    %v648 = vunpack.c.h.b16 %v197
    %v649 = vunpack.c.l.b16 %v198
    %v650 = vunpack.c.h.b16 %v198
    %v651 = vunpack.c.l.b16 %v199
    %v652 = vunpack.c.h.b16 %v199
    %v653 = vunpack.c.l.b16 %v200
    %v654 = vunpack.c.h.b16 %v200
    %v655 = vunpack.c.l.b16 %v201
    %v656 = vunpack.c.h.b16 %v201
    %v657 = vunpack.c.l.b16 %v202
    %v658 = vunpack.c.h.b16 %v202
    %v659 = vunpack.c.l.b16 %v203
    %v660 = vunpack.c.h.b16 %v203
    %v661 = vunpack.c.l.b16 %v204
    %v662 = vunpack.c.h.b16 %v204
    %v663 = vunpack.c.l.b16 %v205
    %v664 = vunpack.c.h.b16 %v205
    %v665 = vunpack.c.l.b16 %v206
    %v666 = vunpack.c.h.b16 %v206
    %v667 = vunpack.c.l.b16 %v207
    %v668 = vunpack.c.h.b16 %v207
    %v669 = vunpack.c.l.b16 %v208
    %v670 = vunpack.c.h.b16 %v208
    %v671 = vunpack.c.l.b16 %v209
    %v672 = vunpack.c.h.b16 %v209
    %v673 = vunpack.c.l.b16 %v210
    %v674 = vunpack.c.h.b16 %v210
    %v675 = vunpack.c.l.b16 %v211
    %v676 = vunpack.c.h.b16 %v211
    %v677 = vunpack.c.l.b16 %v212
    %v678 = vunpack.c.h.b16 %v212
    %v679 = vunpack.c.l.b16 %v213
    %v680 = vunpack.c.h.b16 %v213
    %v681 = vunpack.c.l.b16 %v214
    %v682 = vunpack.c.h.b16 %v214
    %v683 = vunpack.c.l.b16 %v215
    %v684 = vunpack.c.h.b16 %v215
    %v685 = vunpack.c.l.b16 %v216
    %v686 = vunpack.c.h.b16 %v216
    %v687 = vunpack.c.l.b16 %v217
    %v688 = vunpack.c.h.b16 %v217
    %v689 = vunpack.c.l.b16 %v218
    %v690 = vunpack.c.h.b16 %v218
    %v691 = vunpack.c.l.b16 %v219
    %v692 = vunpack.c.h.b16 %v219
    %v693 = vunpack.c.l.b16 %v220
    %v694 = vunpack.c.h.b16 %v220
    %v695 = vunpack.c.l.b16 %v221
    %v696 = vunpack.c.h.b16 %v221
    %v697 = vunpack.c.l.b16 %v222
    %v698 = vunpack.c.h.b16 %v222
    %v699 = vunpack.c.l.b16 %v223
    %v700 = vunpack.c.h.b16 %v223
    %v701 = vunpack.c.l.b16 %v224
    %v702 = vunpack.c.h.b16 %v224
    %v703 = vunpack.c.l.b16 %v225
    %v704 = vunpack.c.h.b16 %v225
    %v705 = vunpack.c.l.b16 %v226
    %v706 = vunpack.c.h.b16 %v226
    %v707 = vunpack.c.l.b16 %v227
    %v708 = vunpack.c.h.b16 %v227
    %v709 = vunpack.c.l.b16 %v228
    %v710 = vunpack.c.h.b16 %v228
    %v711 = vunpack.c.l.b16 %v229
    %v712 = vunpack.c.h.b16 %v229
    %v713 = vunpack.c.l.b16 %v230
    %v714 = vunpack.c.h.b16 %v230
    %v715 = vunpack.c.l.b16 %v231
    %v716 = vunpack.c.h.b16 %v231
    %v717 = vunpack.c.l.b16 %v232
    %v718 = vunpack.c.h.b16 %v232
    %v719 = vunpack.c.l.b16 %v233
    %v720 = vunpack.c.h.b16 %v233
    %v721 = vunpack.c.l.b16 %v234
    %v722 = vunpack.c.h.b16 %v234
    %v723 = vunpack.c.l.b16 %v235
    %v724 = vunpack.c.h.b16 %v235
    %v725 = vunpack.c.l.b16 %v236
    %v726 = vunpack.c.h.b16 %v236
    %v727 = vunpack.c.l.b16 %v237
    %v728 = vunpack.c.h.b16 %v237
    %v729 = vunpack.c.l.b16 %v238
    %v730 = vunpack.c.h.b16 %v238
    %v731 = vunpack.c.l.b16 %v239
    %v732 = vunpack.c.h.b16 %v239
    %v733 = vunpack.c.l.b16 %v240
    %v734 = vunpack.c.h.b16 %v240
    %v735 = vunpack.c.l.b16 %v241
    %v736 = vunpack.c.h.b16 %v241
    %v737 = vunpack.c.l.b16 %v242
    %v738 = vunpack.c.h.b16 %v242
    %v739 = vunpack.c.l.b16 %v243
    %v740 = vunpack.c.h.b16 %v243
    %v741 = vunpack.c.l.b16 %v244
    %v742 = vunpack.c.h.b16 %v244
    %v743 = vunpack.c.l.b16 %v245
    %v744 = vunpack.c.h.b16 %v245
    %v745 = vunpack.c.l.b16 %v246
    %v746 = vunpack.c.h.b16 %v246
    %v747 = vunpack.c.l.b16 %v247
    %v748 = vunpack.c.h.b16 %v247
    %v749 = vunpack.c.l.b16 %v248
    %v750 = vunpack.c.h.b16 %v248
    %v751 = vunpack.c.l.b16 %v249
    %v752 = vunpack.c.h.b16 %v249
    %v753 = vunpack.c.l.b16 %v250
    %v754 = vunpack.c.h.b16 %v250
    %v755 = vunpack.c.l.b16 %v251
    %v756 = vunpack.c.h.b16 %v251
    %v757 = vunpack.c.l.b16 %v252
    %v758 = vunpack.c.h.b16 %v252
    %v759 = vunpack.c.l.b16 %v253
    %v760 = vunpack.c.h.b16 %v253
    %v761 = vunpack.c.l.b16 %v254
    %v762 = vunpack.c.h.b16 %v254
    %v763 = vunpack.c.l.b16 %v255
    %v764 = vunpack.c.h.b16 %v255
    %v765 = vunpack.c.l.b16 %v256
    %v766 = vunpack.c.h.b16 %v256
    %v767 = vunpack.c.l.b16 %v257
    %v768 = vunpack.c.h.b16 %v257
    %v769 = vunpack.c.l.b16 %v258
    %v770 = vunpack.c.h.b16 %v258
    %v771 = vunpack.c.l.b16 %v259
    %v772 = vunpack.c.h.b16 %v259
    %v773 = vunpack.c.l.b16 %v260
    %v774 = vunpack.c.h.b16 %v260
    %v775 = vunpack.c.l.b16 %v261
    %v776 = vunpack.c.h.b16 %v261
    %v777 = vunpack.c.l.b16 %v262
    %v778 = vunpack.c.h.b16 %v262
    %v779 = vunpack.c.l.b16 %v263
    %v780 = vunpack.c.h.b16 %v263
    %v781 = vunpack.c.l.b16 %v264
    %v782 = vunpack.c.h.b16 %v264
    %v783 = vunpack.c.l.b16 %v265
    %v784 = vunpack.c.h.b16 %v265
    %v785 = vunpack.c.l.b16 %v266
    %v786 = vunpack.c.h.b16 %v266
    %v787 = vunpack.c.l.b16 %v267
    %v788 = vunpack.c.h.b16 %v267
    %v789 = vunpack.c.l.b16 %v268
    %v790 = vunpack.c.h.b16 %v268
    %v791 = vunpack.c.l.b16 %v269
    %v792 = vunpack.c.h.b16 %v269
    %v793 = vunpack.c.l.b16 %v270
    %v794 = vunpack.c.h.b16 %v270
    %v795 = vunpack.c.l.b16 %v271
    %v796 = vunpack.c.h.b16 %v271
    %v797 = vunpack.c.l.b16 %v272
    %v798 = vunpack.c.h.b16 %v272
    %v799 = vunpack.c.l.b16 %v273
    %v800 = vunpack.c.h.b16 %v273
    %v801 = vunpack.c.l.b16 %v274
    %v802 = vunpack.c.h.b16 %v274
    %v803 = vunpack.c.l.b16 %v275
    %v804 = vunpack.c.h.b16 %v275
    %v805 = vunpack.c.l.b16 %v276
    %v806 = vunpack.c.h.b16 %v276
    %v807 = vunpack.c.l.b16 %v277
    %v808 = vunpack.c.h.b16 %v277
    %v809 = vunpack.c.l.b16 %v278
    %v810 = vunpack.c.h.b16 %v278
    %v811 = vunpack.c.l.b16 %v279
    %v812 = vunpack.c.h.b16 %v279
    %v813 = vunpack.c.l.b16 %v280
    %v814 = vunpack.c.h.b16 %v280
    %v815 = vunpack.c.l.b16 %v281
    %v816 = vunpack.c.h.b16 %v281
    %v817 = vunpack.c.l.b16 %v282
    %v818 = vunpack.c.h.b16 %v282
    %v819 = vunpack.c.l.b16 %v283
    %v820 = vunpack.c.h.b16 %v283
    %v821 = vunpack.c.l.b16 %v284
    %v822 = vunpack.c.h.b16 %v284
    %v823 = vunpack.c.l.b16 %v285
    %v824 = vunpack.c.h.b16 %v285
    %v825 = vunpack.c.l.b16 %v286
    %v826 = vunpack.c.h.b16 %v286
    %v827 = vunpack.c.l.b16 %v287
    %v828 = vunpack.c.h.b16 %v287
    %v829 = vunpack.c.l.b16 %v288
    %v830 = vunpack.c.h.b16 %v288
    %v831 = vunpack.c.l.b16 %v289
    %v832 = vunpack.c.h.b16 %v289
    %v833 = vunpack.c.l.b16 %v290
    %v834 = vunpack.c.h.b16 %v290
    %v835 = vunpack.c.l.b16 %v291
    %v836 = vunpack.c.h.b16 %v291
    %v837 = vunpack.c.l.b16 %v292
    %v838 = vunpack.c.h.b16 %v292
    %v839 = vunpack.c.l.b16 %v293
    %v840 = vunpack.c.h.b16 %v293
    %v841 = vunpack.c.l.b16 %v294
    %v842 = vunpack.c.h.b16 %v294
    %v843 = vunpack.c.l.b16 %v295
    %v844 = vunpack.c.h.b16 %v295
    %v845 = vunpack.c.l.b16 %v296
    %v846 = vunpack.c.h.b16 %v296
    %v847 = vunpack.c.l.b16 %v297
    %v848 = vunpack.c.h.b16 %v297
    %v849 = vunpack.c.l.b16 %v298
    %v850 = vunpack.c.h.b16 %v298
    %v851 = vunpack.c.l.b16 %v299
    %v852 = vunpack.c.h.b16 %v299
    %v853 = vunpack.c.l.b16 %v300
    %v854 = vunpack.c.h.b16 %v300
    %v855 = vunpack.c.l.b16 %v301
    %v856 = vunpack.c.h.b16 %v301
    %v857 = vunpack.c.l.b16 %v302
    %v858 = vunpack.c.h.b16 %v302
    %v859 = vunpack.c.l.b16 %v303
    %v860 = vunpack.c.h.b16 %v303
    %v861 = vunpack.c.l.b16 %v304
    %v862 = vunpack.c.h.b16 %v304
    %v863 = vunpack.c.l.b16 %v305
    %v864 = vunpack.c.h.b16 %v305
    %v865 = vunpack.c.l.b16 %v306
    %v866 = vunpack.c.h.b16 %v306
    %v867 = vunpack.c.l.b16 %v307
    %v868 = vunpack.c.h.b16 %v307
    %v869 = vunpack.c.l.b16 %v308
    %v870 = vunpack.c.h.b16 %v308
    %v871 = vunpack.c.l.b16 %v309
    %v872 = vunpack.c.h.b16 %v309
    %v873 = vunpack.c.l.b16 %v310
    %v874 = vunpack.c.h.b16 %v310
    %v875 = vunpack.c.l.b16 %v311
    %v876 = vunpack.c.h.b16 %v311
    %v877 = vunpack.c.l.b16 %v312
    %v878 = vunpack.c.h.b16 %v312
    %v879 = vunpack.c.l.b16 %v313
    %v880 = vunpack.c.h.b16 %v313
    %v881 = vunpack.c.l.b16 %v314
    %v882 = vunpack.c.h.b16 %v314
    %v883 = vunpack.c.l.b16 %v315
    %v884 = vunpack.c.h.b16 %v315
    %v885 = vunpack.c.l.b16 %v316
    %v886 = vunpack.c.h.b16 %v316
    %v887 = vunpack.c.l.b16 %v317
    %v888 = vunpack.c.h.b16 %v317
    %v889 = vunpack.c.l.b16 %v318
    %v890 = vunpack.c.h.b16 %v318
    %v891 = vunpack.c.l.b16 %v319
    %v892 = vunpack.c.h.b16 %v319
    %v893 = vunpack.c.l.b16 %v320
    %v894 = vunpack.c.h.b16 %v320
    %v895 = vunpack.c.l.b16 %v321
    %v896 = vunpack.c.h.b16 %v321
    %v897 = vunpack.c.l.b16 %v322
    %v898 = vunpack.c.h.b16 %v322
    %v899 = vunpack.c.l.b16 %v323
    %v900 = vunpack.c.h.b16 %v323
    %v901 = vunpack.c.l.b16 %v324
    %v902 = vunpack.c.h.b16 %v324
    %v903 = vunpack.c.l.b16 %v325
    %v904 = vunpack.c.h.b16 %v325
    %v905 = vunpack.c.l.b16 %v326
    %v906 = vunpack.c.h.b16 %v326
    %v907 = vunpack.c.l.b16 %v327
    %v908 = vunpack.c.h.b16 %v327
    %v909 = vunpack.c.l.b16 %v328
    %v910 = vunpack.c.h.b16 %v328
    %v911 = vunpack.c.l.b16 %v329
    %v912 = vunpack.c.h.b16 %v329
    %v913 = vunpack.c.l.b16 %v330
    %v914 = vunpack.c.h.b16 %v330
    %v915 = vunpack.c.l.b16 %v331
    %v916 = vunpack.c.h.b16 %v331
    %v917 = vunpack.c.l.b16 %v332
    %v918 = vunpack.c.h.b16 %v332
    %v919 = vunpack.c.l.b16 %v333
    %v920 = vunpack.c.h.b16 %v333
    %v921 = vunpack.c.l.b16 %v334
    %v922 = vunpack.c.h.b16 %v334
    %v923 = vunpack.c.l.b16 %v335
    %v924 = vunpack.c.h.b16 %v335
    %v925 = vunpack.c.l.b16 %v336
    %v926 = vunpack.c.h.b16 %v336
    %v927 = vunpack.c.l.b16 %v337
    %v928 = vunpack.c.h.b16 %v337
    %v929 = vunpack.c.l.b16 %v338
    %v930 = vunpack.c.h.b16 %v338
    %v931 = vunpack.c.l.b16 %v339
    %v932 = vunpack.c.h.b16 %v339
    %v933 = vunpack.c.l.b16 %v340
    %v934 = vunpack.c.h.b16 %v340
    %v935 = vunpack.c.l.b16 %v341
    %v936 = vunpack.c.h.b16 %v341
    %v937 = vunpack.c.l.b16 %v342
    %v938 = vunpack.c.h.b16 %v342
    %v939 = vunpack.c.l.b16 %v343
    %v940 = vunpack.c.h.b16 %v343
    %v941 = vunpack.c.l.b16 %v344
    %v942 = vunpack.c.h.b16 %v344
    %v943 = vunpack.c.l.b16 %v345
    %v944 = vunpack.c.h.b16 %v345
    %v945 = vunpack.c.l.b16 %v346
    %v946 = vunpack.c.h.b16 %v346
    %v947 = vunpack.c.l.b16 %v347
    %v948 = vunpack.c.h.b16 %v347
    %v949 = vunpack.c.l.b16 %v348
    %v950 = vunpack.c.h.b16 %v348
    %v951 = vunpack.c.l.b16 %v349
    %v952 = vunpack.c.h.b16 %v349
    %v953 = vunpack.c.l.b16 %v350
    %v954 = vunpack.c.h.b16 %v350
    %v955 = vunpack.c.l.b16 %v351
    %v956 = vunpack.c.h.b16 %v351
    %v957 = vunpack.c.l.b16 %v352
    %v958 = vunpack.c.h.b16 %v352
    %v959 = vunpack.c.l.b16 %v353
    %v960 = vunpack.c.h.b16 %v353
    %v961 = vunpack.c.l.b16 %v354
    %v962 = vunpack.c.h.b16 %v354
    %v963 = vunpack.c.l.b16 %v355
    %v964 = vunpack.c.h.b16 %v355
    %v965 = vunpack.c.l.b16 %v356
    %v966 = vunpack.c.h.b16 %v356
    %v967 = vpack.c.b16 %v579, %v575
    %v968 = vpack.c.b16 %v580, %v576
    %v969 = vpack.c.b16 %v581, %v577
    %v970 = vpack.c.b16 %v582, %v578
    %v971 = vpack.c.b16 %v587, %v583
    %v972 = vpack.c.b16 %v588, %v584
    %v973 = vpack.c.b16 %v589, %v585
    %v974 = vpack.c.b16 %v590, %v586
    %v975 = vpack.c.b16 %v595, %v591
    %v976 = vpack.c.b16 %v596, %v592
    %v977 = vpack.c.b16 %v597, %v593
    %v978 = vpack.c.b16 %v598, %v594
    %v979 = vpack.c.b16 %v603, %v599
    %v980 = vpack.c.b16 %v604, %v600
    %v981 = vpack.c.b16 %v605, %v601
    %v982 = vpack.c.b16 %v606, %v602
    %v983 = vpack.c.b16 %v611, %v607
    %v984 = vpack.c.b16 %v612, %v608
    %v985 = vpack.c.b16 %v613, %v609
    %v986 = vpack.c.b16 %v614, %v610
    %v987 = vpack.c.b16 %v619, %v615
    %v988 = vpack.c.b16 %v620, %v616
    %v989 = vpack.c.b16 %v621, %v617
    %v990 = vpack.c.b16 %v622, %v618
    %v991 = vpack.c.b16 %v627, %v623
    %v992 = vpack.c.b16 %v628, %v624
    %v993 = vpack.c.b16 %v629, %v625
    %v994 = vpack.c.b16 %v630, %v626
    %v995 = vpack.c.b16 %v635, %v631
    %v996 = vpack.c.b16 %v636, %v632
    %v997 = vpack.c.b16 %v637, %v633
    %v998 = vpack.c.b16 %v638, %v634
    %v999 = vpack.c.b16 %v643, %v639
    %v1000 = vpack.c.b16 %v644, %v640
    %v1001 = vpack.c.b16 %v645, %v641
    %v1002 = vpack.c.b16 %v646, %v642
    %v1003 = vpack.c.b16 %v651, %v647
    %v1004 = vpack.c.b16 %v652, %v648
    %v1005 = vpack.c.b16 %v653, %v649
    %v1006 = vpack.c.b16 %v654, %v650
    %v1007 = vpack.c.b16 %v659, %v655
    %v1008 = vpack.c.b16 %v660, %v656
    %v1009 = vpack.c.b16 %v661, %v657
    %v1010 = vpack.c.b16 %v662, %v658
    %v1011 = vpack.c.b16 %v667, %v663
    %v1012 = vpack.c.b16 %v668, %v664
    %v1013 = vpack.c.b16 %v669, %v665
    %v1014 = vpack.c.b16 %v670, %v666
    %v1015 = vpack.c.b16 %v675, %v671
    %v1016 = vpack.c.b16 %v676, %v672
    %v1017 = vpack.c.b16 %v677, %v673
    %v1018 = vpack.c.b16 %v678, %v674
    %v1019 = vpack.c.b16 %v683, %v679
    %v1020 = vpack.c.b16 %v684, %v680
    %v1021 = vpack.c.b16 %v685, %v681
    %v1022 = vpack.c.b16 %v686, %v682
    %v1023 = vpack.c.b16 %v691, %v687
    %v1024 = vpack.c.b16 %v692, %v688
    %v1025 = vpack.c.b16 %v693, %v689
    %v1026 = vpack.c.b16 %v694, %v690
    %v1027 = vpack.c.b16 %v699, %v695
    %v1028 = vpack.c.b16 %v700, %v696
    %v1029 = vpack.c.b16 %v701, %v697
    %v1030 = vpack.c.b16 %v702, %v698
    %v1031 = vpack.c.b16 %v707, %v703
    %v1032 = vpack.c.b16 %v708, %v704
    %v1033 = vpack.c.b16 %v709, %v705
    %v1034 = vpack.c.b16 %v710, %v706
    %v1035 = vpack.c.b16 %v715, %v711
    %v1036 = vpack.c.b16 %v716, %v712
    %v1037 = vpack.c.b16 %v717, %v713
    %v1038 = vpack.c.b16 %v718, %v714
    %v1039 = vpack.c.b16 %v723, %v719
    %v1040 = vpack.c.b16 %v724, %v720
    %v1041 = vpack.c.b16 %v725, %v721
    %v1042 = vpack.c.b16 %v726, %v722
    %v1043 = vpack.c.b16 %v731, %v727
    %v1044 = vpack.c.b16 %v732, %v728
    %v1045 = vpack.c.b16 %v733, %v729
    %v1046 = vpack.c.b16 %v734, %v730
    %v1047 = vpack.c.b16 %v739, %v735
    %v1048 = vpack.c.b16 %v740, %v736
    %v1049 = vpack.c.b16 %v741, %v737
    %v1050 = vpack.c.b16 %v742, %v738
    %v1051 = vpack.c.b16 %v747, %v743
    %v1052 = vpack.c.b16 %v748, %v744
    %v1053 = vpack.c.b16 %v749, %v745
    %v1054 = vpack.c.b16 %v750, %v746
    %v1055 = vpack.c.b16 %v755, %v751
    %v1056 = vpack.c.b16 %v756, %v752
    %v1057 = vpack.c.b16 %v757, %v753
    %v1058 = vpack.c.b16 %v758, %v754
    %v1059 = vpack.c.b16 %v763, %v759
    %v1060 = vpack.c.b16 %v764, %v760
    %v1061 = vpack.c.b16 %v765, %v761
    %v1062 = vpack.c.b16 %v766, %v762
    %v1063 = vpack.c.b16 %v771, %v767
    %v1064 = vpack.c.b16 %v772, %v768
    %v1065 = vpack.c.b16 %v773, %v769
    %v1066 = vpack.c.b16 %v774, %v770
    %v1067 = vpack.c.b16 %v779, %v775
    %v1068 = vpack.c.b16 %v780, %v776
    %v1069 = vpack.c.b16 %v781, %v777
    %v1070 = vpack.c.b16 %v782, %v778
    %v1071 = vpack.c.b16 %v787, %v783
    %v1072 = vpack.c.b16 %v788, %v784
    %v1073 = vpack.c.b16 %v789, %v785
    %v1074 = vpack.c.b16 %v790, %v786
    %v1075 = vpack.c.b16 %v795, %v791
    %v1076 = vpack.c.b16 %v796, %v792
    %v1077 = vpack.c.b16 %v797, %v793
    %v1078 = vpack.c.b16 %v798, %v794
    %v1079 = vpack.c.b16 %v803, %v799
    %v1080 = vpack.c.b16 %v804, %v800
    %v1081 = vpack.c.b16 %v805, %v801
    %v1082 = vpack.c.b16 %v806, %v802
    %v1083 = vpack.c.b16 %v811, %v807
    %v1084 = vpack.c.b16 %v812, %v808
    %v1085 = vpack.c.b16 %v813, %v809
    %v1086 = vpack.c.b16 %v814, %v810
    %v1087 = vpack.c.b16 %v819, %v815
    %v1088 = vpack.c.b16 %v820, %v816
    %v1089 = vpack.c.b16 %v821, %v817
    %v1090 = vpack.c.b16 %v822, %v818
    %v1091 = vpack.c.b16 %v827, %v823
    %v1092 = vpack.c.b16 %v828, %v824
    %v1093 = vpack.c.b16 %v829, %v825
    %v1094 = vpack.c.b16 %v830, %v826
    %v1095 = vpack.c.b16 %v835, %v831
    %v1096 = vpack.c.b16 %v836, %v832
    %v1097 = vpack.c.b16 %v837, %v833
    %v1098 = vpack.c.b16 %v838, %v834
    %v1099 = vpack.c.b16 %v843, %v839
    %v1100 = vpack.c.b16 %v844, %v840
    %v1101 = vpack.c.b16 %v845, %v841
    %v1102 = vpack.c.b16 %v846, %v842
    %v1103 = vpack.c.b16 %v851, %v847
    %v1104 = vpack.c.b16 %v852, %v848
    %v1105 = vpack.c.b16 %v853, %v849
    %v1106 = vpack.c.b16 %v854, %v850
    %v1107 = vpack.c.b16 %v859, %v855
    %v1108 = vpack.c.b16 %v860, %v856
    %v1109 = vpack.c.b16 %v861, %v857
    %v1110 = vpack.c.b16 %v862, %v858
    %v1111 = vpack.c.b16 %v867, %v863
    %v1112 = vpack.c.b16 %v868, %v864
    %v1113 = vpack.c.b16 %v869, %v865
    %v1114 = vpack.c.b16 %v870, %v866
    %v1115 = vpack.c.b16 %v875, %v871
    %v1116 = vpack.c.b16 %v876, %v872
    %v1117 = vpack.c.b16 %v877, %v873
    %v1118 = vpack.c.b16 %v878, %v874
    %v1119 = vpack.c.b16 %v883, %v879
    %v1120 = vpack.c.b16 %v884, %v880
    %v1121 = vpack.c.b16 %v885, %v881
    %v1122 = vpack.c.b16 %v886, %v882
    %v1123 = vpack.c.b16 %v891, %v887
    %v1124 = vpack.c.b16 %v892, %v888
    %v1125 = vpack.c.b16 %v893, %v889
    %v1126 = vpack.c.b16 %v894, %v890
    %v1127 = vpack.c.b16 %v899, %v895
    %v1128 = vpack.c.b16 %v900, %v896
    %v1129 = vpack.c.b16 %v901, %v897
    %v1130 = vpack.c.b16 %v902, %v898
    %v1131 = vpack.c.b16 %v907, %v903
    %v1132 = vpack.c.b16 %v908, %v904
    %v1133 = vpack.c.b16 %v909, %v905
    %v1134 = vpack.c.b16 %v910, %v906
    %v1135 = vpack.c.b16 %v915, %v911
    %v1136 = vpack.c.b16 %v916, %v912
    %v1137 = vpack.c.b16 %v917, %v913
    %v1138 = vpack.c.b16 %v918, %v914
    %v1139 = vpack.c.b16 %v923, %v919
    %v1140 = vpack.c.b16 %v924, %v920
    %v1141 = vpack.c.b16 %v925, %v921
    %v1142 = vpack.c.b16 %v926, %v922
    %v1143 = vpack.c.b16 %v931, %v927
    %v1144 = vpack.c.b16 %v932, %v928
    %v1145 = vpack.c.b16 %v933, %v929
    %v1146 = vpack.c.b16 %v934, %v930
    %v1147 = vpack.c.b16 %v939, %v935
    %v1148 = vpack.c.b16 %v940, %v936
    %v1149 = vpack.c.b16 %v941, %v937
    %v1150 = vpack.c.b16 %v942, %v938
    %v1151 = vpack.c.b16 %v947, %v943
    %v1152 = vpack.c.b16 %v948, %v944
    %v1153 = vpack.c.b16 %v949, %v945
    %v1154 = vpack.c.b16 %v950, %v946
    %v1155 = vpack.c.b16 %v955, %v951
    %v1156 = vpack.c.b16 %v956, %v952
    %v1157 = vpack.c.b16 %v957, %v953
    %v1158 = vpack.c.b16 %v958, %v954
    %v1159 = vpack.c.b16 %v963, %v959
    %v1160 = vpack.c.b16 %v964, %v960
    %v1161 = vpack.c.b16 %v965, %v961
    %v1162 = vpack.c.b16 %v966, %v962
    %vm1359 = vcmask 130048
    %v1361 = vsel %vm1359, %v160, 0
    %1363 = vmatprep.subr.bf16.mxu0 %v968
    %1364 = vmatpush1.bf16.msra.mxu0 %v967
    %1365 = vmatprep.subr.bf16.mxu0 %v972
    %1366 = vmatpush1.bf16.msra.mxu0 %v971
    %1367 = vmatprep.subr.bf16.mxu0 %v976
    %1368 = vmatpush1.bf16.msra.mxu0 %v975
    %1369 = vmatprep.subr.bf16.mxu0 %v980
    %1370 = vmatpush1.bf16.msra.mxu0 %v979
    %1371 = vmatprep.subr.bf16.mxu0 %v984
    %1372 = vmatpush1.bf16.msra.mxu0 %v983
    %1373 = vmatprep.subr.bf16.mxu0 %v988
    %1374 = vmatpush1.bf16.msra.mxu0 %v987
    %1375 = vmatprep.subr.bf16.mxu0 %v992
    %1376 = vmatpush1.bf16.msra.mxu0 %v991
    %1377 = vmatprep.subr.bf16.mxu0 %v996
    %1378 = vmatpush1.bf16.msra.mxu0 %v995
    %1379 = vmatprep.subr.bf16.mxu0 %v1000
    %1380 = vmatpush1.bf16.msra.mxu0 %v999
    %1381 = vmatprep.subr.bf16.mxu0 %v1004
    %1382 = vmatpush1.bf16.msra.mxu0 %v1003
    %1383 = vmatprep.subr.bf16.mxu0 %v1008
    %1384 = vmatpush1.bf16.msra.mxu0 %v1007
    %1385 = vmatprep.subr.bf16.mxu0 %v1012
    %1386 = vmatpush1.bf16.msra.mxu0 %v1011
    %1387 = vmatprep.subr.bf16.mxu0 %v1016
    %1388 = vmatpush1.bf16.msra.mxu0 %v1015
    %1389 = vmatprep.subr.bf16.mxu0 %v1020
    %1390 = vmatpush1.bf16.msra.mxu0 %v1019
    %1391 = vmatprep.subr.bf16.mxu0 %v1024
    %1392 = vmatpush1.bf16.msra.mxu0 %v1023
    %1393 = vmatprep.subr.bf16.mxu0 %v1028
    %1394 = vmatpush1.bf16.msra.mxu0 %v1027
    %1395 = vmatprep.mubr.bf16.mxu0 %v155
    %1396 = vmatmul.mubr.bf16.gmra.mrb[0].mxu0 %v154
    %v1397 = vpop.f32.mrb[0].mxu0
    %v1398 = vadd.f32 %v362, %v1397
    %v1399 = vpop.f32.mrb[0].mxu0
    %v1400 = vadd.f32 %v366, %v1399
    %v1401 = vpop.f32.mrb[0].mxu0
    %v1402 = vpop.f32.mrb[0].mxu0
    %1403 = vdwg.mxu0
    %1404 = vmatprep.subr.bf16.mxu0 %v1032
    %1405 = vmatpush1.bf16.msra.mxu0 %v1031
    %1406 = vmatprep.subr.bf16.mxu0 %v1036
    %1407 = vmatpush1.bf16.msra.mxu0 %v1035
    %1408 = vmatprep.subr.bf16.mxu0 %v1040
    %1409 = vmatpush1.bf16.msra.mxu0 %v1039
    %1410 = vmatprep.subr.bf16.mxu0 %v1044
    %1411 = vmatpush1.bf16.msra.mxu0 %v1043
    %1412 = vmatprep.subr.bf16.mxu0 %v1048
    %1413 = vmatpush1.bf16.msra.mxu0 %v1047
    %1414 = vmatprep.subr.bf16.mxu0 %v1052
    %1415 = vmatpush1.bf16.msra.mxu0 %v1051
    %1416 = vmatprep.subr.bf16.mxu0 %v1056
    %1417 = vmatpush1.bf16.msra.mxu0 %v1055
    %1418 = vmatprep.subr.bf16.mxu0 %v1060
    %1419 = vmatpush1.bf16.msra.mxu0 %v1059
    %1420 = vmatprep.subr.bf16.mxu0 %v1064
    %1421 = vmatpush1.bf16.msra.mxu0 %v1063
    %1422 = vmatprep.subr.bf16.mxu0 %v1068
    %1423 = vmatpush1.bf16.msra.mxu0 %v1067
    %1424 = vmatprep.subr.bf16.mxu0 %v1072
    %1425 = vmatpush1.bf16.msra.mxu0 %v1071
    %1426 = vmatprep.subr.bf16.mxu0 %v1076
    %1427 = vmatpush1.bf16.msra.mxu0 %v1075
    %1428 = vmatprep.subr.bf16.mxu0 %v1080
    %1429 = vmatpush1.bf16.msra.mxu0 %v1079
    %1430 = vmatprep.subr.bf16.mxu0 %v1084
    %1431 = vmatpush1.bf16.msra.mxu0 %v1083
    %1432 = vmatprep.subr.bf16.mxu0 %v1088
    %1433 = vmatpush1.bf16.msra.mxu0 %v1087
    %1434 = vmatprep.subr.bf16.mxu0 %v1092
    %1435 = vmatpush1.bf16.msra.mxu0 %v1091
    %1436 = vmatprep.mubr.bf16.mxu0 %v157
    %1437 = vmatmul.mubr.bf16.gmra.mrb[0].mxu0 %v156
    %v1438 = vpop.f32.mrb[0].mxu0
    %v1439 = vadd.f32 %v1398, %v1438
    %v1440 = vpop.f32.mrb[0].mxu0
    %v1441 = vadd.f32 %v1400, %v1440
    %v1442 = vpop.f32.mrb[0].mxu0
    %v1443 = vpop.f32.mrb[0].mxu0
    %1444 = vdwg.mxu0
    %1445 = vmatprep.subr.bf16.mxu0 %v1096
    %1446 = vmatpush1.bf16.msra.mxu0 %v1095
    %1447 = vmatprep.subr.bf16.mxu0 %v1100
    %1448 = vmatpush1.bf16.msra.mxu0 %v1099
    %1449 = vmatprep.subr.bf16.mxu0 %v1104
    %1450 = vmatpush1.bf16.msra.mxu0 %v1103
    %1451 = vmatprep.subr.bf16.mxu0 %v1108
    %1452 = vmatpush1.bf16.msra.mxu0 %v1107
    %1453 = vmatprep.subr.bf16.mxu0 %v1112
    %1454 = vmatpush1.bf16.msra.mxu0 %v1111
    %1455 = vmatprep.subr.bf16.mxu0 %v1116
    %1456 = vmatpush1.bf16.msra.mxu0 %v1115
    %1457 = vmatprep.subr.bf16.mxu0 %v1120
    %1458 = vmatpush1.bf16.msra.mxu0 %v1119
    %1459 = vmatprep.subr.bf16.mxu0 %v1124
    %1460 = vmatpush1.bf16.msra.mxu0 %v1123
    %1461 = vmatprep.subr.bf16.mxu0 %v1128
    %1462 = vmatpush1.bf16.msra.mxu0 %v1127
    %1463 = vmatprep.subr.bf16.mxu0 %v1132
    %1464 = vmatpush1.bf16.msra.mxu0 %v1131
    %1465 = vmatprep.subr.bf16.mxu0 %v1136
    %1466 = vmatpush1.bf16.msra.mxu0 %v1135
    %1467 = vmatprep.subr.bf16.mxu0 %v1140
    %1468 = vmatpush1.bf16.msra.mxu0 %v1139
    %1469 = vmatprep.subr.bf16.mxu0 %v1144
    %1470 = vmatpush1.bf16.msra.mxu0 %v1143
    %1471 = vmatprep.subr.bf16.mxu0 %v1148
    %1472 = vmatpush1.bf16.msra.mxu0 %v1147
    %1473 = vmatprep.subr.bf16.mxu0 %v1152
    %1474 = vmatpush1.bf16.msra.mxu0 %v1151
    %1475 = vmatprep.subr.bf16.mxu0 %v1156
    %1476 = vmatpush1.bf16.msra.mxu0 %v1155
    %1477 = vmatprep.mubr.bf16.mxu0 %v159
    %1478 = vmatmul.mubr.bf16.gmra.mrb[0].mxu0 %v158
    %v1479 = vpop.f32.mrb[0].mxu0
    %v1480 = vadd.f32 %v1439, %v1479
    %v1481 = vpop.f32.mrb[0].mxu0
    %v1482 = vadd.f32 %v1441, %v1481
    %v1483 = vpop.f32.mrb[0].mxu0
    %v1484 = vpop.f32.mrb[0].mxu0
    %1485 = vdwg.mxu0
    %1486 = vmatprep.subr.bf16.mxu0 %v1160
    %1487 = vmatpush1.bf16.msra.mxu0 %v1159
    %1488 = vmatprep.subr.bf16.mxu0 0
    %1489 = vmatpush1.bf16.msra.mxu0 0
    %1490 = vmatprep.subr.bf16.mxu0 0
    %1491 = vmatpush1.bf16.msra.mxu0 0
    %1492 = vmatprep.subr.bf16.mxu0 0
    %1493 = vmatpush1.bf16.msra.mxu0 0
    %1494 = vmatprep.subr.bf16.mxu0 0
    %1495 = vmatpush1.bf16.msra.mxu0 0
    %1496 = vmatprep.subr.bf16.mxu0 0
    %1497 = vmatpush1.bf16.msra.mxu0 0
    %1498 = vmatprep.subr.bf16.mxu0 0
    %1499 = vmatpush1.bf16.msra.mxu0 0
    %1500 = vmatprep.subr.bf16.mxu0 0
    %1501 = vmatpush1.bf16.msra.mxu0 0
    %1502 = vmatprep.subr.bf16.mxu0 0
    %1503 = vmatpush1.bf16.msra.mxu0 0
    %1504 = vmatprep.subr.bf16.mxu0 0
    %1505 = vmatpush1.bf16.msra.mxu0 0
    %1506 = vmatprep.subr.bf16.mxu0 0
    %1507 = vmatpush1.bf16.msra.mxu0 0
    %1508 = vmatprep.subr.bf16.mxu0 0
    %1509 = vmatpush1.bf16.msra.mxu0 0
    %1510 = vmatprep.subr.bf16.mxu0 0
    %1511 = vmatpush1.bf16.msra.mxu0 0
    %1512 = vmatprep.subr.bf16.mxu0 0
    %1513 = vmatpush1.bf16.msra.mxu0 0
    %1514 = vmatprep.subr.bf16.mxu0 0
    %1515 = vmatpush1.bf16.msra.mxu0 0
    %1516 = vmatprep.subr.bf16.mxu0 0
    %1517 = vmatpush1.bf16.msra.mxu0 0
    %1518 = vmatprep.mubr.bf16.mxu0 0
    %1519 = vmatmul.mubr.bf16.gmra.mrb[0].mxu0 %v1361
    %v1520 = vpop.f32.mrb[0].mxu0
    %v1521 = vadd.f32 %v1480, %v1520
    %v1522 = vpop.f32.mrb[0].mxu0
    %v1523 = vadd.f32 %v1482, %v1522
    %v1524 = vpop.f32.mrb[0].mxu0
    %v1525 = vpop.f32.mrb[0].mxu0
    %1526 = vdwg.mxu0
    %1527 = vmatprep.subr.bf16.mxu0 %v970
    %1528 = vmatpush1.bf16.msra.mxu0 %v969
    %1529 = vmatprep.subr.bf16.mxu0 %v974
    %1530 = vmatpush1.bf16.msra.mxu0 %v973
    %1531 = vmatprep.subr.bf16.mxu0 %v978
    %1532 = vmatpush1.bf16.msra.mxu0 %v977
    %1533 = vmatprep.subr.bf16.mxu0 %v982
    %1534 = vmatpush1.bf16.msra.mxu0 %v981
    %1535 = vmatprep.subr.bf16.mxu0 %v986
    %1536 = vmatpush1.bf16.msra.mxu0 %v985
    %1537 = vmatprep.subr.bf16.mxu0 %v990
    %1538 = vmatpush1.bf16.msra.mxu0 %v989
    %1539 = vmatprep.subr.bf16.mxu0 %v994
    %1540 = vmatpush1.bf16.msra.mxu0 %v993
    %1541 = vmatprep.subr.bf16.mxu0 %v998
    %1542 = vmatpush1.bf16.msra.mxu0 %v997
    %1543 = vmatprep.subr.bf16.mxu0 %v1002
    %1544 = vmatpush1.bf16.msra.mxu0 %v1001
    %1545 = vmatprep.subr.bf16.mxu0 %v1006
    %1546 = vmatpush1.bf16.msra.mxu0 %v1005
    %1547 = vmatprep.subr.bf16.mxu0 %v1010
    %1548 = vmatpush1.bf16.msra.mxu0 %v1009
    %1549 = vmatprep.subr.bf16.mxu0 %v1014
    %1550 = vmatpush1.bf16.msra.mxu0 %v1013
    %1551 = vmatprep.subr.bf16.mxu0 %v1018
    %1552 = vmatpush1.bf16.msra.mxu0 %v1017
    %1553 = vmatprep.subr.bf16.mxu0 %v1022
    %1554 = vmatpush1.bf16.msra.mxu0 %v1021
    %1555 = vmatprep.subr.bf16.mxu0 %v1026
    %1556 = vmatpush1.bf16.msra.mxu0 %v1025
    %1557 = vmatprep.subr.bf16.mxu0 %v1030
    %1558 = vmatpush1.bf16.msra.mxu0 %v1029
    %1559 = vmatprep.mubr.bf16.mxu0 %v155
    %1560 = vmatmul.mubr.bf16.gmra.mrb[0].mxu0 %v154
    %v1561 = vpop.f32.mrb[0].mxu0
    %v1562 = vadd.f32 %v370, %v1561
    %v1563 = vpop.f32.mrb[0].mxu0
    %v1564 = vadd.f32 %v374, %v1563
    %v1565 = vpop.f32.mrb[0].mxu0
    %v1566 = vpop.f32.mrb[0].mxu0
    %1567 = vdwg.mxu0
    %1568 = vmatprep.subr.bf16.mxu0 %v1034
    %1569 = vmatpush1.bf16.msra.mxu0 %v1033
    %1570 = vmatprep.subr.bf16.mxu0 %v1038
    %1571 = vmatpush1.bf16.msra.mxu0 %v1037
    %1572 = vmatprep.subr.bf16.mxu0 %v1042
    %1573 = vmatpush1.bf16.msra.mxu0 %v1041
    %1574 = vmatprep.subr.bf16.mxu0 %v1046
    %1575 = vmatpush1.bf16.msra.mxu0 %v1045
    %1576 = vmatprep.subr.bf16.mxu0 %v1050
    %1577 = vmatpush1.bf16.msra.mxu0 %v1049
    %1578 = vmatprep.subr.bf16.mxu0 %v1054
    %1579 = vmatpush1.bf16.msra.mxu0 %v1053
    %1580 = vmatprep.subr.bf16.mxu0 %v1058
    %1581 = vmatpush1.bf16.msra.mxu0 %v1057
    %1582 = vmatprep.subr.bf16.mxu0 %v1062
    %1583 = vmatpush1.bf16.msra.mxu0 %v1061
    %1584 = vmatprep.subr.bf16.mxu0 %v1066
    %1585 = vmatpush1.bf16.msra.mxu0 %v1065
    %1586 = vmatprep.subr.bf16.mxu0 %v1070
    %1587 = vmatpush1.bf16.msra.mxu0 %v1069
    %1588 = vmatprep.subr.bf16.mxu0 %v1074
    %1589 = vmatpush1.bf16.msra.mxu0 %v1073
    %1590 = vmatprep.subr.bf16.mxu0 %v1078
    %1591 = vmatpush1.bf16.msra.mxu0 %v1077
    %1592 = vmatprep.subr.bf16.mxu0 %v1082
    %1593 = vmatpush1.bf16.msra.mxu0 %v1081
    %1594 = vmatprep.subr.bf16.mxu0 %v1086
    %1595 = vmatpush1.bf16.msra.mxu0 %v1085
    %1596 = vmatprep.subr.bf16.mxu0 %v1090
    %1597 = vmatpush1.bf16.msra.mxu0 %v1089
    %1598 = vmatprep.subr.bf16.mxu0 %v1094
    %1599 = vmatpush1.bf16.msra.mxu0 %v1093
    %1600 = vmatprep.mubr.bf16.mxu0 %v157
    %1601 = vmatmul.mubr.bf16.gmra.mrb[0].mxu0 %v156
    %v1602 = vpop.f32.mrb[0].mxu0
    %v1603 = vadd.f32 %v1562, %v1602
    %v1604 = vpop.f32.mrb[0].mxu0
    %v1605 = vadd.f32 %v1564, %v1604
    %v1606 = vpop.f32.mrb[0].mxu0
    %v1607 = vpop.f32.mrb[0].mxu0
    %1608 = vdwg.mxu0
    %1609 = vmatprep.subr.bf16.mxu0 %v1098
    %1610 = vmatpush1.bf16.msra.mxu0 %v1097
    %1611 = vmatprep.subr.bf16.mxu0 %v1102
    %1612 = vmatpush1.bf16.msra.mxu0 %v1101
    %1613 = vmatprep.subr.bf16.mxu0 %v1106
    %1614 = vmatpush1.bf16.msra.mxu0 %v1105
    %1615 = vmatprep.subr.bf16.mxu0 %v1110
    %1616 = vmatpush1.bf16.msra.mxu0 %v1109
    %1617 = vmatprep.subr.bf16.mxu0 %v1114
    %1618 = vmatpush1.bf16.msra.mxu0 %v1113
    %1619 = vmatprep.subr.bf16.mxu0 %v1118
    %1620 = vmatpush1.bf16.msra.mxu0 %v1117
    %1621 = vmatprep.subr.bf16.mxu0 %v1122
    %1622 = vmatpush1.bf16.msra.mxu0 %v1121
    %1623 = vmatprep.subr.bf16.mxu0 %v1126
    %1624 = vmatpush1.bf16.msra.mxu0 %v1125
    %1625 = vmatprep.subr.bf16.mxu0 %v1130
    %1626 = vmatpush1.bf16.msra.mxu0 %v1129
    %1627 = vmatprep.subr.bf16.mxu0 %v1134
    %1628 = vmatpush1.bf16.msra.mxu0 %v1133
    %1629 = vmatprep.subr.bf16.mxu0 %v1138
    %1630 = vmatpush1.bf16.msra.mxu0 %v1137
    %1631 = vmatprep.subr.bf16.mxu0 %v1142
    %1632 = vmatpush1.bf16.msra.mxu0 %v1141
    %1633 = vmatprep.subr.bf16.mxu0 %v1146
    %1634 = vmatpush1.bf16.msra.mxu0 %v1145
    %1635 = vmatprep.subr.bf16.mxu0 %v1150
    %1636 = vmatpush1.bf16.msra.mxu0 %v1149
    %1637 = vmatprep.subr.bf16.mxu0 %v1154
    %1638 = vmatpush1.bf16.msra.mxu0 %v1153
    %1639 = vmatprep.subr.bf16.mxu0 %v1158
    %1640 = vmatpush1.bf16.msra.mxu0 %v1157
    %1641 = vmatprep.mubr.bf16.mxu0 %v159
    %1642 = vmatmul.mubr.bf16.gmra.mrb[0].mxu0 %v158
    %v1643 = vpop.f32.mrb[0].mxu0
    %v1644 = vadd.f32 %v1603, %v1643
    %v1645 = vpop.f32.mrb[0].mxu0
    %v1646 = vadd.f32 %v1605, %v1645
    %v1647 = vpop.f32.mrb[0].mxu0
    %v1648 = vpop.f32.mrb[0].mxu0
    %1649 = vdwg.mxu0
    %1650 = vmatprep.subr.bf16.mxu0 %v1162
    %1651 = vmatpush1.bf16.msra.mxu0 %v1161
    %1652 = vmatprep.subr.bf16.mxu0 0
    %1653 = vmatpush1.bf16.msra.mxu0 0
    %1654 = vmatprep.subr.bf16.mxu0 0
    %1655 = vmatpush1.bf16.msra.mxu0 0
    %1656 = vmatprep.subr.bf16.mxu0 0
    %1657 = vmatpush1.bf16.msra.mxu0 0
    %1658 = vmatprep.subr.bf16.mxu0 0
    %1659 = vmatpush1.bf16.msra.mxu0 0
    %1660 = vmatprep.subr.bf16.mxu0 0
    %1661 = vmatpush1.bf16.msra.mxu0 0
    %1662 = vmatprep.subr.bf16.mxu0 0
    %1663 = vmatpush1.bf16.msra.mxu0 0
    %1664 = vmatprep.subr.bf16.mxu0 0
    %1665 = vmatpush1.bf16.msra.mxu0 0
    %1666 = vmatprep.subr.bf16.mxu0 0
    %1667 = vmatpush1.bf16.msra.mxu0 0
    %1668 = vmatprep.subr.bf16.mxu0 0
    %1669 = vmatpush1.bf16.msra.mxu0 0
    %1670 = vmatprep.subr.bf16.mxu0 0
    %1671 = vmatpush1.bf16.msra.mxu0 0
    %1672 = vmatprep.subr.bf16.mxu0 0
    %1673 = vmatpush1.bf16.msra.mxu0 0
    %1674 = vmatprep.subr.bf16.mxu0 0
    %1675 = vmatpush1.bf16.msra.mxu0 0
    %1676 = vmatprep.subr.bf16.mxu0 0
    %1677 = vmatpush1.bf16.msra.mxu0 0
    %1678 = vmatprep.subr.bf16.mxu0 0
    %1679 = vmatpush1.bf16.msra.mxu0 0
    %1680 = vmatprep.subr.bf16.mxu0 0
    %1681 = vmatpush1.bf16.msra.mxu0 0
    %1682 = vmatprep.mubr.bf16.mxu0 0
    %1683 = vmatmul.mubr.bf16.gmra.mrb[0].mxu0 %v1361
    %v1684 = vpop.f32.mrb[0].mxu0
    %v1685 = vadd.f32 %v1644, %v1684
    %v1686 = vpop.f32.mrb[0].mxu0
    %v1687 = vadd.f32 %v1646, %v1686
    %v1688 = vpop.f32.mrb[0].mxu0
    %v1689 = vpop.f32.mrb[0].mxu0
    %1690 = vdwg.mxu0
    %v1691 = vmax.f32 %v1521, 0.0
    %v1692 = vmax.f32 %v1523, 0.0
    %v1693 = vmax.f32 %v1685, 0.0
    %v1694 = vmax.f32 %v1687, 0.0
    %v1695 = vpack.c.bf16 %v1691, %v1691
    %v1696 = vpack.c.bf16 %v1692, %v1692
    %v1697 = vpack.c.bf16 %v1693, %v1693
    %v1698 = vpack.c.bf16 %v1694, %v1694
    %v1699 = vld [vmem:[#allocation9] sm:$0xff]
    %v1700 = vld [vmem:[#allocation9 + $0x8] sm:$0xff]
    %v1701 = vld [vmem:[#allocation9 + $0x10] sm:$0xff]
    %v1702 = vld [vmem:[#allocation9 + $0x18] sm:$0xff]
    %v1703 = vld [vmem:[#allocation9 + $0x20] sm:$0xff]
    %v1704 = vld [vmem:[#allocation9 + $0x28] sm:$0xff]
    %v1705 = vld [vmem:[#allocation9 + $0x30] sm:$0xff]
    %v1706 = vld [vmem:[#allocation9 + $0x38] sm:$0xff]
    %v1707 = vld [vmem:[#allocation9 + $0x40] sm:$0xff]
    %v1708 = vld [vmem:[#allocation9 + $0x48] sm:$0xff]
    %v1709 = vld [vmem:[#allocation9 + $0x50] sm:$0xff]
    %v1710 = vld [vmem:[#allocation9 + $0x58] sm:$0xff]
    %v1711 = vld [vmem:[#allocation9 + $0x60] sm:$0xff]
    %v1712 = vld [vmem:[#allocation9 + $0x68] sm:$0xff]
    %v1713 = vld [vmem:[#allocation9 + $0x70] sm:$0xff]
    %v1714 = vld [vmem:[#allocation9 + $0x78] sm:$0xff]
    %v1715 = vld [vmem:[#allocation9 + $0x80] sm:$0xff]
    %v1716 = vld [vmem:[#allocation9 + $0x88] sm:$0xff]
    %v1717 = vld [vmem:[#allocation9 + $0x90] sm:$0xff]
    %v1718 = vld [vmem:[#allocation9 + $0x98] sm:$0xff]
    %v1719 = vld [vmem:[#allocation9 + $0xa0] sm:$0xff]
    %v1720 = vld [vmem:[#allocation9 + $0xa8] sm:$0xff]
    %v1721 = vld [vmem:[#allocation9 + $0xb0] sm:$0xff]
    %v1722 = vld [vmem:[#allocation9 + $0xb8] sm:$0xff]
    %v1723 = vld [vmem:[#allocation9 + $0xc0] sm:$0xff]
    %v1724 = vld [vmem:[#allocation9 + $0xc8] sm:$0xff]
    %v1725 = vld [vmem:[#allocation9 + $0xd0] sm:$0xff]
    %v1726 = vld [vmem:[#allocation9 + $0xd8] sm:$0xff]
    %v1727 = vld [vmem:[#allocation9 + $0xe0] sm:$0xff]
    %v1728 = vld [vmem:[#allocation9 + $0xe8] sm:$0xff]
    %v1729 = vld [vmem:[#allocation9 + $0xf0] sm:$0xff]
    %v1730 = vld [vmem:[#allocation9 + $0xf8] sm:$0xff]
    %v1731 = vld [vmem:[#allocation9 + $0x100] sm:$0xff]
    %v1732 = vld [vmem:[#allocation9 + $0x108] sm:$0xff]
    %v1733 = vld [vmem:[#allocation9 + $0x110] sm:$0xff]
    %v1734 = vld [vmem:[#allocation9 + $0x118] sm:$0xff]
    %v1735 = vld [vmem:[#allocation9 + $0x120] sm:$0xff]
    %v1736 = vld [vmem:[#allocation9 + $0x128] sm:$0xff]
    %v1737 = vld [vmem:[#allocation9 + $0x130] sm:$0xff]
    %v1738 = vld [vmem:[#allocation9 + $0x138] sm:$0xff]
    %v1739 = vld [vmem:[#allocation9 + $0x140] sm:$0xff]
    %v1740 = vld [vmem:[#allocation9 + $0x148] sm:$0xff]
    %v1741 = vld [vmem:[#allocation9 + $0x150] sm:$0xff]
    %v1742 = vld [vmem:[#allocation9 + $0x158] sm:$0xff]
    %v1743 = vld [vmem:[#allocation9 + $0x160] sm:$0xff]
    %v1744 = vld [vmem:[#allocation9 + $0x168] sm:$0xff]
    %v1745 = vld [vmem:[#allocation9 + $0x170] sm:$0xff]
    %v1746 = vld [vmem:[#allocation9 + $0x178] sm:$0xff]
    %v1747 = vld [vmem:[#allocation9 + $0x180] sm:$0xff]
    %v1748 = vld [vmem:[#allocation9 + $0x188] sm:$0xff]
    %v1749 = vld [vmem:[#allocation9 + $0x190] sm:$0xff]
    %v1750 = vld [vmem:[#allocation9 + $0x198] sm:$0xff]
    %v1751 = vld [vmem:[#allocation9 + $0x1a0] sm:$0xff]
    %v1752 = vld [vmem:[#allocation9 + $0x1a8] sm:$0xff]
    %v1753 = vld [vmem:[#allocation9 + $0x1b0] sm:$0xff]
    %v1754 = vld [vmem:[#allocation9 + $0x1b8] sm:$0xff]
    %v1755 = vld [vmem:[#allocation9 + $0x1c0] sm:$0xff]
    %v1756 = vld [vmem:[#allocation9 + $0x1c8] sm:$0xff]
    %v1757 = vld [vmem:[#allocation9 + $0x1d0] sm:$0xff]
    %v1758 = vld [vmem:[#allocation9 + $0x1d8] sm:$0xff]
    %v1759 = vld [vmem:[#allocation9 + $0x1e0] sm:$0xff]
    %v1760 = vld [vmem:[#allocation9 + $0x1e8] sm:$0xff]
    %v1761 = vld [vmem:[#allocation9 + $0x1f0] sm:$0xff]
    %v1762 = vld [vmem:[#allocation9 + $0x1f8] sm:$0xff]
    %v1763 = vld [vmem:[%s5] sm:$0x3]
    %v1765 = vlaneseq
    %v1766 = vshrl.u32 %v1765, 7
    %v1767 = vsub.s32 0, %v1766
    %v1768 = vrot.slane %v1763, %v1767
    %v1769 = vlaneseq
    %v1770 = vshrl.u32 %v1769, 7
    %v1771 = vsub.s32 1, %v1770
    %v1772 = vrot.slane %v1763, %v1771
    %v1839 = vunpack.c.l.b16 %v1699
    %v1840 = vunpack.c.h.b16 %v1699
    %v1841 = vunpack.c.l.b16 %v1700
    %v1842 = vunpack.c.h.b16 %v1700
    %v1843 = vunpack.c.l.b16 %v1701
    %v1844 = vunpack.c.h.b16 %v1701
    %v1845 = vunpack.c.l.b16 %v1702
    %v1846 = vunpack.c.h.b16 %v1702
    %v1847 = vunpack.c.l.b16 %v1703
    %v1848 = vunpack.c.h.b16 %v1703
    %v1849 = vunpack.c.l.b16 %v1704
    %v1850 = vunpack.c.h.b16 %v1704
    %v1851 = vunpack.c.l.b16 %v1705
    %v1852 = vunpack.c.h.b16 %v1705
    %v1853 = vunpack.c.l.b16 %v1706
    %v1854 = vunpack.c.h.b16 %v1706
    %v1855 = vunpack.c.l.b16 %v1707
    %v1856 = vunpack.c.h.b16 %v1707
    %v1857 = vunpack.c.l.b16 %v1708
    %v1858 = vunpack.c.h.b16 %v1708
    %v1859 = vunpack.c.l.b16 %v1709
    %v1860 = vunpack.c.h.b16 %v1709
    %v1861 = vunpack.c.l.b16 %v1710
    %v1862 = vunpack.c.h.b16 %v1710
    %v1863 = vunpack.c.l.b16 %v1711
    %v1864 = vunpack.c.h.b16 %v1711
    %v1865 = vunpack.c.l.b16 %v1712
    %v1866 = vunpack.c.h.b16 %v1712
    %v1867 = vunpack.c.l.b16 %v1713
    %v1868 = vunpack.c.h.b16 %v1713
    %v1869 = vunpack.c.l.b16 %v1714
    %v1870 = vunpack.c.h.b16 %v1714
    %v1871 = vunpack.c.l.b16 %v1715
    %v1872 = vunpack.c.h.b16 %v1715
    %v1873 = vunpack.c.l.b16 %v1716
    %v1874 = vunpack.c.h.b16 %v1716
    %v1875 = vunpack.c.l.b16 %v1717
    %v1876 = vunpack.c.h.b16 %v1717
    %v1877 = vunpack.c.l.b16 %v1718
    %v1878 = vunpack.c.h.b16 %v1718
    %v1879 = vunpack.c.l.b16 %v1719
    %v1880 = vunpack.c.h.b16 %v1719
    %v1881 = vunpack.c.l.b16 %v1720
    %v1882 = vunpack.c.h.b16 %v1720
    %v1883 = vunpack.c.l.b16 %v1721
    %v1884 = vunpack.c.h.b16 %v1721
    %v1885 = vunpack.c.l.b16 %v1722
    %v1886 = vunpack.c.h.b16 %v1722
    %v1887 = vunpack.c.l.b16 %v1723
    %v1888 = vunpack.c.h.b16 %v1723
    %v1889 = vunpack.c.l.b16 %v1724
    %v1890 = vunpack.c.h.b16 %v1724
    %v1891 = vunpack.c.l.b16 %v1725
    %v1892 = vunpack.c.h.b16 %v1725
    %v1893 = vunpack.c.l.b16 %v1726
    %v1894 = vunpack.c.h.b16 %v1726
    %v1895 = vunpack.c.l.b16 %v1727
    %v1896 = vunpack.c.h.b16 %v1727
    %v1897 = vunpack.c.l.b16 %v1728
    %v1898 = vunpack.c.h.b16 %v1728
    %v1899 = vunpack.c.l.b16 %v1729
    %v1900 = vunpack.c.h.b16 %v1729
    %v1901 = vunpack.c.l.b16 %v1730
    %v1902 = vunpack.c.h.b16 %v1730
    %v1903 = vunpack.c.l.b16 %v1731
    %v1904 = vunpack.c.h.b16 %v1731
    %v1905 = vunpack.c.l.b16 %v1732
    %v1906 = vunpack.c.h.b16 %v1732
    %v1907 = vunpack.c.l.b16 %v1733
    %v1908 = vunpack.c.h.b16 %v1733
    %v1909 = vunpack.c.l.b16 %v1734
    %v1910 = vunpack.c.h.b16 %v1734
    %v1911 = vunpack.c.l.b16 %v1735
    %v1912 = vunpack.c.h.b16 %v1735
    %v1913 = vunpack.c.l.b16 %v1736
    %v1914 = vunpack.c.h.b16 %v1736
    %v1915 = vunpack.c.l.b16 %v1737
    %v1916 = vunpack.c.h.b16 %v1737
    %v1917 = vunpack.c.l.b16 %v1738
    %v1918 = vunpack.c.h.b16 %v1738
    %v1919 = vunpack.c.l.b16 %v1739
    %v1920 = vunpack.c.h.b16 %v1739
    %v1921 = vunpack.c.l.b16 %v1740
    %v1922 = vunpack.c.h.b16 %v1740
    %v1923 = vunpack.c.l.b16 %v1741
    %v1924 = vunpack.c.h.b16 %v1741
    %v1925 = vunpack.c.l.b16 %v1742
    %v1926 = vunpack.c.h.b16 %v1742
    %v1927 = vunpack.c.l.b16 %v1743
    %v1928 = vunpack.c.h.b16 %v1743
    %v1929 = vunpack.c.l.b16 %v1744
    %v1930 = vunpack.c.h.b16 %v1744
    %v1931 = vunpack.c.l.b16 %v1745
    %v1932 = vunpack.c.h.b16 %v1745
    %v1933 = vunpack.c.l.b16 %v1746
    %v1934 = vunpack.c.h.b16 %v1746
    %v1935 = vunpack.c.l.b16 %v1747
    %v1936 = vunpack.c.h.b16 %v1747
    %v1937 = vunpack.c.l.b16 %v1748
    %v1938 = vunpack.c.h.b16 %v1748
    %v1939 = vunpack.c.l.b16 %v1749
    %v1940 = vunpack.c.h.b16 %v1749
    %v1941 = vunpack.c.l.b16 %v1750
    %v1942 = vunpack.c.h.b16 %v1750
    %v1943 = vunpack.c.l.b16 %v1751
    %v1944 = vunpack.c.h.b16 %v1751
    %v1945 = vunpack.c.l.b16 %v1752
    %v1946 = vunpack.c.h.b16 %v1752
    %v1947 = vunpack.c.l.b16 %v1753
    %v1948 = vunpack.c.h.b16 %v1753
    %v1949 = vunpack.c.l.b16 %v1754
    %v1950 = vunpack.c.h.b16 %v1754
    %v1951 = vunpack.c.l.b16 %v1755
    %v1952 = vunpack.c.h.b16 %v1755
    %v1953 = vunpack.c.l.b16 %v1756
    %v1954 = vunpack.c.h.b16 %v1756
    %v1955 = vunpack.c.l.b16 %v1757
    %v1956 = vunpack.c.h.b16 %v1757
    %v1957 = vunpack.c.l.b16 %v1758
    %v1958 = vunpack.c.h.b16 %v1758
    %v1959 = vunpack.c.l.b16 %v1759
    %v1960 = vunpack.c.h.b16 %v1759
    %v1961 = vunpack.c.l.b16 %v1760
    %v1962 = vunpack.c.h.b16 %v1760
    %v1963 = vunpack.c.l.b16 %v1761
    %v1964 = vunpack.c.h.b16 %v1761
    %v1965 = vunpack.c.l.b16 %v1762
    %v1966 = vunpack.c.h.b16 %v1762
    %v1967 = vpack.c.b16 %v1841, %v1839
    %v1968 = vpack.c.b16 %v1842, %v1840
    %v1969 = vpack.c.b16 %v1845, %v1843
    %v1970 = vpack.c.b16 %v1846, %v1844
    %v1971 = vpack.c.b16 %v1849, %v1847
    %v1972 = vpack.c.b16 %v1850, %v1848
    %v1973 = vpack.c.b16 %v1853, %v1851
    %v1974 = vpack.c.b16 %v1854, %v1852
    %v1975 = vpack.c.b16 %v1857, %v1855
    %v1976 = vpack.c.b16 %v1858, %v1856
    %v1977 = vpack.c.b16 %v1861, %v1859
    %v1978 = vpack.c.b16 %v1862, %v1860
    %v1979 = vpack.c.b16 %v1865, %v1863
    %v1980 = vpack.c.b16 %v1866, %v1864
    %v1981 = vpack.c.b16 %v1869, %v1867
    %v1982 = vpack.c.b16 %v1870, %v1868
    %v1983 = vpack.c.b16 %v1873, %v1871
    %v1984 = vpack.c.b16 %v1874, %v1872
    %v1985 = vpack.c.b16 %v1877, %v1875
    %v1986 = vpack.c.b16 %v1878, %v1876
    %v1987 = vpack.c.b16 %v1881, %v1879
    %v1988 = vpack.c.b16 %v1882, %v1880
    %v1989 = vpack.c.b16 %v1885, %v1883
    %v1990 = vpack.c.b16 %v1886, %v1884
    %v1991 = vpack.c.b16 %v1889, %v1887
    %v1992 = vpack.c.b16 %v1890, %v1888
    %v1993 = vpack.c.b16 %v1893, %v1891
    %v1994 = vpack.c.b16 %v1894, %v1892
    %v1995 = vpack.c.b16 %v1897, %v1895
    %v1996 = vpack.c.b16 %v1898, %v1896
    %v1997 = vpack.c.b16 %v1901, %v1899
    %v1998 = vpack.c.b16 %v1902, %v1900
    %v1999 = vpack.c.b16 %v1905, %v1903
    %v2000 = vpack.c.b16 %v1906, %v1904
    %v2001 = vpack.c.b16 %v1909, %v1907
    %v2002 = vpack.c.b16 %v1910, %v1908
    %v2003 = vpack.c.b16 %v1913, %v1911
    %v2004 = vpack.c.b16 %v1914, %v1912
    %v2005 = vpack.c.b16 %v1917, %v1915
    %v2006 = vpack.c.b16 %v1918, %v1916
    %v2007 = vpack.c.b16 %v1921, %v1919
    %v2008 = vpack.c.b16 %v1922, %v1920
    %v2009 = vpack.c.b16 %v1925, %v1923
    %v2010 = vpack.c.b16 %v1926, %v1924
    %v2011 = vpack.c.b16 %v1929, %v1927
    %v2012 = vpack.c.b16 %v1930, %v1928
    %v2013 = vpack.c.b16 %v1933, %v1931
    %v2014 = vpack.c.b16 %v1934, %v1932
    %v2015 = vpack.c.b16 %v1937, %v1935
    %v2016 = vpack.c.b16 %v1938, %v1936
    %v2017 = vpack.c.b16 %v1941, %v1939
    %v2018 = vpack.c.b16 %v1942, %v1940
    %v2019 = vpack.c.b16 %v1945, %v1943
    %v2020 = vpack.c.b16 %v1946, %v1944
    %v2021 = vpack.c.b16 %v1949, %v1947
    %v2022 = vpack.c.b16 %v1950, %v1948
    %v2023 = vpack.c.b16 %v1953, %v1951
    %v2024 = vpack.c.b16 %v1954, %v1952
    %v2025 = vpack.c.b16 %v1957, %v1955
    %v2026 = vpack.c.b16 %v1958, %v1956
    %v2027 = vpack.c.b16 %v1961, %v1959
    %v2028 = vpack.c.b16 %v1962, %v1960
    %v2029 = vpack.c.b16 %v1965, %v1963
    %v2030 = vpack.c.b16 %v1966, %v1964
    %2095 = vmatprep.subr.bf16.mxu0 %v1968
    %2096 = vmatpush1.bf16.msra.mxu0 %v1967
    %2097 = vmatprep.subr.bf16.mxu0 %v1970
    %2098 = vmatpush1.bf16.msra.mxu0 %v1969
    %2099 = vmatprep.subr.bf16.mxu0 %v1972
    %2100 = vmatpush1.bf16.msra.mxu0 %v1971
    %2101 = vmatprep.subr.bf16.mxu0 %v1974
    %2102 = vmatpush1.bf16.msra.mxu0 %v1973
    %2103 = vmatprep.subr.bf16.mxu0 %v1976
    %2104 = vmatpush1.bf16.msra.mxu0 %v1975
    %2105 = vmatprep.subr.bf16.mxu0 %v1978
    %2106 = vmatpush1.bf16.msra.mxu0 %v1977
    %2107 = vmatprep.subr.bf16.mxu0 %v1980
    %2108 = vmatpush1.bf16.msra.mxu0 %v1979
    %2109 = vmatprep.subr.bf16.mxu0 %v1982
    %2110 = vmatpush1.bf16.msra.mxu0 %v1981
    %2111 = vmatprep.subr.bf16.mxu0 %v1984
    %2112 = vmatpush1.bf16.msra.mxu0 %v1983
    %2113 = vmatprep.subr.bf16.mxu0 %v1986
    %2114 = vmatpush1.bf16.msra.mxu0 %v1985
    %2115 = vmatprep.subr.bf16.mxu0 %v1988
    %2116 = vmatpush1.bf16.msra.mxu0 %v1987
    %2117 = vmatprep.subr.bf16.mxu0 %v1990
    %2118 = vmatpush1.bf16.msra.mxu0 %v1989
    %2119 = vmatprep.subr.bf16.mxu0 %v1992
    %2120 = vmatpush1.bf16.msra.mxu0 %v1991
    %2121 = vmatprep.subr.bf16.mxu0 %v1994
    %2122 = vmatpush1.bf16.msra.mxu0 %v1993
    %2123 = vmatprep.subr.bf16.mxu0 %v1996
    %2124 = vmatpush1.bf16.msra.mxu0 %v1995
    %2125 = vmatprep.subr.bf16.mxu0 %v1998
    %2126 = vmatpush1.bf16.msra.mxu0 %v1997
    %2127 = vmatprep.mubr.bf16.mxu0 %v1696
    %2128 = vmatmul.mubr.bf16.gmra.mrb[0].mxu0 %v1695
    %v2129 = vpop.f32.mrb[0].mxu0
    %v2130 = vadd.f32 %v1768, %v2129
    %v2131 = vpop.f32.mrb[0].mxu0
    %v2132 = vadd.f32 %v1772, %v2131
    %v2133 = vpop.f32.mrb[0].mxu0
    %v2134 = vpop.f32.mrb[0].mxu0
    %2135 = vdwg.mxu0
    %2136 = vmatprep.subr.bf16.mxu0 %v2000
    %2137 = vmatpush1.bf16.msra.mxu0 %v1999
    %2138 = vmatprep.subr.bf16.mxu0 %v2002
    %2139 = vmatpush1.bf16.msra.mxu0 %v2001
    %2140 = vmatprep.subr.bf16.mxu0 %v2004
    %2141 = vmatpush1.bf16.msra.mxu0 %v2003
    %2142 = vmatprep.subr.bf16.mxu0 %v2006
    %2143 = vmatpush1.bf16.msra.mxu0 %v2005
    %2144 = vmatprep.subr.bf16.mxu0 %v2008
    %2145 = vmatpush1.bf16.msra.mxu0 %v2007
    %2146 = vmatprep.subr.bf16.mxu0 %v2010
    %2147 = vmatpush1.bf16.msra.mxu0 %v2009
    %2148 = vmatprep.subr.bf16.mxu0 %v2012
    %2149 = vmatpush1.bf16.msra.mxu0 %v2011
    %2150 = vmatprep.subr.bf16.mxu0 %v2014
    %2151 = vmatpush1.bf16.msra.mxu0 %v2013
    %2152 = vmatprep.subr.bf16.mxu0 %v2016
    %2153 = vmatpush1.bf16.msra.mxu0 %v2015
    %2154 = vmatprep.subr.bf16.mxu0 %v2018
    %2155 = vmatpush1.bf16.msra.mxu0 %v2017
    %2156 = vmatprep.subr.bf16.mxu0 %v2020
    %2157 = vmatpush1.bf16.msra.mxu0 %v2019
    %2158 = vmatprep.subr.bf16.mxu0 %v2022
    %2159 = vmatpush1.bf16.msra.mxu0 %v2021
    %2160 = vmatprep.subr.bf16.mxu0 %v2024
    %2161 = vmatpush1.bf16.msra.mxu0 %v2023
    %2162 = vmatprep.subr.bf16.mxu0 %v2026
    %2163 = vmatpush1.bf16.msra.mxu0 %v2025
    %2164 = vmatprep.subr.bf16.mxu0 %v2028
    %2165 = vmatpush1.bf16.msra.mxu0 %v2027
    %2166 = vmatprep.subr.bf16.mxu0 %v2030
    %2167 = vmatpush1.bf16.msra.mxu0 %v2029
    %2168 = vmatprep.mubr.bf16.mxu0 %v1698
    %2169 = vmatmul.mubr.bf16.gmra.mrb[0].mxu0 %v1697
    %v2170 = vpop.f32.mrb[0].mxu0
    %v2171 = vadd.f32 %v2130, %v2170
    %v2172 = vpop.f32.mrb[0].mxu0
    %v2173 = vadd.f32 %v2132, %v2172
    %v2174 = vpop.f32.mrb[0].mxu0
    %v2175 = vpop.f32.mrb[0].mxu0
    %2176 = vdwg.mxu0
    %v2177 = vmax.f32 %v2171, 0.0
    %v2178 = vmax.f32 %v2173, 0.0
    %v2179 = vpack.c.bf16 %v2177, %v2177
    %v2180 = vpack.c.bf16 %v2178, %v2178
    %v2181 = vld [vmem:[%s6] sm:$0xf]
    %v2182 = vld [vmem:[%s6 + $0x4] sm:$0xf]
    %v2183 = vld [vmem:[%s6 + $0x8] sm:$0xf]
    %v2184 = vld [vmem:[%s6 + $0xc] sm:$0xf]
    %v2185 = vld [vmem:[%s6 + $0x10] sm:$0xf]
    %v2186 = vld [vmem:[%s6 + $0x14] sm:$0xf]
    %v2187 = vld [vmem:[%s6 + $0x18] sm:$0xf]
    %v2188 = vld [vmem:[%s6 + $0x1c] sm:$0xf]
    %v2189 = vld [vmem:[%s6 + $0x20] sm:$0xf]
    %v2190 = vld [vmem:[%s6 + $0x24] sm:$0xf]
    %v2191 = vld [vmem:[%s6 + $0x28] sm:$0xf]
    %v2192 = vld [vmem:[%s6 + $0x2c] sm:$0xf]
    %v2193 = vld [vmem:[%s6 + $0x30] sm:$0xf]
    %v2194 = vld [vmem:[%s6 + $0x34] sm:$0xf]
    %v2195 = vld [vmem:[%s6 + $0x38] sm:$0xf]
    %v2196 = vld [vmem:[%s6 + $0x3c] sm:$0xf]
    %v2197 = vld [vmem:[%s6 + $0x40] sm:$0xf]
    %v2198 = vld [vmem:[%s6 + $0x44] sm:$0xf]
    %v2199 = vld [vmem:[%s6 + $0x48] sm:$0xf]
    %v2200 = vld [vmem:[%s6 + $0x4c] sm:$0xf]
    %v2201 = vld [vmem:[%s6 + $0x50] sm:$0xf]
    %v2202 = vld [vmem:[%s6 + $0x54] sm:$0xf]
    %v2203 = vld [vmem:[%s6 + $0x58] sm:$0xf]
    %v2204 = vld [vmem:[%s6 + $0x5c] sm:$0xf]
    %v2205 = vld [vmem:[%s6 + $0x60] sm:$0xf]
    %v2206 = vld [vmem:[%s6 + $0x64] sm:$0xf]
    %v2207 = vld [vmem:[%s6 + $0x68] sm:$0xf]
    %v2208 = vld [vmem:[%s6 + $0x6c] sm:$0xf]
    %v2209 = vld [vmem:[%s6 + $0x70] sm:$0xf]
    %v2210 = vld [vmem:[%s6 + $0x74] sm:$0xf]
    %v2211 = vld [vmem:[%s6 + $0x78] sm:$0xf]
    %v2212 = vld [vmem:[%s6 + $0x7c] sm:$0xf]
    %v2213 = vld [vmem:[#allocation11] sm:$0x1]
    %v2215 = vlaneseq
    %v2216 = vshrl.u32 %v2215, 7
    %v2217 = vsub.s32 0, %v2216
    %v2218 = vrot.slane %v2213, %v2217
    %v2252 = vunpack.c.l.b16 %v2181
    %v2253 = vunpack.c.l.b16 %v2182
    %v2254 = vunpack.c.l.b16 %v2183
    %v2255 = vunpack.c.l.b16 %v2184
    %v2256 = vunpack.c.l.b16 %v2185
    %v2257 = vunpack.c.l.b16 %v2186
    %v2258 = vunpack.c.l.b16 %v2187
    %v2259 = vunpack.c.l.b16 %v2188
    %v2260 = vunpack.c.l.b16 %v2189
    %v2261 = vunpack.c.l.b16 %v2190
    %v2262 = vunpack.c.l.b16 %v2191
    %v2263 = vunpack.c.l.b16 %v2192
    %v2264 = vunpack.c.l.b16 %v2193
    %v2265 = vunpack.c.l.b16 %v2194
    %v2266 = vunpack.c.l.b16 %v2195
    %v2267 = vunpack.c.l.b16 %v2196
    %v2268 = vunpack.c.l.b16 %v2197
    %v2269 = vunpack.c.l.b16 %v2198
    %v2270 = vunpack.c.l.b16 %v2199
    %v2271 = vunpack.c.l.b16 %v2200
    %v2272 = vunpack.c.l.b16 %v2201
    %v2273 = vunpack.c.l.b16 %v2202
    %v2274 = vunpack.c.l.b16 %v2203
    %v2275 = vunpack.c.l.b16 %v2204
    %v2276 = vunpack.c.l.b16 %v2205
    %v2277 = vunpack.c.l.b16 %v2206
    %v2278 = vunpack.c.l.b16 %v2207
    %v2279 = vunpack.c.l.b16 %v2208
    %v2280 = vunpack.c.l.b16 %v2209
    %v2281 = vunpack.c.l.b16 %v2210
    %v2282 = vunpack.c.l.b16 %v2211
    %v2283 = vunpack.c.l.b16 %v2212
    %v2284 = vpack.c.b16 %v2253, %v2252
    %v2285 = vpack.c.b16 %v2255, %v2254
    %v2286 = vpack.c.b16 %v2257, %v2256
    %v2287 = vpack.c.b16 %v2259, %v2258
    %v2288 = vpack.c.b16 %v2261, %v2260
    %v2289 = vpack.c.b16 %v2263, %v2262
    %v2290 = vpack.c.b16 %v2265, %v2264
    %v2291 = vpack.c.b16 %v2267, %v2266
    %v2292 = vpack.c.b16 %v2269, %v2268
    %v2293 = vpack.c.b16 %v2271, %v2270
    %v2294 = vpack.c.b16 %v2273, %v2272
    %v2295 = vpack.c.b16 %v2275, %v2274
    %v2296 = vpack.c.b16 %v2277, %v2276
    %v2297 = vpack.c.b16 %v2279, %v2278
    %v2298 = vpack.c.b16 %v2281, %v2280
    %v2299 = vpack.c.b16 %v2283, %v2282
    %2316 = vmatprep.subr.bf16.mxu0 0
    %2317 = vmatpush1.bf16.msra.mxu0 %v2284
    %2318 = vmatprep.subr.bf16.mxu0 0
    %2319 = vmatpush1.bf16.msra.mxu0 %v2285
    %2320 = vmatprep.subr.bf16.mxu0 0
    %2321 = vmatpush1.bf16.msra.mxu0 %v2286
    %2322 = vmatprep.subr.bf16.mxu0 0
    %2323 = vmatpush1.bf16.msra.mxu0 %v2287
    %2324 = vmatprep.subr.bf16.mxu0 0
    %2325 = vmatpush1.bf16.msra.mxu0 %v2288
    %2326 = vmatprep.subr.bf16.mxu0 0
    %2327 = vmatpush1.bf16.msra.mxu0 %v2289
    %2328 = vmatprep.subr.bf16.mxu0 0
    %2329 = vmatpush1.bf16.msra.mxu0 %v2290
    %2330 = vmatprep.subr.bf16.mxu0 0
    %2331 = vmatpush1.bf16.msra.mxu0 %v2291
    %2332 = vmatprep.subr.bf16.mxu0 0
    %2333 = vmatpush1.bf16.msra.mxu0 %v2292
    %2334 = vmatprep.subr.bf16.mxu0 0
    %2335 = vmatpush1.bf16.msra.mxu0 %v2293
    %2336 = vmatprep.subr.bf16.mxu0 0
    %2337 = vmatpush1.bf16.msra.mxu0 %v2294
    %2338 = vmatprep.subr.bf16.mxu0 0
    %2339 = vmatpush1.bf16.msra.mxu0 %v2295
    %2340 = vmatprep.subr.bf16.mxu0 0
    %2341 = vmatpush1.bf16.msra.mxu0 %v2296
    %2342 = vmatprep.subr.bf16.mxu0 0
    %2343 = vmatpush1.bf16.msra.mxu0 %v2297
    %2344 = vmatprep.subr.bf16.mxu0 0
    %2345 = vmatpush1.bf16.msra.mxu0 %v2298
    %2346 = vmatprep.subr.bf16.mxu0 0
    %2347 = vmatpush1.bf16.msra.mxu0 %v2299
    %2348 = vmatprep.mubr.bf16.mxu0 %v2180
    %2349 = vmatmul.mubr.bf16.gmra.mrb[0].mxu0 %v2179
    %v2350 = vpop.f32.mrb[0].mxu0
    %v2351 = vadd.f32 %v2218, %v2350
    %v2352 = vpop.f32.mrb[0].mxu0
    %v2353 = vpop.f32.mrb[0].mxu0
    %v2354 = vpop.f32.mrb[0].mxu0
    %2355 = vdwg.mxu0
    %v2356 = vmul.f32 %v2351, 1.442695
    %v2357 = vpow.pop %v2356
    %v2358 = vld [vmem:[#allocation6] sm:$0xff]
    %v2359 = vmul.f32 %v2357, %v2358
    %v2360 = vadd.f32 %v2351, %v2359
    %v2361 = vld [vmem:[%s14] sm:$0x1]
    %v2363 = vlaneseq
    %v2364 = vshrl.u32 %v2363, 7
    %v2365 = vsub.s32 0, %v2364
    %v2366 = vrot.slane %v2361, %v2365
    %v2368 = vmul.f32 %v2360, %v2366
    %2369 = vadd.xlane.f32.xlu0 %v2368
    %v2370 = vpop.xlane.xlu0 %2369
    %v2371 = vld [vmem:[#allocation2] sm:$0x1]
    %v2373 = vlaneseq
    %v2374 = vshrl.u32 %v2373, 7
    %v2375 = vsub.s32 0, %v2374
    %v2376 = vrot.slane %v2371, %v2375
    %v2378 = vadd.f32 %v2370, %v2376
    %v2379 = vmul.f32 %v2378, 0.5
    %v2380 = vtanh.pop %v2379
    %v2381 = vadd.f32 %v2380, 1.0
    %v2382 = vmul.f32 %v2381, 0.5
    %v2383 = vlaneseq
    %v2384 = vand.u32 %v2383, 127
    %vm2385 = vcmp.eq.s32.totalorder %v2384, 12
    %2387 = vset.pattern.permute.xlu0 0
    %2388 = vperm.xlu0 %2387, %v2382
    %v2389 = vpop.permute.xlu0 %2388
    %v2391 = vsel %vm2385, %v2389, %v2360
    %2392 = vst [vmem:[#allocation16] sm:$0xff] %v2391
    %v2393 = vpack.c.bf16 %v2360, %v2360
    %v2394 = vld [vmem:[#allocation12] sm:$0xf]
    %v2395 = vld [vmem:[#allocation12 + $0x4] sm:$0xf]
    %v2396 = vld [vmem:[#allocation12 + $0x8] sm:$0xf]
    %v2397 = vld [vmem:[#allocation12 + $0xc] sm:$0xf]
    %v2398 = vld [vmem:[#allocation12 + $0x10] sm:$0xf]
    %v2399 = vld [vmem:[#allocation12 + $0x14] sm:$0xf]
    %v2400 = vld [vmem:[#allocation12 + $0x18] sm:$0xf]
    %v2401 = vld [vmem:[#allocation12 + $0x1c] sm:$0xf]
    %v2402 = vld [vmem:[#allocation12 + $0x20] sm:$0xf]
    %v2403 = vld [vmem:[#allocation12 + $0x24] sm:$0xf]
    %v2404 = vld [vmem:[#allocation12 + $0x28] sm:$0xf]
    %v2405 = vld [vmem:[#allocation12 + $0x2c] sm:$0xf]
    %v2406 = vld [vmem:[#allocation12 + $0x30] sm:$0xf]
    %v2407 = vld [vmem:[#allocation12 + $0x34] sm:$0xf]
    %v2408 = vld [vmem:[#allocation12 + $0x38] sm:$0xf]
    %v2409 = vld [vmem:[#allocation12 + $0x3c] sm:$0xf]
    %v2410 = vld [vmem:[%s9] sm:$0x1]
    %v2412 = vlaneseq
    %v2413 = vshrl.u32 %v2412, 7
    %v2414 = vsub.s32 0, %v2413
    %v2415 = vrot.slane %v2410, %v2414
    %v2433 = vunpack.c.l.b16 %v2394
    %v2434 = vunpack.c.l.b16 %v2395
    %v2435 = vunpack.c.l.b16 %v2396
    %v2436 = vunpack.c.l.b16 %v2397
    %v2437 = vunpack.c.l.b16 %v2398
    %v2438 = vunpack.c.l.b16 %v2399
    %v2439 = vunpack.c.l.b16 %v2400
    %v2440 = vunpack.c.l.b16 %v2401
    %v2441 = vunpack.c.l.b16 %v2402
    %v2442 = vunpack.c.l.b16 %v2403
    %v2443 = vunpack.c.l.b16 %v2404
    %v2444 = vunpack.c.l.b16 %v2405
    %v2445 = vunpack.c.l.b16 %v2406
    %v2446 = vunpack.c.l.b16 %v2407
    %v2447 = vunpack.c.l.b16 %v2408
    %v2448 = vunpack.c.l.b16 %v2409
    %v2449 = vpack.c.b16 %v2434, %v2433
    %v2450 = vpack.c.b16 %v2436, %v2435
    %v2451 = vpack.c.b16 %v2438, %v2437
    %v2452 = vpack.c.b16 %v2440, %v2439
    %v2453 = vpack.c.b16 %v2442, %v2441
    %v2454 = vpack.c.b16 %v2444, %v2443
    %v2455 = vpack.c.b16 %v2446, %v2445
    %v2456 = vpack.c.b16 %v2448, %v2447
    %2465 = vmatprep.subr.bf16.mxu0 0
    %2466 = vmatpush1.bf16.msra.mxu0 %v2449
    %2467 = vmatprep.subr.bf16.mxu0 0
    %2468 = vmatpush1.bf16.msra.mxu0 %v2450
    %2469 = vmatprep.subr.bf16.mxu0 0
    %2470 = vmatpush1.bf16.msra.mxu0 %v2451
    %2471 = vmatprep.subr.bf16.mxu0 0
    %2472 = vmatpush1.bf16.msra.mxu0 %v2452
    %2473 = vmatprep.subr.bf16.mxu0 0
    %2474 = vmatpush1.bf16.msra.mxu0 %v2453
    %2475 = vmatprep.subr.bf16.mxu0 0
    %2476 = vmatpush1.bf16.msra.mxu0 %v2454
    %2477 = vmatprep.subr.bf16.mxu0 0
    %2478 = vmatpush1.bf16.msra.mxu0 %v2455
    %2479 = vmatprep.subr.bf16.mxu0 0
    %2480 = vmatpush1.bf16.msra.mxu0 %v2456
    %2481 = vmatprep.subr.bf16.mxu0 0
    %2482 = vmatpush1.bf16.msra.mxu0 0
    %2483 = vmatprep.subr.bf16.mxu0 0
    %2484 = vmatpush1.bf16.msra.mxu0 0
    %2485 = vmatprep.subr.bf16.mxu0 0
    %2486 = vmatpush1.bf16.msra.mxu0 0
    %2487 = vmatprep.subr.bf16.mxu0 0
    %2488 = vmatpush1.bf16.msra.mxu0 0
    %2489 = vmatprep.subr.bf16.mxu0 0
    %2490 = vmatpush1.bf16.msra.mxu0 0
    %2491 = vmatprep.subr.bf16.mxu0 0
    %2492 = vmatpush1.bf16.msra.mxu0 0
    %2493 = vmatprep.subr.bf16.mxu0 0
    %2494 = vmatpush1.bf16.msra.mxu0 0
    %2495 = vmatprep.subr.bf16.mxu0 0
    %2496 = vmatpush1.bf16.msra.mxu0 0
    %2497 = vmatprep.mubr.bf16.mxu0 0
    %2498 = vmatmul.mubr.bf16.gmra.mrb[0].mxu0 %v2393
    %v2499 = vpop.f32.mrb[0].mxu0
    %v2500 = vadd.f32 %v2415, %v2499
    %v2501 = vpop.f32.mrb[0].mxu0
    %v2502 = vpop.f32.mrb[0].mxu0
    %v2503 = vpop.f32.mrb[0].mxu0
    %2504 = vdwg.mxu0
    %v2505 = vmax.f32 %v2500, 0.0
    %v2506 = vpack.c.bf16 %v2505, %v2505
    %v2507 = vld [vmem:[#allocation14] sm:$0xff]
    %v2508 = vld [vmem:[#allocation14 + $0x8] sm:$0xff]
    %v2509 = vld [vmem:[#allocation14 + $0x10] sm:$0xff]
    %v2510 = vld [vmem:[#allocation14 + $0x18] sm:$0xff]
    %v2511 = vld [vmem:[#allocation14 + $0x20] sm:$0xff]
    %v2512 = vld [vmem:[#allocation14 + $0x28] sm:$0xff]
    %v2513 = vld [vmem:[#allocation14 + $0x30] sm:$0xff]
    %v2514 = vld [vmem:[#allocation14 + $0x38] sm:$0xff]
    %v2515 = vld [vmem:[#allocation14 + $0x40] sm:$0xff]
    %v2516 = vld [vmem:[#allocation14 + $0x48] sm:$0xff]
    %v2517 = vld [vmem:[#allocation14 + $0x50] sm:$0xff]
    %v2518 = vld [vmem:[#allocation14 + $0x58] sm:$0xff]
    %v2519 = vld [vmem:[#allocation14 + $0x60] sm:$0xff]
    %v2520 = vld [vmem:[#allocation14 + $0x68] sm:$0xff]
    %v2521 = vld [vmem:[#allocation14 + $0x70] sm:$0xff]
    %v2522 = vld [vmem:[#allocation14 + $0x78] sm:$0xff]
    %v2523 = vld [vmem:[%s11] sm:$0x3]
    %v2525 = vlaneseq
    %v2526 = vshrl.u32 %v2525, 7
    %v2527 = vsub.s32 0, %v2526
    %v2528 = vrot.slane %v2523, %v2527
    %v2529 = vlaneseq
    %v2530 = vshrl.u32 %v2529, 7
    %v2531 = vsub.s32 1, %v2530
    %v2532 = vrot.slane %v2523, %v2531
    %v2551 = vunpack.c.l.b16 %v2507
    %v2552 = vunpack.c.h.b16 %v2507
    %v2553 = vunpack.c.l.b16 %v2508
    %v2554 = vunpack.c.h.b16 %v2508
    %v2555 = vunpack.c.l.b16 %v2509
    %v2556 = vunpack.c.h.b16 %v2509
    %v2557 = vunpack.c.l.b16 %v2510
    %v2558 = vunpack.c.h.b16 %v2510
    %v2559 = vunpack.c.l.b16 %v2511
    %v2560 = vunpack.c.h.b16 %v2511
    %v2561 = vunpack.c.l.b16 %v2512
    %v2562 = vunpack.c.h.b16 %v2512
    %v2563 = vunpack.c.l.b16 %v2513
    %v2564 = vunpack.c.h.b16 %v2513
    %v2565 = vunpack.c.l.b16 %v2514
    %v2566 = vunpack.c.h.b16 %v2514
    %v2567 = vunpack.c.l.b16 %v2515
    %v2568 = vunpack.c.h.b16 %v2515
    %v2569 = vunpack.c.l.b16 %v2516
    %v2570 = vunpack.c.h.b16 %v2516
    %v2571 = vunpack.c.l.b16 %v2517
    %v2572 = vunpack.c.h.b16 %v2517
    %v2573 = vunpack.c.l.b16 %v2518
    %v2574 = vunpack.c.h.b16 %v2518
    %v2575 = vunpack.c.l.b16 %v2519
    %v2576 = vunpack.c.h.b16 %v2519
    %v2577 = vunpack.c.l.b16 %v2520
    %v2578 = vunpack.c.h.b16 %v2520
    %v2579 = vunpack.c.l.b16 %v2521
    %v2580 = vunpack.c.h.b16 %v2521
    %v2581 = vunpack.c.l.b16 %v2522
    %v2582 = vunpack.c.h.b16 %v2522
    %v2583 = vpack.c.b16 %v2553, %v2551
    %v2584 = vpack.c.b16 %v2554, %v2552
    %v2585 = vpack.c.b16 %v2557, %v2555
    %v2586 = vpack.c.b16 %v2558, %v2556
    %v2587 = vpack.c.b16 %v2561, %v2559
    %v2588 = vpack.c.b16 %v2562, %v2560
    %v2589 = vpack.c.b16 %v2565, %v2563
    %v2590 = vpack.c.b16 %v2566, %v2564
    %v2591 = vpack.c.b16 %v2569, %v2567
    %v2592 = vpack.c.b16 %v2570, %v2568
    %v2593 = vpack.c.b16 %v2573, %v2571
    %v2594 = vpack.c.b16 %v2574, %v2572
    %v2595 = vpack.c.b16 %v2577, %v2575
    %v2596 = vpack.c.b16 %v2578, %v2576
    %v2597 = vpack.c.b16 %v2581, %v2579
    %v2598 = vpack.c.b16 %v2582, %v2580
    %2615 = vmatprep.subr.bf16.mxu0 %v2584
    %2616 = vmatpush1.bf16.msra.mxu0 %v2583
    %2617 = vmatprep.subr.bf16.mxu0 %v2586
    %2618 = vmatpush1.bf16.msra.mxu0 %v2585
    %2619 = vmatprep.subr.bf16.mxu0 %v2588
    %2620 = vmatpush1.bf16.msra.mxu0 %v2587
    %2621 = vmatprep.subr.bf16.mxu0 %v2590
    %2622 = vmatpush1.bf16.msra.mxu0 %v2589
    %2623 = vmatprep.subr.bf16.mxu0 %v2592
    %2624 = vmatpush1.bf16.msra.mxu0 %v2591
    %2625 = vmatprep.subr.bf16.mxu0 %v2594
    %2626 = vmatpush1.bf16.msra.mxu0 %v2593
    %2627 = vmatprep.subr.bf16.mxu0 %v2596
    %2628 = vmatpush1.bf16.msra.mxu0 %v2595
    %2629 = vmatprep.subr.bf16.mxu0 %v2598
    %2630 = vmatpush1.bf16.msra.mxu0 %v2597
    %2631 = vmatprep.subr.bf16.mxu0 0
    %2632 = vmatpush1.bf16.msra.mxu0 0
    %2633 = vmatprep.subr.bf16.mxu0 0
    %2634 = vmatpush1.bf16.msra.mxu0 0
    %2635 = vmatprep.subr.bf16.mxu0 0
    %2636 = vmatpush1.bf16.msra.mxu0 0
    %2637 = vmatprep.subr.bf16.mxu0 0
    %2638 = vmatpush1.bf16.msra.mxu0 0
    %2639 = vmatprep.subr.bf16.mxu0 0
    %2640 = vmatpush1.bf16.msra.mxu0 0
    %2641 = vmatprep.subr.bf16.mxu0 0
    %2642 = vmatpush1.bf16.msra.mxu0 0
    %2643 = vmatprep.subr.bf16.mxu0 0
    %2644 = vmatpush1.bf16.msra.mxu0 0
    %2645 = vmatprep.subr.bf16.mxu0 0
    %2646 = vmatpush1.bf16.msra.mxu0 0
    %2647 = vmatprep.mubr.bf16.mxu0 0
    %2648 = vmatmul.mubr.bf16.gmra.mrb[0].mxu0 %v2506
    %v2649 = vpop.f32.mrb[0].mxu0
    %v2650 = vadd.f32 %v2528, %v2649
    %v2651 = vpop.f32.mrb[0].mxu0
    %v2652 = vadd.f32 %v2532, %v2651
    %v2653 = vpop.f32.mrb[0].mxu0
    %v2654 = vpop.f32.mrb[0].mxu0
    %2655 = vdwg.mxu0
    %v2656 = vmax.f32 %v2650, 0.0
    %v2657 = vmax.f32 %v2652, 0.0
    %v2658 = vpack.c.bf16 %v2656, %v2656
    %v2659 = vpack.c.bf16 %v2657, %v2657
    %v2660 = vld [vmem:[%s12] sm:$0xff]
    %v2661 = vld [vmem:[%s12 + $0x8] sm:$0xff]
    %v2662 = vld [vmem:[%s12 + $0x10] sm:$0xff]
    %v2663 = vld [vmem:[%s12 + $0x18] sm:$0xf]
    %v2664 = vld [vmem:[%s12 + $0x1c] sm:$0xff]
    %v2665 = vld [vmem:[%s12 + $0x24] sm:$0xff]
    %v2666 = vld [vmem:[%s12 + $0x2c] sm:$0xff]
    %v2667 = vld [vmem:[%s12 + $0x34] sm:$0xf]
    %v2668 = vld [vmem:[%s12 + $0x38] sm:$0xff]
    %v2669 = vld [vmem:[%s12 + $0x40] sm:$0xff]
    %v2670 = vld [vmem:[%s12 + $0x48] sm:$0xff]
    %v2671 = vld [vmem:[%s12 + $0x50] sm:$0xf]
    %v2672 = vld [vmem:[%s12 + $0x54] sm:$0xff]
    %v2673 = vld [vmem:[%s12 + $0x5c] sm:$0xff]
    %v2674 = vld [vmem:[%s12 + $0x64] sm:$0xff]
    %v2675 = vld [vmem:[%s12 + $0x6c] sm:$0xf]
    %v2676 = vld [vmem:[%s12 + $0x70] sm:$0xff]
    %v2677 = vld [vmem:[%s12 + $0x78] sm:$0xff]
    %v2678 = vld [vmem:[%s12 + $0x80] sm:$0xff]
    %v2679 = vld [vmem:[%s12 + $0x88] sm:$0xf]
    %v2680 = vld [vmem:[%s12 + $0x8c] sm:$0xff]
    %v2681 = vld [vmem:[%s12 + $0x94] sm:$0xff]
    %v2682 = vld [vmem:[%s12 + $0x9c] sm:$0xff]
    %v2683 = vld [vmem:[%s12 + $0xa4] sm:$0xf]
    %v2684 = vld [vmem:[%s12 + $0xa8] sm:$0xff]
    %v2685 = vld [vmem:[%s12 + $0xb0] sm:$0xff]
    %v2686 = vld [vmem:[%s12 + $0xb8] sm:$0xff]
    %v2687 = vld [vmem:[%s12 + $0xc0] sm:$0xf]
    %v2688 = vld [vmem:[%s12 + $0xc4] sm:$0xff]
    %v2689 = vld [vmem:[%s12 + $0xcc] sm:$0xff]
    %v2690 = vld [vmem:[%s12 + $0xd4] sm:$0xff]
    %v2691 = vld [vmem:[%s12 + $0xdc] sm:$0xf]
    %v2692 = vld [vmem:[%s12 + $0xe0] sm:$0xff]
    %v2693 = vld [vmem:[%s12 + $0xe8] sm:$0xff]
    %v2694 = vld [vmem:[%s12 + $0xf0] sm:$0xff]
    %v2695 = vld [vmem:[%s12 + $0xf8] sm:$0xf]
    %v2696 = vld [vmem:[%s12 + $0xfc] sm:$0xff]
    %v2697 = vld [vmem:[%s12 + $0x104] sm:$0xff]
    %v2698 = vld [vmem:[%s12 + $0x10c] sm:$0xff]
    %v2699 = vld [vmem:[%s12 + $0x114] sm:$0xf]
    %v2700 = vld [vmem:[%s12 + $0x118] sm:$0xff]
    %v2701 = vld [vmem:[%s12 + $0x120] sm:$0xff]
    %v2702 = vld [vmem:[%s12 + $0x128] sm:$0xff]
    %v2703 = vld [vmem:[%s12 + $0x130] sm:$0xf]
    %v2704 = vld [vmem:[%s12 + $0x134] sm:$0xff]
    %v2705 = vld [vmem:[%s12 + $0x13c] sm:$0xff]
    %v2706 = vld [vmem:[%s12 + $0x144] sm:$0xff]
    %v2707 = vld [vmem:[%s12 + $0x14c] sm:$0xf]
    %v2708 = vld [vmem:[%s12 + $0x150] sm:$0xff]
    %v2709 = vld [vmem:[%s12 + $0x158] sm:$0xff]
    %v2710 = vld [vmem:[%s12 + $0x160] sm:$0xff]
    %v2711 = vld [vmem:[%s12 + $0x168] sm:$0xf]
    %v2712 = vld [vmem:[%s12 + $0x16c] sm:$0xff]
    %v2713 = vld [vmem:[%s12 + $0x174] sm:$0xff]
    %v2714 = vld [vmem:[%s12 + $0x17c] sm:$0xff]
    %v2715 = vld [vmem:[%s12 + $0x184] sm:$0xf]
    %v2716 = vld [vmem:[%s12 + $0x188] sm:$0xff]
    %v2717 = vld [vmem:[%s12 + $0x190] sm:$0xff]
    %v2718 = vld [vmem:[%s12 + $0x198] sm:$0xff]
    %v2719 = vld [vmem:[%s12 + $0x1a0] sm:$0xf]
    %v2720 = vld [vmem:[%s12 + $0x1a4] sm:$0xff]
    %v2721 = vld [vmem:[%s12 + $0x1ac] sm:$0xff]
    %v2722 = vld [vmem:[%s12 + $0x1b4] sm:$0xff]
    %v2723 = vld [vmem:[%s12 + $0x1bc] sm:$0xf]
    %v2724 = vld [vmem:[%s12 + $0x1c0] sm:$0xff]
    %v2725 = vld [vmem:[%s12 + $0x1c8] sm:$0xff]
    %v2726 = vld [vmem:[%s12 + $0x1d0] sm:$0xff]
    %v2727 = vld [vmem:[%s12 + $0x1d8] sm:$0xf]
    %v2728 = vld [vmem:[%s12 + $0x1dc] sm:$0xff]
    %v2729 = vld [vmem:[%s12 + $0x1e4] sm:$0xff]
    %v2730 = vld [vmem:[%s12 + $0x1ec] sm:$0xff]
    %v2731 = vld [vmem:[%s12 + $0x1f4] sm:$0xf]
    %v2732 = vld [vmem:[%s12 + $0x1f8] sm:$0xff]
    %v2733 = vld [vmem:[%s12 + $0x200] sm:$0xff]
    %v2734 = vld [vmem:[%s12 + $0x208] sm:$0xff]
    %v2735 = vld [vmem:[%s12 + $0x210] sm:$0xf]
    %v2736 = vld [vmem:[%s12 + $0x214] sm:$0xff]
    %v2737 = vld [vmem:[%s12 + $0x21c] sm:$0xff]
    %v2738 = vld [vmem:[%s12 + $0x224] sm:$0xff]
    %v2739 = vld [vmem:[%s12 + $0x22c] sm:$0xf]
    %v2740 = vld [vmem:[%s12 + $0x230] sm:$0xff]
    %v2741 = vld [vmem:[%s12 + $0x238] sm:$0xff]
    %v2742 = vld [vmem:[%s12 + $0x240] sm:$0xff]
    %v2743 = vld [vmem:[%s12 + $0x248] sm:$0xf]
    %v2744 = vld [vmem:[%s12 + $0x24c] sm:$0xff]
    %v2745 = vld [vmem:[%s12 + $0x254] sm:$0xff]
    %v2746 = vld [vmem:[%s12 + $0x25c] sm:$0xff]
    %v2747 = vld [vmem:[%s12 + $0x264] sm:$0xf]
    %v2748 = vld [vmem:[%s12 + $0x268] sm:$0xff]
    %v2749 = vld [vmem:[%s12 + $0x270] sm:$0xff]
    %v2750 = vld [vmem:[%s12 + $0x278] sm:$0xff]
    %v2751 = vld [vmem:[%s12 + $0x280] sm:$0xf]
    %v2752 = vld [vmem:[%s12 + $0x284] sm:$0xff]
    %v2753 = vld [vmem:[%s12 + $0x28c] sm:$0xff]
    %v2754 = vld [vmem:[%s12 + $0x294] sm:$0xff]
    %v2755 = vld [vmem:[%s12 + $0x29c] sm:$0xf]
    %v2756 = vld [vmem:[%s12 + $0x2a0] sm:$0xff]
    %v2757 = vld [vmem:[%s12 + $0x2a8] sm:$0xff]
    %v2758 = vld [vmem:[%s12 + $0x2b0] sm:$0xff]
    %v2759 = vld [vmem:[%s12 + $0x2b8] sm:$0xf]
    %v2760 = vld [vmem:[%s12 + $0x2bc] sm:$0xff]
    %v2761 = vld [vmem:[%s12 + $0x2c4] sm:$0xff]
    %v2762 = vld [vmem:[%s12 + $0x2cc] sm:$0xff]
    %v2763 = vld [vmem:[%s12 + $0x2d4] sm:$0xf]
    %v2764 = vld [vmem:[%s12 + $0x2d8] sm:$0xff]
    %v2765 = vld [vmem:[%s12 + $0x2e0] sm:$0xff]
    %v2766 = vld [vmem:[%s12 + $0x2e8] sm:$0xff]
    %v2767 = vld [vmem:[%s12 + $0x2f0] sm:$0xf]
    %v2768 = vld [vmem:[%s12 + $0x2f4] sm:$0xff]
    %v2769 = vld [vmem:[%s12 + $0x2fc] sm:$0xff]
    %v2770 = vld [vmem:[%s12 + $0x304] sm:$0xff]
    %v2771 = vld [vmem:[%s12 + $0x30c] sm:$0xf]
    %v2772 = vld [vmem:[%s12 + $0x310] sm:$0xff]
    %v2773 = vld [vmem:[%s12 + $0x318] sm:$0xff]
    %v2774 = vld [vmem:[%s12 + $0x320] sm:$0xff]
    %v2775 = vld [vmem:[%s12 + $0x328] sm:$0xf]
    %v2776 = vld [vmem:[%s12 + $0x32c] sm:$0xff]
    %v2777 = vld [vmem:[%s12 + $0x334] sm:$0xff]
    %v2778 = vld [vmem:[%s12 + $0x33c] sm:$0xff]
    %v2779 = vld [vmem:[%s12 + $0x344] sm:$0xf]
    %v2780 = vld [vmem:[%s12 + $0x348] sm:$0xff]
    %v2781 = vld [vmem:[%s12 + $0x350] sm:$0xff]
    %v2782 = vld [vmem:[%s12 + $0x358] sm:$0xff]
    %v2783 = vld [vmem:[%s12 + $0x360] sm:$0xf]
    %v2784 = vld [vmem:[%s12 + $0x364] sm:$0xff]
    %v2785 = vld [vmem:[%s12 + $0x36c] sm:$0xff]
    %v2786 = vld [vmem:[%s12 + $0x374] sm:$0xff]
    %v2787 = vld [vmem:[%s12 + $0x37c] sm:$0xf]
    %v2788 = vld [vmem:[%s13] sm:$0x7f]
    %v2790 = vlaneseq
    %v2791 = vshrl.u32 %v2790, 7
    %v2792 = vsub.s32 0, %v2791
    %v2793 = vrot.slane %v2788, %v2792
    %v2794 = vlaneseq
    %v2795 = vshrl.u32 %v2794, 7
    %v2796 = vsub.s32 1, %v2795
    %v2797 = vrot.slane %v2788, %v2796
    %v2798 = vlaneseq
    %v2799 = vshrl.u32 %v2798, 7
    %v2800 = vsub.s32 2, %v2799
    %v2801 = vrot.slane %v2788, %v2800
    %v2802 = vlaneseq
    %v2803 = vshrl.u32 %v2802, 7
    %v2804 = vsub.s32 3, %v2803
    %v2805 = vrot.slane %v2788, %v2804
    %v2806 = vlaneseq
    %v2807 = vshrl.u32 %v2806, 7
    %v2808 = vsub.s32 4, %v2807
    %v2809 = vrot.slane %v2788, %v2808
    %v2810 = vlaneseq
    %v2811 = vshrl.u32 %v2810, 7
    %v2812 = vsub.s32 5, %v2811
    %v2813 = vrot.slane %v2788, %v2812
    %v2814 = vlaneseq
    %v2815 = vshrl.u32 %v2814, 7
    %v2816 = vsub.s32 6, %v2815
    %v2817 = vrot.slane %v2788, %v2816
    %v2953 = vunpack.c.l.b16 %v2660
    %v2954 = vunpack.c.h.b16 %v2660
    %v2955 = vunpack.c.l.b16 %v2661
    %v2956 = vunpack.c.h.b16 %v2661
    %v2957 = vunpack.c.l.b16 %v2662
    %v2958 = vunpack.c.h.b16 %v2662
    %v2959 = vunpack.c.l.b16 %v2663
    %v2960 = vunpack.c.l.b16 %v2664
    %v2961 = vunpack.c.h.b16 %v2664
    %v2962 = vunpack.c.l.b16 %v2665
    %v2963 = vunpack.c.h.b16 %v2665
    %v2964 = vunpack.c.l.b16 %v2666
    %v2965 = vunpack.c.h.b16 %v2666
    %v2966 = vunpack.c.l.b16 %v2667
    %v2967 = vunpack.c.l.b16 %v2668
    %v2968 = vunpack.c.h.b16 %v2668
    %v2969 = vunpack.c.l.b16 %v2669
    %v2970 = vunpack.c.h.b16 %v2669
    %v2971 = vunpack.c.l.b16 %v2670
    %v2972 = vunpack.c.h.b16 %v2670
    %v2973 = vunpack.c.l.b16 %v2671
    %v2974 = vunpack.c.l.b16 %v2672
    %v2975 = vunpack.c.h.b16 %v2672
    %v2976 = vunpack.c.l.b16 %v2673
    %v2977 = vunpack.c.h.b16 %v2673
    %v2978 = vunpack.c.l.b16 %v2674
    %v2979 = vunpack.c.h.b16 %v2674
    %v2980 = vunpack.c.l.b16 %v2675
    %v2981 = vunpack.c.l.b16 %v2676
    %v2982 = vunpack.c.h.b16 %v2676
    %v2983 = vunpack.c.l.b16 %v2677
    %v2984 = vunpack.c.h.b16 %v2677
    %v2985 = vunpack.c.l.b16 %v2678
    %v2986 = vunpack.c.h.b16 %v2678
    %v2987 = vunpack.c.l.b16 %v2679
    %v2988 = vunpack.c.l.b16 %v2680
    %v2989 = vunpack.c.h.b16 %v2680
    %v2990 = vunpack.c.l.b16 %v2681
    %v2991 = vunpack.c.h.b16 %v2681
    %v2992 = vunpack.c.l.b16 %v2682
    %v2993 = vunpack.c.h.b16 %v2682
    %v2994 = vunpack.c.l.b16 %v2683
    %v2995 = vunpack.c.l.b16 %v2684
    %v2996 = vunpack.c.h.b16 %v2684
    %v2997 = vunpack.c.l.b16 %v2685
    %v2998 = vunpack.c.h.b16 %v2685
    %v2999 = vunpack.c.l.b16 %v2686
    %v3000 = vunpack.c.h.b16 %v2686
    %v3001 = vunpack.c.l.b16 %v2687
    %v3002 = vunpack.c.l.b16 %v2688
    %v3003 = vunpack.c.h.b16 %v2688
    %v3004 = vunpack.c.l.b16 %v2689
    %v3005 = vunpack.c.h.b16 %v2689
    %v3006 = vunpack.c.l.b16 %v2690
    %v3007 = vunpack.c.h.b16 %v2690
    %v3008 = vunpack.c.l.b16 %v2691
    %v3009 = vunpack.c.l.b16 %v2692
    %v3010 = vunpack.c.h.b16 %v2692
    %v3011 = vunpack.c.l.b16 %v2693
    %v3012 = vunpack.c.h.b16 %v2693
    %v3013 = vunpack.c.l.b16 %v2694
    %v3014 = vunpack.c.h.b16 %v2694
    %v3015 = vunpack.c.l.b16 %v2695
    %v3016 = vunpack.c.l.b16 %v2696
    %v3017 = vunpack.c.h.b16 %v2696
    %v3018 = vunpack.c.l.b16 %v2697
    %v3019 = vunpack.c.h.b16 %v2697
    %v3020 = vunpack.c.l.b16 %v2698
    %v3021 = vunpack.c.h.b16 %v2698
    %v3022 = vunpack.c.l.b16 %v2699
    %v3023 = vunpack.c.l.b16 %v2700
    %v3024 = vunpack.c.h.b16 %v2700
    %v3025 = vunpack.c.l.b16 %v2701
    %v3026 = vunpack.c.h.b16 %v2701
    %v3027 = vunpack.c.l.b16 %v2702
    %v3028 = vunpack.c.h.b16 %v2702
    %v3029 = vunpack.c.l.b16 %v2703
    %v3030 = vunpack.c.l.b16 %v2704
    %v3031 = vunpack.c.h.b16 %v2704
    %v3032 = vunpack.c.l.b16 %v2705
    %v3033 = vunpack.c.h.b16 %v2705
    %v3034 = vunpack.c.l.b16 %v2706
    %v3035 = vunpack.c.h.b16 %v2706
    %v3036 = vunpack.c.l.b16 %v2707
    %v3037 = vunpack.c.l.b16 %v2708
    %v3038 = vunpack.c.h.b16 %v2708
    %v3039 = vunpack.c.l.b16 %v2709
    %v3040 = vunpack.c.h.b16 %v2709
    %v3041 = vunpack.c.l.b16 %v2710
    %v3042 = vunpack.c.h.b16 %v2710
    %v3043 = vunpack.c.l.b16 %v2711
    %v3044 = vunpack.c.l.b16 %v2712
    %v3045 = vunpack.c.h.b16 %v2712
    %v3046 = vunpack.c.l.b16 %v2713
    %v3047 = vunpack.c.h.b16 %v2713
    %v3048 = vunpack.c.l.b16 %v2714
    %v3049 = vunpack.c.h.b16 %v2714
    %v3050 = vunpack.c.l.b16 %v2715
    %v3051 = vunpack.c.l.b16 %v2716
    %v3052 = vunpack.c.h.b16 %v2716
    %v3053 = vunpack.c.l.b16 %v2717
    %v3054 = vunpack.c.h.b16 %v2717
    %v3055 = vunpack.c.l.b16 %v2718
    %v3056 = vunpack.c.h.b16 %v2718
    %v3057 = vunpack.c.l.b16 %v2719
    %v3058 = vunpack.c.l.b16 %v2720
    %v3059 = vunpack.c.h.b16 %v2720
    %v3060 = vunpack.c.l.b16 %v2721
    %v3061 = vunpack.c.h.b16 %v2721
    %v3062 = vunpack.c.l.b16 %v2722
    %v3063 = vunpack.c.h.b16 %v2722
    %v3064 = vunpack.c.l.b16 %v2723
    %v3065 = vunpack.c.l.b16 %v2724
    %v3066 = vunpack.c.h.b16 %v2724
    %v3067 = vunpack.c.l.b16 %v2725
    %v3068 = vunpack.c.h.b16 %v2725
    %v3069 = vunpack.c.l.b16 %v2726
    %v3070 = vunpack.c.h.b16 %v2726
    %v3071 = vunpack.c.l.b16 %v2727
    %v3072 = vunpack.c.l.b16 %v2728
    %v3073 = vunpack.c.h.b16 %v2728
    %v3074 = vunpack.c.l.b16 %v2729
    %v3075 = vunpack.c.h.b16 %v2729
    %v3076 = vunpack.c.l.b16 %v2730
    %v3077 = vunpack.c.h.b16 %v2730
    %v3078 = vunpack.c.l.b16 %v2731
    %v3079 = vunpack.c.l.b16 %v2732
    %v3080 = vunpack.c.h.b16 %v2732
    %v3081 = vunpack.c.l.b16 %v2733
    %v3082 = vunpack.c.h.b16 %v2733
    %v3083 = vunpack.c.l.b16 %v2734
    %v3084 = vunpack.c.h.b16 %v2734
    %v3085 = vunpack.c.l.b16 %v2735
    %v3086 = vunpack.c.l.b16 %v2736
    %v3087 = vunpack.c.h.b16 %v2736
    %v3088 = vunpack.c.l.b16 %v2737
    %v3089 = vunpack.c.h.b16 %v2737
    %v3090 = vunpack.c.l.b16 %v2738
    %v3091 = vunpack.c.h.b16 %v2738
    %v3092 = vunpack.c.l.b16 %v2739
    %v3093 = vunpack.c.l.b16 %v2740
    %v3094 = vunpack.c.h.b16 %v2740
    %v3095 = vunpack.c.l.b16 %v2741
    %v3096 = vunpack.c.h.b16 %v2741
    %v3097 = vunpack.c.l.b16 %v2742
    %v3098 = vunpack.c.h.b16 %v2742
    %v3099 = vunpack.c.l.b16 %v2743
    %v3100 = vunpack.c.l.b16 %v2744
    %v3101 = vunpack.c.h.b16 %v2744
    %v3102 = vunpack.c.l.b16 %v2745
    %v3103 = vunpack.c.h.b16 %v2745
    %v3104 = vunpack.c.l.b16 %v2746
    %v3105 = vunpack.c.h.b16 %v2746
    %v3106 = vunpack.c.l.b16 %v2747
    %v3107 = vunpack.c.l.b16 %v2748
    %v3108 = vunpack.c.h.b16 %v2748
    %v3109 = vunpack.c.l.b16 %v2749
    %v3110 = vunpack.c.h.b16 %v2749
    %v3111 = vunpack.c.l.b16 %v2750
    %v3112 = vunpack.c.h.b16 %v2750
    %v3113 = vunpack.c.l.b16 %v2751
    %v3114 = vunpack.c.l.b16 %v2752
    %v3115 = vunpack.c.h.b16 %v2752
    %v3116 = vunpack.c.l.b16 %v2753
    %v3117 = vunpack.c.h.b16 %v2753
    %v3118 = vunpack.c.l.b16 %v2754
    %v3119 = vunpack.c.h.b16 %v2754
    %v3120 = vunpack.c.l.b16 %v2755
    %v3121 = vunpack.c.l.b16 %v2756
    %v3122 = vunpack.c.h.b16 %v2756
    %v3123 = vunpack.c.l.b16 %v2757
    %v3124 = vunpack.c.h.b16 %v2757
    %v3125 = vunpack.c.l.b16 %v2758
    %v3126 = vunpack.c.h.b16 %v2758
    %v3127 = vunpack.c.l.b16 %v2759
    %v3128 = vunpack.c.l.b16 %v2760
    %v3129 = vunpack.c.h.b16 %v2760
    %v3130 = vunpack.c.l.b16 %v2761
    %v3131 = vunpack.c.h.b16 %v2761
    %v3132 = vunpack.c.l.b16 %v2762
    %v3133 = vunpack.c.h.b16 %v2762
    %v3134 = vunpack.c.l.b16 %v2763
    %v3135 = vunpack.c.l.b16 %v2764
    %v3136 = vunpack.c.h.b16 %v2764
    %v3137 = vunpack.c.l.b16 %v2765
    %v3138 = vunpack.c.h.b16 %v2765
    %v3139 = vunpack.c.l.b16 %v2766
    %v3140 = vunpack.c.h.b16 %v2766
    %v3141 = vunpack.c.l.b16 %v2767
    %v3142 = vunpack.c.l.b16 %v2768
    %v3143 = vunpack.c.h.b16 %v2768
    %v3144 = vunpack.c.l.b16 %v2769
    %v3145 = vunpack.c.h.b16 %v2769
    %v3146 = vunpack.c.l.b16 %v2770
    %v3147 = vunpack.c.h.b16 %v2770
    %v3148 = vunpack.c.l.b16 %v2771
    %v3149 = vunpack.c.l.b16 %v2772
    %v3150 = vunpack.c.h.b16 %v2772
    %v3151 = vunpack.c.l.b16 %v2773
    %v3152 = vunpack.c.h.b16 %v2773
    %v3153 = vunpack.c.l.b16 %v2774
    %v3154 = vunpack.c.h.b16 %v2774
    %v3155 = vunpack.c.l.b16 %v2775
    %v3156 = vunpack.c.l.b16 %v2776
    %v3157 = vunpack.c.h.b16 %v2776
    %v3158 = vunpack.c.l.b16 %v2777
    %v3159 = vunpack.c.h.b16 %v2777
    %v3160 = vunpack.c.l.b16 %v2778
    %v3161 = vunpack.c.h.b16 %v2778
    %v3162 = vunpack.c.l.b16 %v2779
    %v3163 = vunpack.c.l.b16 %v2780
    %v3164 = vunpack.c.h.b16 %v2780
    %v3165 = vunpack.c.l.b16 %v2781
    %v3166 = vunpack.c.h.b16 %v2781
    %v3167 = vunpack.c.l.b16 %v2782
    %v3168 = vunpack.c.h.b16 %v2782
    %v3169 = vunpack.c.l.b16 %v2783
    %v3170 = vunpack.c.l.b16 %v2784
    %v3171 = vunpack.c.h.b16 %v2784
    %v3172 = vunpack.c.l.b16 %v2785
    %v3173 = vunpack.c.h.b16 %v2785
    %v3174 = vunpack.c.l.b16 %v2786
    %v3175 = vunpack.c.h.b16 %v2786
    %v3176 = vunpack.c.l.b16 %v2787
    %v3177 = vpack.c.b16 %v2960, %v2953
    %v3178 = vpack.c.b16 %v2961, %v2954
    %v3179 = vpack.c.b16 %v2962, %v2955
    %v3180 = vpack.c.b16 %v2963, %v2956
    %v3181 = vpack.c.b16 %v2964, %v2957
    %v3182 = vpack.c.b16 %v2965, %v2958
    %v3183 = vpack.c.b16 %v2966, %v2959
    %v3184 = vpack.c.b16 %v2974, %v2967
    %v3185 = vpack.c.b16 %v2975, %v2968
    %v3186 = vpack.c.b16 %v2976, %v2969
    %v3187 = vpack.c.b16 %v2977, %v2970
    %v3188 = vpack.c.b16 %v2978, %v2971
    %v3189 = vpack.c.b16 %v2979, %v2972
    %v3190 = vpack.c.b16 %v2980, %v2973
    %v3191 = vpack.c.b16 %v2988, %v2981
    %v3192 = vpack.c.b16 %v2989, %v2982
    %v3193 = vpack.c.b16 %v2990, %v2983
    %v3194 = vpack.c.b16 %v2991, %v2984
    %v3195 = vpack.c.b16 %v2992, %v2985
    %v3196 = vpack.c.b16 %v2993, %v2986
    %v3197 = vpack.c.b16 %v2994, %v2987
    %v3198 = vpack.c.b16 %v3002, %v2995
    %v3199 = vpack.c.b16 %v3003, %v2996
    %v3200 = vpack.c.b16 %v3004, %v2997
    %v3201 = vpack.c.b16 %v3005, %v2998
    %v3202 = vpack.c.b16 %v3006, %v2999
    %v3203 = vpack.c.b16 %v3007, %v3000
    %v3204 = vpack.c.b16 %v3008, %v3001
    %v3205 = vpack.c.b16 %v3016, %v3009
    %v3206 = vpack.c.b16 %v3017, %v3010
    %v3207 = vpack.c.b16 %v3018, %v3011
    %v3208 = vpack.c.b16 %v3019, %v3012
    %v3209 = vpack.c.b16 %v3020, %v3013
    %v3210 = vpack.c.b16 %v3021, %v3014
    %v3211 = vpack.c.b16 %v3022, %v3015
    %v3212 = vpack.c.b16 %v3030, %v3023
    %v3213 = vpack.c.b16 %v3031, %v3024
    %v3214 = vpack.c.b16 %v3032, %v3025
    %v3215 = vpack.c.b16 %v3033, %v3026
    %v3216 = vpack.c.b16 %v3034, %v3027
    %v3217 = vpack.c.b16 %v3035, %v3028
    %v3218 = vpack.c.b16 %v3036, %v3029
    %v3219 = vpack.c.b16 %v3044, %v3037
    %v3220 = vpack.c.b16 %v3045, %v3038
    %v3221 = vpack.c.b16 %v3046, %v3039
    %v3222 = vpack.c.b16 %v3047, %v3040
    %v3223 = vpack.c.b16 %v3048, %v3041
    %v3224 = vpack.c.b16 %v3049, %v3042
    %v3225 = vpack.c.b16 %v3050, %v3043
    %v3226 = vpack.c.b16 %v3058, %v3051
    %v3227 = vpack.c.b16 %v3059, %v3052
    %v3228 = vpack.c.b16 %v3060, %v3053
    %v3229 = vpack.c.b16 %v3061, %v3054
    %v3230 = vpack.c.b16 %v3062, %v3055
    %v3231 = vpack.c.b16 %v3063, %v3056
    %v3232 = vpack.c.b16 %v3064, %v3057
    %v3233 = vpack.c.b16 %v3072, %v3065
    %v3234 = vpack.c.b16 %v3073, %v3066
    %v3235 = vpack.c.b16 %v3074, %v3067
    %v3236 = vpack.c.b16 %v3075, %v3068
    %v3237 = vpack.c.b16 %v3076, %v3069
    %v3238 = vpack.c.b16 %v3077, %v3070
    %v3239 = vpack.c.b16 %v3078, %v3071
    %v3240 = vpack.c.b16 %v3086, %v3079
    %v3241 = vpack.c.b16 %v3087, %v3080
    %v3242 = vpack.c.b16 %v3088, %v3081
    %v3243 = vpack.c.b16 %v3089, %v3082
    %v3244 = vpack.c.b16 %v3090, %v3083
    %v3245 = vpack.c.b16 %v3091, %v3084
    %v3246 = vpack.c.b16 %v3092, %v3085
    %v3247 = vpack.c.b16 %v3100, %v3093
    %v3248 = vpack.c.b16 %v3101, %v3094
    %v3249 = vpack.c.b16 %v3102, %v3095
    %v3250 = vpack.c.b16 %v3103, %v3096
    %v3251 = vpack.c.b16 %v3104, %v3097
    %v3252 = vpack.c.b16 %v3105, %v3098
    %v3253 = vpack.c.b16 %v3106, %v3099
    %v3254 = vpack.c.b16 %v3114, %v3107
    %v3255 = vpack.c.b16 %v3115, %v3108
    %v3256 = vpack.c.b16 %v3116, %v3109
    %v3257 = vpack.c.b16 %v3117, %v3110
    %v3258 = vpack.c.b16 %v3118, %v3111
    %v3259 = vpack.c.b16 %v3119, %v3112
    %v3260 = vpack.c.b16 %v3120, %v3113
    %v3261 = vpack.c.b16 %v3128, %v3121
    %v3262 = vpack.c.b16 %v3129, %v3122
    %v3263 = vpack.c.b16 %v3130, %v3123
    %v3264 = vpack.c.b16 %v3131, %v3124
    %v3265 = vpack.c.b16 %v3132, %v3125
    %v3266 = vpack.c.b16 %v3133, %v3126
    %v3267 = vpack.c.b16 %v3134, %v3127
    %v3268 = vpack.c.b16 %v3142, %v3135
    %v3269 = vpack.c.b16 %v3143, %v3136
    %v3270 = vpack.c.b16 %v3144, %v3137
    %v3271 = vpack.c.b16 %v3145, %v3138
    %v3272 = vpack.c.b16 %v3146, %v3139
    %v3273 = vpack.c.b16 %v3147, %v3140
    %v3274 = vpack.c.b16 %v3148, %v3141
    %v3275 = vpack.c.b16 %v3156, %v3149
    %v3276 = vpack.c.b16 %v3157, %v3150
    %v3277 = vpack.c.b16 %v3158, %v3151
    %v3278 = vpack.c.b16 %v3159, %v3152
    %v3279 = vpack.c.b16 %v3160, %v3153
    %v3280 = vpack.c.b16 %v3161, %v3154
    %v3281 = vpack.c.b16 %v3162, %v3155
    %v3282 = vpack.c.b16 %v3170, %v3163
    %v3283 = vpack.c.b16 %v3171, %v3164
    %v3284 = vpack.c.b16 %v3172, %v3165
    %v3285 = vpack.c.b16 %v3173, %v3166
    %v3286 = vpack.c.b16 %v3174, %v3167
    %v3287 = vpack.c.b16 %v3175, %v3168
    %v3288 = vpack.c.b16 %v3176, %v3169
    %3401 = vmatprep.subr.bf16.mxu0 %v3178
    %3402 = vmatpush1.bf16.msra.mxu0 %v3177
    %3403 = vmatprep.subr.bf16.mxu0 %v3185
    %3404 = vmatpush1.bf16.msra.mxu0 %v3184
    %3405 = vmatprep.subr.bf16.mxu0 %v3192
    %3406 = vmatpush1.bf16.msra.mxu0 %v3191
    %3407 = vmatprep.subr.bf16.mxu0 %v3199
    %3408 = vmatpush1.bf16.msra.mxu0 %v3198
    %3409 = vmatprep.subr.bf16.mxu0 %v3206
    %3410 = vmatpush1.bf16.msra.mxu0 %v3205
    %3411 = vmatprep.subr.bf16.mxu0 %v3213
    %3412 = vmatpush1.bf16.msra.mxu0 %v3212
    %3413 = vmatprep.subr.bf16.mxu0 %v3220
    %3414 = vmatpush1.bf16.msra.mxu0 %v3219
    %3415 = vmatprep.subr.bf16.mxu0 %v3227
    %3416 = vmatpush1.bf16.msra.mxu0 %v3226
    %3417 = vmatprep.subr.bf16.mxu0 %v3234
    %3418 = vmatpush1.bf16.msra.mxu0 %v3233
    %3419 = vmatprep.subr.bf16.mxu0 %v3241
    %3420 = vmatpush1.bf16.msra.mxu0 %v3240
    %3421 = vmatprep.subr.bf16.mxu0 %v3248
    %3422 = vmatpush1.bf16.msra.mxu0 %v3247
    %3423 = vmatprep.subr.bf16.mxu0 %v3255
    %3424 = vmatpush1.bf16.msra.mxu0 %v3254
    %3425 = vmatprep.subr.bf16.mxu0 %v3262
    %3426 = vmatpush1.bf16.msra.mxu0 %v3261
    %3427 = vmatprep.subr.bf16.mxu0 %v3269
    %3428 = vmatpush1.bf16.msra.mxu0 %v3268
    %3429 = vmatprep.subr.bf16.mxu0 %v3276
    %3430 = vmatpush1.bf16.msra.mxu0 %v3275
    %3431 = vmatprep.subr.bf16.mxu0 %v3283
    %3432 = vmatpush1.bf16.msra.mxu0 %v3282
    %3433 = vmatprep.mubr.bf16.mxu0 %v2659
    %3434 = vmatmul.mubr.bf16.gmra.mrb[0].mxu0 %v2658
    %v3435 = vpop.f32.mrb[0].mxu0
    %v3436 = vadd.f32 %v2793, %v3435
    %v3437 = vpop.f32.mrb[0].mxu0
    %v3438 = vadd.f32 %v2797, %v3437
    %v3439 = vpop.f32.mrb[0].mxu0
    %v3440 = vpop.f32.mrb[0].mxu0
    %3441 = vdwg.mxu0
    %3442 = vmatprep.subr.bf16.mxu0 %v3180
    %3443 = vmatpush1.bf16.msra.mxu0 %v3179
    %3444 = vmatprep.subr.bf16.mxu0 %v3187
    %3445 = vmatpush1.bf16.msra.mxu0 %v3186
    %3446 = vmatprep.subr.bf16.mxu0 %v3194
    %3447 = vmatpush1.bf16.msra.mxu0 %v3193
    %3448 = vmatprep.subr.bf16.mxu0 %v3201
    %3449 = vmatpush1.bf16.msra.mxu0 %v3200
    %3450 = vmatprep.subr.bf16.mxu0 %v3208
    %3451 = vmatpush1.bf16.msra.mxu0 %v3207
    %3452 = vmatprep.subr.bf16.mxu0 %v3215
    %3453 = vmatpush1.bf16.msra.mxu0 %v3214
    %3454 = vmatprep.subr.bf16.mxu0 %v3222
    %3455 = vmatpush1.bf16.msra.mxu0 %v3221
    %3456 = vmatprep.subr.bf16.mxu0 %v3229
    %3457 = vmatpush1.bf16.msra.mxu0 %v3228
    %3458 = vmatprep.subr.bf16.mxu0 %v3236
    %3459 = vmatpush1.bf16.msra.mxu0 %v3235
    %3460 = vmatprep.subr.bf16.mxu0 %v3243
    %3461 = vmatpush1.bf16.msra.mxu0 %v3242
    %3462 = vmatprep.subr.bf16.mxu0 %v3250
    %3463 = vmatpush1.bf16.msra.mxu0 %v3249
    %3464 = vmatprep.subr.bf16.mxu0 %v3257
    %3465 = vmatpush1.bf16.msra.mxu0 %v3256
    %3466 = vmatprep.subr.bf16.mxu0 %v3264
    %3467 = vmatpush1.bf16.msra.mxu0 %v3263
    %3468 = vmatprep.subr.bf16.mxu0 %v3271
    %3469 = vmatpush1.bf16.msra.mxu0 %v3270
    %3470 = vmatprep.subr.bf16.mxu0 %v3278
    %3471 = vmatpush1.bf16.msra.mxu0 %v3277
    %3472 = vmatprep.subr.bf16.mxu0 %v3285
    %3473 = vmatpush1.bf16.msra.mxu0 %v3284
    %3474 = vmatprep.mubr.bf16.mxu0 %v2659
    %3475 = vmatmul.mubr.bf16.gmra.mrb[0].mxu0 %v2658
    %v3476 = vpop.f32.mrb[0].mxu0
    %v3477 = vadd.f32 %v2801, %v3476
    %v3478 = vpop.f32.mrb[0].mxu0
    %v3479 = vadd.f32 %v2805, %v3478
    %v3480 = vpop.f32.mrb[0].mxu0
    %v3481 = vpop.f32.mrb[0].mxu0
    %3482 = vdwg.mxu0
    %3483 = vmatprep.subr.bf16.mxu0 %v3182
    %3484 = vmatpush1.bf16.msra.mxu0 %v3181
    %3485 = vmatprep.subr.bf16.mxu0 %v3189
    %3486 = vmatpush1.bf16.msra.mxu0 %v3188
    %3487 = vmatprep.subr.bf16.mxu0 %v3196
    %3488 = vmatpush1.bf16.msra.mxu0 %v3195
    %3489 = vmatprep.subr.bf16.mxu0 %v3203
    %3490 = vmatpush1.bf16.msra.mxu0 %v3202
    %3491 = vmatprep.subr.bf16.mxu0 %v3210
    %3492 = vmatpush1.bf16.msra.mxu0 %v3209
    %3493 = vmatprep.subr.bf16.mxu0 %v3217
    %3494 = vmatpush1.bf16.msra.mxu0 %v3216
    %3495 = vmatprep.subr.bf16.mxu0 %v3224
    %3496 = vmatpush1.bf16.msra.mxu0 %v3223
    %3497 = vmatprep.subr.bf16.mxu0 %v3231
    %3498 = vmatpush1.bf16.msra.mxu0 %v3230
    %3499 = vmatprep.subr.bf16.mxu0 %v3238
    %3500 = vmatpush1.bf16.msra.mxu0 %v3237
    %3501 = vmatprep.subr.bf16.mxu0 %v3245
    %3502 = vmatpush1.bf16.msra.mxu0 %v3244
    %3503 = vmatprep.subr.bf16.mxu0 %v3252
    %3504 = vmatpush1.bf16.msra.mxu0 %v3251
    %3505 = vmatprep.subr.bf16.mxu0 %v3259
    %3506 = vmatpush1.bf16.msra.mxu0 %v3258
    %3507 = vmatprep.subr.bf16.mxu0 %v3266
    %3508 = vmatpush1.bf16.msra.mxu0 %v3265
    %3509 = vmatprep.subr.bf16.mxu0 %v3273
    %3510 = vmatpush1.bf16.msra.mxu0 %v3272
    %3511 = vmatprep.subr.bf16.mxu0 %v3280
    %3512 = vmatpush1.bf16.msra.mxu0 %v3279
    %3513 = vmatprep.subr.bf16.mxu0 %v3287
    %3514 = vmatpush1.bf16.msra.mxu0 %v3286
    %3515 = vmatprep.mubr.bf16.mxu0 %v2659
    %3516 = vmatmul.mubr.bf16.gmra.mrb[0].mxu0 %v2658
    %v3517 = vpop.f32.mrb[0].mxu0
    %v3518 = vadd.f32 %v2809, %v3517
    %v3519 = vpop.f32.mrb[0].mxu0
    %v3520 = vadd.f32 %v2813, %v3519
    %v3521 = vpop.f32.mrb[0].mxu0
    %v3522 = vpop.f32.mrb[0].mxu0
    %3523 = vdwg.mxu0
    %3524 = vmatprep.subr.bf16.mxu0 0
    %3525 = vmatpush1.bf16.msra.mxu0 %v3183
    %3526 = vmatprep.subr.bf16.mxu0 0
    %3527 = vmatpush1.bf16.msra.mxu0 %v3190
    %3528 = vmatprep.subr.bf16.mxu0 0
    %3529 = vmatpush1.bf16.msra.mxu0 %v3197
    %3530 = vmatprep.subr.bf16.mxu0 0
    %3531 = vmatpush1.bf16.msra.mxu0 %v3204
    %3532 = vmatprep.subr.bf16.mxu0 0
    %3533 = vmatpush1.bf16.msra.mxu0 %v3211
    %3534 = vmatprep.subr.bf16.mxu0 0
    %3535 = vmatpush1.bf16.msra.mxu0 %v3218
    %3536 = vmatprep.subr.bf16.mxu0 0
    %3537 = vmatpush1.bf16.msra.mxu0 %v3225
    %3538 = vmatprep.subr.bf16.mxu0 0
    %3539 = vmatpush1.bf16.msra.mxu0 %v3232
    %3540 = vmatprep.subr.bf16.mxu0 0
    %3541 = vmatpush1.bf16.msra.mxu0 %v3239
    %3542 = vmatprep.subr.bf16.mxu0 0
    %3543 = vmatpush1.bf16.msra.mxu0 %v3246
    %3544 = vmatprep.subr.bf16.mxu0 0
    %3545 = vmatpush1.bf16.msra.mxu0 %v3253
    %3546 = vmatprep.subr.bf16.mxu0 0
    %3547 = vmatpush1.bf16.msra.mxu0 %v3260
    %3548 = vmatprep.subr.bf16.mxu0 0
    %3549 = vmatpush1.bf16.msra.mxu0 %v3267
    %3550 = vmatprep.subr.bf16.mxu0 0
    %3551 = vmatpush1.bf16.msra.mxu0 %v3274
    %3552 = vmatprep.subr.bf16.mxu0 0
    %3553 = vmatpush1.bf16.msra.mxu0 %v3281
    %3554 = vmatprep.subr.bf16.mxu0 0
    %3555 = vmatpush1.bf16.msra.mxu0 %v3288
    %3556 = vmatprep.mubr.bf16.mxu0 %v2659
    %3557 = vmatmul.mubr.bf16.gmra.mrb[0].mxu0 %v2658
    %v3558 = vpop.f32.mrb[0].mxu0
    %v3559 = vadd.f32 %v2817, %v3558
    %v3560 = vpop.f32.mrb[0].mxu0
    %v3561 = vpop.f32.mrb[0].mxu0
    %v3562 = vpop.f32.mrb[0].mxu0
    %3563 = vdwg.mxu0
    %v3564 = vmul.f32 %v3436, 0.5
    %v3565 = vmul.f32 %v3438, 0.5
    %v3566 = vmul.f32 %v3477, 0.5
    %v3567 = vmul.f32 %v3479, 0.5
    %v3568 = vmul.f32 %v3518, 0.5
    %v3569 = vmul.f32 %v3520, 0.5
    %v3570 = vmul.f32 %v3559, 0.5
    %v3571 = vtanh.pop %v3564
    %v3572 = vtanh.pop %v3565
    %v3573 = vtanh.pop %v3566
    %v3574 = vtanh.pop %v3567
    %v3575 = vtanh.pop %v3568
    %v3576 = vtanh.pop %v3569
    %v3577 = vtanh.pop %v3570
    %v3578 = vadd.f32 %v3571, 1.0
    %v3579 = vadd.f32 %v3572, 1.0
    %v3580 = vadd.f32 %v3573, 1.0
    %v3581 = vadd.f32 %v3574, 1.0
    %v3582 = vadd.f32 %v3575, 1.0
    %v3583 = vadd.f32 %v3576, 1.0
    %v3584 = vadd.f32 %v3577, 1.0
    %v3585 = vmul.f32 %v3578, 0.5
    %v3586 = vmul.f32 %v3579, 0.5
    %v3587 = vmul.f32 %v3580, 0.5
    %v3588 = vmul.f32 %v3581, 0.5
    %v3589 = vmul.f32 %v3582, 0.5
    %v3590 = vmul.f32 %v3583, 0.5
    %v3591 = vmul.f32 %v3584, 0.5
    %v3592 = vpack.c.bf16 %v3585, %v3585
    %v3593 = vpack.c.bf16 %v3586, %v3586
    %v3594 = vpack.c.bf16 %v3587, %v3587
    %v3595 = vpack.c.bf16 %v3588, %v3588
    %v3596 = vpack.c.bf16 %v3589, %v3589
    %v3597 = vpack.c.bf16 %v3590, %v3590
    %v3598 = vpack.c.bf16 %v3591, %v3591
    %v3606 = vunpack.c.l.b16 %v3592
    %v3607 = vunpack.c.l.b16 %v3593
    %v3608 = vunpack.c.l.b16 %v3594
    %v3609 = vunpack.c.l.b16 %v3595
    %v3610 = vunpack.c.l.b16 %v3596
    %v3611 = vunpack.c.l.b16 %v3597
    %v3612 = vunpack.c.l.b16 %v3598
    %v3613 = vpack.c.b16 %v3607, %v3606
    %v3614 = vpack.c.b16 %v3609, %v3608
    %v3615 = vpack.c.b16 %v3611, %v3610
    %v3616 = vpack.c.b16 %v3612, %v3612
    %3621 = vst [vmem:[#allocation15] sm:$0xff] %v3613
    %3622 = vst [vmem:[#allocation15 + $0x8] sm:$0xff] %v3614
    %3623 = vst [vmem:[#allocation15 + $0x10] sm:$0xff] %v3615
    %vm3624 = vcmask 125952
    %3625 = vst.msk [vmem:[#allocation15 + $0x18] sm:$0xf] %vm3624, %v3616
    // Predicated region
    $region94: #{tpu_custom_call.1} parent=1 // pred_check
      _
    $region95: #{tpu_custom_call.1} parent=1 // pred_check_branch
      %3627 = sbr.rel (0) target = $region97
    $region96: #{tpu_custom_call.1} parent=1 // pred_region
      %s3629 = ssub.s32 448, 448
      %3630 = vsyncadd [#allocation5], %s3629
      %s3632 = sshll.u32 [#allocation15], 4
      %s3633 = int_to_ptr.vmem [resolvable:$true] %s3632
      %3635 = dma.vmem_to_hbm [thread:$0]  %s3633, 448, %s16, [#allocation5]
    $region97: #{tpu_custom_call.1} parent=1 // pred_fallthru
      _
    // Predicated region
    $region98: #{tpu_custom_call.1} parent=1 // pred_check
      _
    $region99: #{tpu_custom_call.1} parent=1 // pred_check_branch
      %3637 = sbr.rel (0) target = $region101
    $region100: #{tpu_custom_call.1} parent=1 // pred_region
      %s3639 = ssub.s32 128, 128
      %3640 = vsyncadd [#allocation17], %s3639
      %s3642 = sshll.u32 [#allocation16], 4
      %s3643 = int_to_ptr.vmem [resolvable:$true] %s3642
      %3645 = dma.vmem_to_hbm [thread:$0]  %s3643, 128, %s17, [#allocation17]
    $region101: #{tpu_custom_call.1} parent=1 // pred_fallthru
      _
    // Predicated region
    $region102: #{tpu_custom_call.1} parent=1 // pred_check
      _
    $region103: #{tpu_custom_call.1} parent=1 // pred_check_branch
      %3647 = sbr.rel (0) target = $region105
    $region104: #{tpu_custom_call.1} parent=1 // pred_region
      %3648 = dma.done [#allocation5], 448
    $region105: #{tpu_custom_call.1} parent=1 // pred_fallthru
      _
    // Predicated region
    $region106: #{tpu_custom_call.1} parent=1 // pred_check
      _
    $region107: #{tpu_custom_call.1} parent=1 // pred_check_branch
      %3650 = sbr.rel (0) target = $region109
    $region108: #{tpu_custom_call.1} parent=1 // pred_region
      %3651 = dma.done [#allocation17], 128
    $region109: #{tpu_custom_call.1} parent=1 // pred_fallthru
      _
    %3652 = vsyncpa [#allocation4], 1
    %3653 = vsyncpa [#allocation7], 1
    %3654 = vsyncpa [#allocation10], 1
    %3655 = vsyncpa [#allocation13], 1
    %3656 = vsyncpa [#allocation5], 1
    %3657 = vsyncpa [#allocation17], 1

</llo_original>
